<compile_context>
chip_gen: v5e
topology: v5e:2x2
jax: 0.10.0
libtpu: 0.0.40
codegen_flags: <defaults>
</compile_context>

<pallas_src>
import functools

import jax
import jax.numpy as jnp
from jax.experimental import pallas as pl
from jax.experimental.pallas import tpu as pltpu

ALPHA = 0.25
GAMMA = 2.0            # focal gamma == 2 -> implemented as a square (no pow)
MD_THRES = 0.5
BETA_SL1 = 1.0 / 9.0   # smooth_l1 beta
NEG_INF = -1e9
LANE = 128


def _round_up(x, m):
    return (x + m - 1) // m * m


def _anchor_tiling(A):
    """Pick (A_pad, TA): TA multiple of 128, A_pad multiple of TA (pad instead of odd tiles)."""
    a128 = _round_up(A, LANE)
    if a128 <= 1024:
        return a128, a128          # single tile, SA == full sublane extent (always legal)
    return _round_up(A, 1024), 1024


def _integrated_loss_kernel(cls_ref, reg_ref, anc_ref, annt_ref, out_ref,
                            colmax_ref, colarg_ref, acc_ref,
                            *, num_anchors, padded_anchors):
    p = pl.program_id(1)          # phase: 0 = per-GT global argmax, 1 = loss accumulation
    t = pl.program_id(2)          # anchor tile
    n_tiles = pl.num_programs(2)

    f32 = jnp.float32
    C = cls_ref.shape[1]
    N = annt_ref.shape[1]
    SA = anc_ref.shape[2]

    # Anchor fields of this tile: full (SA, 128) vreg chunks.
    ax1 = anc_ref[0, 0].astype(f32)
    ay1 = anc_ref[0, 1].astype(f32)
    ax2 = anc_ref[0, 2].astype(f32)
    ay2 = anc_ref[0, 3].astype(f32)
    area_a = (ax2 - ax1) * (ay2 - ay1)

    ann = annt_ref[0].astype(f32)                                   # (N, 6) tiny block

    sub_iota = jax.lax.broadcasted_iota(jnp.int32, (SA, LANE), 0)
    lane_iota = jax.lax.broadcasted_iota(jnp.int32, (SA, LANE), 1)
    gidx = (t * SA + sub_iota) * LANE + lane_iota                   # global anchor index
    has_pad = padded_anchors != num_anchors
    if has_pad:
        anchor_valid = gidx < num_anchors

    def gt_fields(n):
        return (ann[n:n + 1, 0:1], ann[n:n + 1, 1:2], ann[n:n + 1, 2:3],
                ann[n:n + 1, 3:4], ann[n:n + 1, 4:5], ann[n:n + 1, 5:6])

    def iou_with_gt(gx1, gy1, gx2, gy2):
        """Axis-aligned IoU of every anchor in the tile vs one GT (scalar-broadcast fields)."""
        # TODO(synk): reference uses rbbx_overlaps (rotated-box IoU, external CUDA op);
        #             approximated with axis-aligned IoU over (x1,y1,x2,y2).
        ix1 = jnp.maximum(ax1, gx1)
        iy1 = jnp.maximum(ay1, gy1)
        ix2 = jnp.minimum(ax2, gx2)
        iy2 = jnp.minimum(ay2, gy2)
        inter = jnp.maximum(ix2 - ix1, 0.0) * jnp.maximum(iy2 - iy1, 0.0)
        area_g = (gx2 - gx1) * (gy2 - gy1)
        union = area_a + area_g - inter + 1e-8
        return inter * pl.reciprocal(union, approx=True)            # EUP, VALU stays free

    @pl.when((p == 0) & (t == 0))
    def _reset():
        colmax_ref[...] = jnp.full((N, LANE), NEG_INF, f32)
        colarg_ref[...] = jnp.zeros((N, LANE), jnp.int32)
        acc_ref[...] = jnp.zeros((3, SA, LANE), f32)

    # ---------------- phase 0: per-GT running max / argmax over anchors (per-lane partials) ----
    @pl.when(p == 0)
    def _phase0():
        lane_row = jax.lax.broadcasted_iota(jnp.int32, (1, LANE), 1)
        for n in range(N):
            gx1, gy1, gx2, gy2, _, _ = gt_fields(n)
            iou = iou_with_gt(gx1, gy1, gx2, gy2)
            if has_pad:
                iou = jnp.where(anchor_valid, iou, NEG_INF)          # padded anchors never win
            lane_max = jnp.max(iou, axis=0, keepdims=True)           # (1, 128)
            sub_arg = jnp.min(jnp.where(iou == lane_max, sub_iota, SA),
                              axis=0, keepdims=True)                 # (1, 128)
            lane_arg = (t * SA + sub_arg) * LANE + lane_row          # global anchor index
            old_m = colmax_ref[pl.ds(n, 1), :]
            old_a = colarg_ref[pl.ds(n, 1), :]
            better = lane_max > old_m
            colmax_ref[pl.ds(n, 1), :] = jnp.where(better, lane_max, old_m)
            colarg_ref[pl.ds(n, 1), :] = jnp.where(better, lane_arg, old_a)

    # ---------------- phase 1: assignment + focal cls loss + smooth-L1 reg loss ----------------
    @pl.when(p == 1)
    def _phase1():
        run_max = jnp.full((SA, LANE), NEG_INF, f32)
        as_x1 = jnp.zeros((SA, LANE), f32)
        as_y1 = jnp.zeros((SA, LANE), f32)
        as_x2 = jnp.zeros((SA, LANE), f32)
        as_y2 = jnp.zeros((SA, LANE), f32)
        as_th = jnp.zeros((SA, LANE), f32)
        as_lb = jnp.full((SA, LANE), -1.0, f32)
        forced = jnp.zeros((SA, LANE), jnp.bool_)

        for n in range(N):
            gx1, gy1, gx2, gy2, gth, glb = gt_fields(n)
            valid_n = glb != -1.0                                    # (1, 1) bool
            iou = iou_with_gt(gx1, gy1, gx2, gy2)
            md_n = jnp.where(valid_n, iou, NEG_INF)

            # forced positives: valid GTs with global best IoU < thres force their argmax anchor
            row_m = colmax_ref[pl.ds(n, 1), :]                       # (1, 128)
            row_a = colarg_ref[pl.ds(n, 1), :]
            gmax = jnp.max(row_m, axis=1, keepdims=True)             # (1, 1)
            garg = jnp.min(jnp.where(row_m == gmax, row_a, 1 << 30),
                           axis=1, keepdims=True)                    # (1, 1) i32
            forced = forced | ((gidx == garg) & (gmax < MD_THRES) & valid_n)

            # running per-anchor argmax GT (first-wins tie-break, like torch)
            better = md_n > run_max
            run_max = jnp.where(better, md_n, run_max)
            as_x1 = jnp.where(better, gx1, as_x1)
            as_y1 = jnp.where(better, gy1, as_y1)
            as_x2 = jnp.where(better, gx2, as_x2)
            as_y2 = jnp.where(better, gy2, as_y2)
            as_th = jnp.where(better, gth, as_th)
            as_lb = jnp.where(better, glb, as_lb)

        positive = (run_max >= MD_THRES) | forced
        neg = run_max < (MD_THRES - 0.1)
        compute_cls = positive | neg                                 # cls target != -1
        if has_pad:
            positive = positive & anchor_valid
            compute_cls = compute_cls & anchor_valid
        pos_f = positive.astype(f32)

        # ---- focal classification loss (gamma == 2 as a square; single log) ----
        cls_vec = jnp.zeros((SA, LANE), f32)
        for c in range(C):
            prob = jnp.clip(cls_ref[0, c].astype(f32), 1e-4, 1.0 - 1e-4)
            is_one = positive & (as_lb == float(c))
            alpha_factor = jnp.where(is_one, ALPHA, 1.0 - ALPHA)
            focal_base = jnp.where(is_one, 1.0 - prob, prob)
            bce = -jnp.log(1.0 - focal_base + 1e-6)    # == -log(p+1e-6) for t=1, -log(1-p+1e-6) for t=0
            cls_vec = cls_vec + jnp.where(compute_cls,
                                          alpha_factor * focal_base * focal_base * bce, 0.0)

        # ---- regression targets (BoxCoder-style deltas) + smooth-L1 over positives ----
        # TODO(synk): BoxCoder class was not provided; standard (dx,dy,log dw,log dh,dtheta)
        #             delta encoding with unit weights is used.
        ath = anc_ref[0, 4].astype(f32)
        ex_w = jnp.maximum(ax2 - ax1, 1e-3)
        ex_h = jnp.maximum(ay2 - ay1, 1e-3)
        inv_w = pl.reciprocal(ex_w, approx=True)
        inv_h = pl.reciprocal(ex_h, approx=True)
        ex_cx = ax1 + 0.5 * ex_w
        ex_cy = ay1 + 0.5 * ex_h
        gt_w = jnp.maximum(as_x2 - as_x1, 1e-3)
        gt_h = jnp.maximum(as_y2 - as_y1, 1e-3)
        gt_cx = as_x1 + 0.5 * gt_w
        gt_cy = as_y1 + 0.5 * gt_h
        targets = ((gt_cx - ex_cx) * inv_w,
                   (gt_cy - ex_cy) * inv_h,
                   jnp.log(gt_w * inv_w),
                   jnp.log(gt_h * inv_h),
                   (as_th - ath) * (jnp.pi / 180.0))
        reg_vec = jnp.zeros((SA, LANE), f32)
        for d in range(5):
            diff = jnp.abs(reg_ref[0, d].astype(f32) - targets[d])
            reg_vec = reg_vec + jnp.where(diff < BETA_SL1,
                                          (0.5 / BETA_SL1) * diff * diff,
                                          diff - 0.5 * BETA_SL1)
        reg_vec = reg_vec * pos_f

        # full-vreg accumulators; no per-step masked lane store
        acc_ref[0] = acc_ref[0] + cls_vec
        acc_ref[1] = acc_ref[1] + reg_vec
        acc_ref[2] = acc_ref[2] + pos_f

        @pl.when(t == n_tiles - 1)
        def _finalize():
            n_valid = jnp.sum((ann[:, 5:6] != -1.0).astype(f32))
            cls_sum = jnp.sum(acc_ref[0])
            reg_sum = jnp.sum(acc_ref[1])
            num_pos = jnp.sum(acc_ref[2])
            lane_sel = jax.lax.broadcasted_iota(jnp.int32, (1, 1, 4), 2)
            out_ref[...] = (jnp.where(lane_sel == 0, cls_sum, 0.0)
                            + jnp.where(lane_sel == 1, reg_sum, 0.0)
                            + jnp.where(lane_sel == 2, num_pos, 0.0)
                            + jnp.where(lane_sel == 3, n_valid, 0.0))


@jax.jit
def integrated_loss(classifications, regressions, anchors, refined_anchors, annotations):
    """Default-path IntegratedLoss forward (mining_param=(1, 0.0, -1) => das=False).

    Returns (loss_cls, loss_reg), each shape (1,), matching the torch module.
    """
    del refined_anchors  # only used when var != -1 (das branch)
    # TODO(synk): das=True branch (var != -1) needs refined-anchor overlaps and matching-weight
    #             soft labels; not implemented (default path only).
    B, A, C = classifications.shape
    N = annotations.shape[1]
    A_pad, TA = _anchor_tiling(A)
    SA = TA // LANE
    AR = A_pad // LANE
    nT = A_pad // TA
    pad = A_pad - A

    def prep(x):
        # (B, A, X) -> (B, X, AR, 128): one transpose pass, reshape is a free contiguous split.
        if pad:
            x = jnp.pad(x, ((0, 0), (0, pad), (0, 0)))
        x = jnp.transpose(x, (0, 2, 1))
        return x.reshape(B, x.shape[1], AR, LANE)

    cls_r = prep(classifications)                      # (B, C, AR, 128)
    reg_r = prep(regressions)                          # (B, 5, AR, 128)
    anc_r = prep(anchors)                              # (B, 5, AR, 128)
    ann = annotations.astype(jnp.float32)              # (B, N, 6)

    kernel = functools.partial(_integrated_loss_kernel,
                               num_anchors=A, padded_anchors=A_pad)

    # index_maps: cls/reg stay pinned to tile 0 during phase 0 (no wasted DMA), stream in phase 1.
    raw = pl.pallas_call(
        kernel,
        out_shape=jax.ShapeDtypeStruct((B, 1, 4), jnp.float32),
        grid_spec=pltpu.PrefetchScalarGridSpec(
            num_scalar_prefetch=0,
            grid=(B, 2, nT),
            in_specs=[pl.BlockSpec((1, C, SA, LANE), lambda b, p, t: (b, 0, t * p, 0)),
                      pl.BlockSpec((1, 5, SA, LANE), lambda b, p, t: (b, 0, t * p, 0)),
                      pl.BlockSpec((1, 5, SA, LANE), lambda b, p, t: (b, 0, t, 0)),
                      pl.BlockSpec((1, N, 6), lambda b, p, t: (b, 0, 0))],
            out_specs=pl.BlockSpec((1, 1, 4), lambda b, p, t: (b, 0, 0)),
            scratch_shapes=[pltpu.VMEM((N, LANE), jnp.float32),   # per-GT per-lane running max
                            pltpu.VMEM((N, LANE), jnp.int32),     # per-GT per-lane argmax anchor
                            pltpu.VMEM((3, SA, LANE), jnp.float32)]),  # cls / reg / num_pos accum
        compiler_params=pltpu.CompilerParams(
            dimension_semantics=("parallel", "arbitrary", "arbitrary")),
    )(cls_r, reg_r, anc_r, ann)

    raw = raw.reshape(B, 4)
    cls_sum = raw[:, 0]
    reg_sum = raw[:, 1]
    num_pos = raw[:, 2]
    n_valid = raw[:, 3]
    has_gt = n_valid > 0.0       # images with zero valid GT contribute 0 (reference semantics)
    cls_b = jnp.where(has_gt, cls_sum / jnp.maximum(num_pos, 1.0), 0.0)
    reg_b = jnp.where(has_gt, reg_sum / jnp.maximum(num_pos * 5.0, 1.0), 0.0)
    loss_cls = jnp.mean(cls_b, keepdims=True)
    loss_reg = jnp.mean(reg_b, keepdims=True)
    return loss_cls, loss_reg


if __name__ == "__main__":
    B, C, N = 2, 4, 8          # batch, num_classes, max GT per image
    GRID = 40                  # 40x40 anchor grid -> A = 1600 (pads to 2048 => two 1024 tiles)
    A = GRID * GRID

    key = jax.random.PRNGKey(0)
    k1, k2, k3, k4, k5 = jax.random.split(key, 5)

    # predictions
    classifications = jax.random.uniform(k1, (B, A, C), minval=0.01, maxval=0.99,
                                         dtype=jnp.float32)
    regressions = 0.1 * jax.random.normal(k2, (B, A, 5), dtype=jnp.float32)

    # anchors: 4x4 boxes centered on a GRIDxGRID grid with stride 2, theta = 0 deg
    xs = jnp.arange(GRID, dtype=jnp.float32) * 2.0 + 1.0
    gx, gy = jnp.meshgrid(xs, xs, indexing="xy")
    cx = gx.reshape(-1)
    cy = gy.reshape(-1)
    anch = jnp.stack([cx - 2.0, cy - 2.0, cx + 2.0, cy + 2.0,
                      jnp.zeros_like(cx)], axis=1)                     # (A, 5)
    anchors = jnp.broadcast_to(anch[None], (B, A, 5)).astype(jnp.float32)
    refined_anchors = anchors + 0.1                                    # unused (var = -1)

    # ground-truth annotations: (x1,y1,x2,y2,theta_deg,label), label -1 => padding
    gxy = jax.random.uniform(k3, (B, N, 2), minval=1.0, maxval=2.0 * GRID - 6.0)
    gwh = jax.random.uniform(k4, (B, N, 2), minval=2.0, maxval=5.0)
    glabels = jax.random.randint(k5, (B, N), 0, C).astype(jnp.float32)
    gtheta = jnp.zeros((B, N, 1), jnp.float32)
    annotations = jnp.concatenate(
        [gxy, gxy + gwh, gtheta, glabels[..., None]], axis=-1).astype(jnp.float32)
    # mark the last 3 GT rows of every image as padding
    pad_rows = jnp.arange(N) >= 5
    annotations = annotations.at[:, :, 5].set(
        jnp.where(pad_rows[None, :], -1.0, annotations[:, :, 5]))

    loss_cls, loss_reg = integrated_loss(
        classifications, regressions, anchors, refined_anchors, annotations)
    jax.block_until_ready((loss_cls, loss_reg))

    assert loss_cls.shape == (1,) and loss_reg.shape == (1,)
    assert bool(jnp.isfinite(loss_cls).all()) and bool(jnp.isfinite(loss_reg).all())
    print("KERNEL_OK")
</pallas_src>

<mosaic_0001>
module attributes {stable_mosaic.version = 11 : i64} {
  func.func @_integrated_loss_kernel(%arg0: i32, %arg1: i32, %arg2: i32, %arg3: memref<1x4x8x128xf32, #tpu.memory_space<vmem>>, %arg4: memref<1x5x8x128xf32, #tpu.memory_space<vmem>>, %arg5: memref<1x5x8x128xf32, #tpu.memory_space<vmem>>, %arg6: memref<1x8x6xf32, #tpu.memory_space<vmem>>, %arg7: memref<1x1x4xf32, #tpu.memory_space<vmem>>, %arg8: memref<8x128xf32, #tpu.memory_space<vmem>>, %arg9: memref<8x128xi32, #tpu.memory_space<vmem>>, %arg10: memref<3x8x128xf32, #tpu.memory_space<vmem>>) attributes {dimension_semantics = [#tpu.dimension_semantics<parallel>, #tpu.dimension_semantics<arbitrary>, #tpu.dimension_semantics<arbitrary>], iteration_bounds = array<i64: 2, 2, 2>, scalar_prefetch = 0 : i64, scratch_operands = 3 : i64, tpu.core_type = #tpu.core_type<tc>, window_params = [{transform_indices = @transform_0, window_bounds = array<i64: 1, 4, 8, 128>}, {transform_indices = @transform_1, window_bounds = array<i64: 1, 5, 8, 128>}, {transform_indices = @transform_2, window_bounds = array<i64: 1, 5, 8, 128>}, {transform_indices = @transform_3, window_bounds = array<i64: 1, 8, 6>}, {transform_indices = @transform_4, window_bounds = array<i64: 1, 1, 4>}]} {
    %c0 = arith.constant 0 : index
    %c0_0 = arith.constant 0 : index
    %c0_1 = arith.constant 0 : index
    %c0_2 = arith.constant 0 : index
    %0 = vector.load %arg5[%c0, %c0_0, %c0_1, %c0_2] : memref<1x5x8x128xf32, #tpu.memory_space<vmem>>, vector<1x1x8x128xf32>
    %1 = vector.shape_cast %0 : vector<1x1x8x128xf32> to vector<8x128xf32>
    %c0_3 = arith.constant 0 : index
    %c1 = arith.constant 1 : index
    %c0_4 = arith.constant 0 : index
    %c0_5 = arith.constant 0 : index
    %2 = vector.load %arg5[%c0_3, %c1, %c0_4, %c0_5] : memref<1x5x8x128xf32, #tpu.memory_space<vmem>>, vector<1x1x8x128xf32>
    %3 = vector.shape_cast %2 : vector<1x1x8x128xf32> to vector<8x128xf32>
    %c0_6 = arith.constant 0 : index
    %c2 = arith.constant 2 : index
    %c0_7 = arith.constant 0 : index
    %c0_8 = arith.constant 0 : index
    %4 = vector.load %arg5[%c0_6, %c2, %c0_7, %c0_8] : memref<1x5x8x128xf32, #tpu.memory_space<vmem>>, vector<1x1x8x128xf32>
    %5 = vector.shape_cast %4 : vector<1x1x8x128xf32> to vector<8x128xf32>
    %c0_9 = arith.constant 0 : index
    %c3 = arith.constant 3 : index
    %c0_10 = arith.constant 0 : index
    %c0_11 = arith.constant 0 : index
    %6 = vector.load %arg5[%c0_9, %c3, %c0_10, %c0_11] : memref<1x5x8x128xf32, #tpu.memory_space<vmem>>, vector<1x1x8x128xf32>
    %7 = vector.shape_cast %6 : vector<1x1x8x128xf32> to vector<8x128xf32>
    %8 = arith.subf %5, %1 : vector<8x128xf32>
    %9 = arith.subf %7, %3 : vector<8x128xf32>
    %10 = arith.mulf %8, %9 : vector<8x128xf32>
    %c0_12 = arith.constant 0 : index
    %c0_13 = arith.constant 0 : index
    %c0_14 = arith.constant 0 : index
    %11 = vector.load %arg6[%c0_12, %c0_13, %c0_14] : memref<1x8x6xf32, #tpu.memory_space<vmem>>, vector<1x8x6xf32>
    %12 = vector.shape_cast %11 : vector<1x8x6xf32> to vector<8x6xf32>
    %13 = tpu.iota {dimensions = array<i32: 0>} : vector<8x128xi32>
    %14 = tpu.iota {dimensions = array<i32: 1>} : vector<8x128xi32>
    %c8_i32 = arith.constant 8 : i32
    %15 = arith.muli %arg2, %c8_i32 : i32
    %16 = vector.broadcast %15 : i32 to vector<8x128xi32>
    %17 = arith.addi %16, %13 : vector<8x128xi32>
    %c128_i32 = arith.constant 128 : i32
    %18 = vector.broadcast %c128_i32 : i32 to vector<8x128xi32>
    %19 = arith.muli %17, %18 : vector<8x128xi32>
    %20 = arith.addi %19, %14 : vector<8x128xi32>
    %c1600_i32 = arith.constant 1600 : i32
    %21 = vector.broadcast %c1600_i32 : i32 to vector<8x128xi32>
    %22 = arith.cmpi slt, %20, %21 : vector<8x128xi32>
    %c0_i32 = arith.constant 0 : i32
    %23 = arith.cmpi eq, %arg1, %c0_i32 : i32
    %c0_i32_15 = arith.constant 0 : i32
    %24 = arith.cmpi eq, %arg2, %c0_i32_15 : i32
    %25 = arith.andi %23, %24 : i1
    %26 = arith.extui %25 : i1 to i32
    %c0_i32_16 = arith.constant 0 : i32
    %27 = arith.cmpi ne, %26, %c0_i32_16 : i32
    scf.if %27 {
      %cst = arith.constant -1.000000e+09 : f32
      %34 = vector.broadcast %cst : f32 to vector<8x128xf32>
      %c0_20 = arith.constant 0 : index
      %c0_21 = arith.constant 0 : index
      %35 = vector.load %arg8[%c0_20, %c0_21] : memref<8x128xf32, #tpu.memory_space<vmem>>, vector<8x128xf32>
      tpu.vector_store %arg8[%c0_20, %c0_21], %34 {strides = array<i32>} : memref<8x128xf32, #tpu.memory_space<vmem>>, vector<8x128xf32>,
      %c0_i32_22 = arith.constant 0 : i32
      %36 = vector.broadcast %c0_i32_22 : i32 to vector<8x128xi32>
      %c0_23 = arith.constant 0 : index
      %c0_24 = arith.constant 0 : index
      %37 = vector.load %arg9[%c0_23, %c0_24] : memref<8x128xi32, #tpu.memory_space<vmem>>, vector<8x128xi32>
      tpu.vector_store %arg9[%c0_23, %c0_24], %36 {strides = array<i32>} : memref<8x128xi32, #tpu.memory_space<vmem>>, vector<8x128xi32>,
      %cst_25 = arith.constant 0.000000e+00 : f32
      %38 = vector.broadcast %cst_25 : f32 to vector<3x8x128xf32>
      %c0_26 = arith.constant 0 : index
      %c0_27 = arith.constant 0 : index
      %c0_28 = arith.constant 0 : index
      %39 = vector.load %arg10[%c0_26, %c0_27, %c0_28] : memref<3x8x128xf32, #tpu.memory_space<vmem>>, vector<3x8x128xf32>
      tpu.vector_store %arg10[%c0_26, %c0_27, %c0_28], %38 {strides = array<i32>} : memref<3x8x128xf32, #tpu.memory_space<vmem>>, vector<3x8x128xf32>,
    } else {
    }
    %c0_i32_17 = arith.constant 0 : i32
    %28 = arith.cmpi eq, %arg1, %c0_i32_17 : i32
    %29 = arith.extui %28 : i1 to i32
    %c0_i32_18 = arith.constant 0 : i32
    %30 = arith.cmpi ne, %29, %c0_i32_18 : i32
    scf.if %30 {
      %34 = tpu.iota {dimensions = array<i32: 1>} : vector<1x128xi32>
      %35 = vector.extract_strided_slice %12 {offsets = [0, 0], sizes = [1, 1], strides = [1, 1]} : vector<8x6xf32> to vector<1x1xf32>
      %36 = vector.extract_strided_slice %12 {offsets = [0, 1], sizes = [1, 1], strides = [1, 1]} : vector<8x6xf32> to vector<1x1xf32>
      %37 = vector.extract_strided_slice %12 {offsets = [0, 2], sizes = [1, 1], strides = [1, 1]} : vector<8x6xf32> to vector<1x1xf32>
      %38 = vector.extract_strided_slice %12 {offsets = [0, 3], sizes = [1, 1], strides = [1, 1]} : vector<8x6xf32> to vector<1x1xf32>
      %39 = vector.broadcast %35 : vector<1x1xf32> to vector<8x128xf32>
      %40 = arith.maximumf %1, %39 : vector<8x128xf32>
      %41 = vector.broadcast %36 : vector<1x1xf32> to vector<8x128xf32>
      %42 = arith.maximumf %3, %41 : vector<8x128xf32>
      %43 = vector.broadcast %37 : vector<1x1xf32> to vector<8x128xf32>
      %44 = arith.minimumf %5, %43 : vector<8x128xf32>
      %45 = vector.broadcast %38 : vector<1x1xf32> to vector<8x128xf32>
      %46 = arith.minimumf %7, %45 : vector<8x128xf32>
      %47 = arith.subf %44, %40 : vector<8x128xf32>
      %cst = arith.constant 0.000000e+00 : f32
      %48 = vector.broadcast %cst : f32 to vector<8x128xf32>
      %49 = arith.maximumf %47, %48 : vector<8x128xf32>
      %50 = arith.subf %46, %42 : vector<8x128xf32>
      %cst_20 = arith.constant 0.000000e+00 : f32
      %51 = vector.broadcast %cst_20 : f32 to vector<8x128xf32>
      %52 = arith.maximumf %50, %51 : vector<8x128xf32>
      %53 = arith.mulf %49, %52 : vector<8x128xf32>
      %54 = arith.subf %37, %35 : vector<1x1xf32>
      %55 = arith.subf %38, %36 : vector<1x1xf32>
      %56 = arith.mulf %54, %55 : vector<1x1xf32>
      %57 = vector.broadcast %56 : vector<1x1xf32> to vector<8x128xf32>
      %58 = arith.addf %10, %57 : vector<8x128xf32>
      %59 = arith.subf %58, %53 : vector<8x128xf32>
      %cst_21 = arith.constant 9.99999993E-9 : f32
      %60 = vector.broadcast %cst_21 : f32 to vector<8x128xf32>
      %61 = arith.addf %59, %60 : vector<8x128xf32>
      %62 = tpu.reciprocal %61 {approx = true} : vector<8x128xf32> -> vector<8x128xf32>
      %63 = arith.mulf %53, %62 : vector<8x128xf32>
      %cst_22 = arith.constant -1.000000e+09 : f32
      %64 = vector.broadcast %cst_22 : f32 to vector<8x128xf32>
      %65 = arith.select %22, %63, %64 : vector<8x128xi1>, vector<8x128xf32>
      %cst_23 = arith.constant dense<0xFF800000> : vector<128xf32>
      %66 = vector.multi_reduction <maximumf>, %65, %cst_23 [0] : vector<8x128xf32> to vector<128xf32>
      %67 = vector.shape_cast %66 : vector<128xf32> to vector<1x128xf32>
      %68 = vector.broadcast %67 : vector<1x128xf32> to vector<8x128xf32>
      %69 = arith.cmpf oeq, %65, %68 : vector<8x128xf32>
      %c8_i32_24 = arith.constant 8 : i32
      %70 = vector.broadcast %c8_i32_24 : i32 to vector<8x128xi32>
      %71 = arith.select %69, %13, %70 : vector<8x128xi1>, vector<8x128xi32>
      %cst_25 = arith.constant dense<2147483647> : vector<128xi32>
      %72 = vector.multi_reduction <minsi>, %71, %cst_25 [0] : vector<8x128xi32> to vector<128xi32>
      %73 = vector.shape_cast %72 : vector<128xi32> to vector<1x128xi32>
      %c8_i32_26 = arith.constant 8 : i32
      %74 = arith.muli %arg2, %c8_i32_26 : i32
      %75 = vector.broadcast %74 : i32 to vector<1x128xi32>
      %76 = arith.addi %75, %73 : vector<1x128xi32>
      %c128_i32_27 = arith.constant 128 : i32
      %77 = vector.broadcast %c128_i32_27 : i32 to vector<1x128xi32>
      %78 = arith.muli %76, %77 : vector<1x128xi32>
      %79 = arith.addi %78, %34 : vector<1x128xi32>
      %c0_28 = arith.constant 0 : index
      %c0_29 = arith.constant 0 : index
      %80 = vector.load %arg8[%c0_28, %c0_29] : memref<8x128xf32, #tpu.memory_space<vmem>>, vector<1x128xf32>
      %c0_30 = arith.constant 0 : index
      %c0_31 = arith.constant 0 : index
      %81 = vector.load %arg9[%c0_30, %c0_31] : memref<8x128xi32, #tpu.memory_space<vmem>>, vector<1x128xi32>
      %82 = arith.cmpf ogt, %67, %80 : vector<1x128xf32>
      %83 = arith.select %82, %67, %80 : vector<1x128xi1>, vector<1x128xf32>
      %c0_32 = arith.constant 0 : index
      %c0_33 = arith.constant 0 : index
      %84 = vector.load %arg8[%c0_32, %c0_33] : memref<8x128xf32, #tpu.memory_space<vmem>>, vector<1x128xf32>
      tpu.vector_store %arg8[%c0_32, %c0_33], %83 {strides = array<i32>} : memref<8x128xf32, #tpu.memory_space<vmem>>, vector<1x128xf32>,
      %85 = arith.select %82, %79, %81 : vector<1x128xi1>, vector<1x128xi32>
      %c0_34 = arith.constant 0 : index
      %c0_35 = arith.constant 0 : index
      %86 = vector.load %arg9[%c0_34, %c0_35] : memref<8x128xi32, #tpu.memory_space<vmem>>, vector<1x128xi32>
      tpu.vector_store %arg9[%c0_34, %c0_35], %85 {strides = array<i32>} : memref<8x128xi32, #tpu.memory_space<vmem>>, vector<1x128xi32>,
      %87 = vector.extract_strided_slice %12 {offsets = [1, 0], sizes = [1, 1], strides = [1, 1]} : vector<8x6xf32> to vector<1x1xf32>
      %88 = vector.extract_strided_slice %12 {offsets = [1, 1], sizes = [1, 1], strides = [1, 1]} : vector<8x6xf32> to vector<1x1xf32>
      %89 = vector.extract_strided_slice %12 {offsets = [1, 2], sizes = [1, 1], strides = [1, 1]} : vector<8x6xf32> to vector<1x1xf32>
      %90 = vector.extract_strided_slice %12 {offsets = [1, 3], sizes = [1, 1], strides = [1, 1]} : vector<8x6xf32> to vector<1x1xf32>
      %91 = vector.broadcast %87 : vector<1x1xf32> to vector<8x128xf32>
      %92 = arith.maximumf %1, %91 : vector<8x128xf32>
      %93 = vector.broadcast %88 : vector<1x1xf32> to vector<8x128xf32>
      %94 = arith.maximumf %3, %93 : vector<8x128xf32>
      %95 = vector.broadcast %89 : vector<1x1xf32> to vector<8x128xf32>
      %96 = arith.minimumf %5, %95 : vector<8x128xf32>
      %97 = vector.broadcast %90 : vector<1x1xf32> to vector<8x128xf32>
      %98 = arith.minimumf %7, %97 : vector<8x128xf32>
      %99 = arith.subf %96, %92 : vector<8x128xf32>
      %cst_36 = arith.constant 0.000000e+00 : f32
      %100 = vector.broadcast %cst_36 : f32 to vector<8x128xf32>
      %101 = arith.maximumf %99, %100 : vector<8x128xf32>
      %102 = arith.subf %98, %94 : vector<8x128xf32>
      %cst_37 = arith.constant 0.000000e+00 : f32
      %103 = vector.broadcast %cst_37 : f32 to vector<8x128xf32>
      %104 = arith.maximumf %102, %103 : vector<8x128xf32>
      %105 = arith.mulf %101, %104 : vector<8x128xf32>
      %106 = arith.subf %89, %87 : vector<1x1xf32>
      %107 = arith.subf %90, %88 : vector<1x1xf32>
      %108 = arith.mulf %106, %107 : vector<1x1xf32>
      %109 = vector.broadcast %108 : vector<1x1xf32> to vector<8x128xf32>
      %110 = arith.addf %10, %109 : vector<8x128xf32>
      %111 = arith.subf %110, %105 : vector<8x128xf32>
      %cst_38 = arith.constant 9.99999993E-9 : f32
      %112 = vector.broadcast %cst_38 : f32 to vector<8x128xf32>
      %113 = arith.addf %111, %112 : vector<8x128xf32>
      %114 = tpu.reciprocal %113 {approx = true} : vector<8x128xf32> -> vector<8x128xf32>
      %115 = arith.mulf %105, %114 : vector<8x128xf32>
      %cst_39 = arith.constant -1.000000e+09 : f32
      %116 = vector.broadcast %cst_39 : f32 to vector<8x128xf32>
      %117 = arith.select %22, %115, %116 : vector<8x128xi1>, vector<8x128xf32>
      %cst_40 = arith.constant dense<0xFF800000> : vector<128xf32>
      %118 = vector.multi_reduction <maximumf>, %117, %cst_40 [0] : vector<8x128xf32> to vector<128xf32>
      %119 = vector.shape_cast %118 : vector<128xf32> to vector<1x128xf32>
      %120 = vector.broadcast %119 : vector<1x128xf32> to vector<8x128xf32>
      %121 = arith.cmpf oeq, %117, %120 : vector<8x128xf32>
      %c8_i32_41 = arith.constant 8 : i32
      %122 = vector.broadcast %c8_i32_41 : i32 to vector<8x128xi32>
      %123 = arith.select %121, %13, %122 : vector<8x128xi1>, vector<8x128xi32>
      %cst_42 = arith.constant dense<2147483647> : vector<128xi32>
      %124 = vector.multi_reduction <minsi>, %123, %cst_42 [0] : vector<8x128xi32> to vector<128xi32>
      %125 = vector.shape_cast %124 : vector<128xi32> to vector<1x128xi32>
      %c8_i32_43 = arith.constant 8 : i32
      %126 = arith.muli %arg2, %c8_i32_43 : i32
      %127 = vector.broadcast %126 : i32 to vector<1x128xi32>
      %128 = arith.addi %127, %125 : vector<1x128xi32>
      %c128_i32_44 = arith.constant 128 : i32
      %129 = vector.broadcast %c128_i32_44 : i32 to vector<1x128xi32>
      %130 = arith.muli %128, %129 : vector<1x128xi32>
      %131 = arith.addi %130, %34 : vector<1x128xi32>
      %c1_45 = arith.constant 1 : index
      %c0_46 = arith.constant 0 : index
      %132 = vector.load %arg8[%c1_45, %c0_46] : memref<8x128xf32, #tpu.memory_space<vmem>>, vector<1x128xf32>
      %c1_47 = arith.constant 1 : index
      %c0_48 = arith.constant 0 : index
      %133 = vector.load %arg9[%c1_47, %c0_48] : memref<8x128xi32, #tpu.memory_space<vmem>>, vector<1x128xi32>
      %134 = arith.cmpf ogt, %119, %132 : vector<1x128xf32>
      %135 = arith.select %134, %119, %132 : vector<1x128xi1>, vector<1x128xf32>
      %c1_49 = arith.constant 1 : index
      %c0_50 = arith.constant 0 : index
      %136 = vector.load %arg8[%c1_49, %c0_50] : memref<8x128xf32, #tpu.memory_space<vmem>>, vector<1x128xf32>
      tpu.vector_store %arg8[%c1_49, %c0_50], %135 {strides = array<i32>} : memref<8x128xf32, #tpu.memory_space<vmem>>, vector<1x128xf32>,
      %137 = arith.select %134, %131, %133 : vector<1x128xi1>, vector<1x128xi32>
      %c1_51 = arith.constant 1 : index
      %c0_52 = arith.constant 0 : index
      %138 = vector.load %arg9[%c1_51, %c0_52] : memref<8x128xi32, #tpu.memory_space<vmem>>, vector<1x128xi32>
      tpu.vector_store %arg9[%c1_51, %c0_52], %137 {strides = array<i32>} : memref<8x128xi32, #tpu.memory_space<vmem>>, vector<1x128xi32>,
      %139 = vector.extract_strided_slice %12 {offsets = [2, 0], sizes = [1, 1], strides = [1, 1]} : vector<8x6xf32> to vector<1x1xf32>
      %140 = vector.extract_strided_slice %12 {offsets = [2, 1], sizes = [1, 1], strides = [1, 1]} : vector<8x6xf32> to vector<1x1xf32>
      %141 = vector.extract_strided_slice %12 {offsets = [2, 2], sizes = [1, 1], strides = [1, 1]} : vector<8x6xf32> to vector<1x1xf32>
      %142 = vector.extract_strided_slice %12 {offsets = [2, 3], sizes = [1, 1], strides = [1, 1]} : vector<8x6xf32> to vector<1x1xf32>
      %143 = vector.broadcast %139 : vector<1x1xf32> to vector<8x128xf32>
      %144 = arith.maximumf %1, %143 : vector<8x128xf32>
      %145 = vector.broadcast %140 : vector<1x1xf32> to vector<8x128xf32>
      %146 = arith.maximumf %3, %145 : vector<8x128xf32>
      %147 = vector.broadcast %141 : vector<1x1xf32> to vector<8x128xf32>
      %148 = arith.minimumf %5, %147 : vector<8x128xf32>
      %149 = vector.broadcast %142 : vector<1x1xf32> to vector<8x128xf32>
      %150 = arith.minimumf %7, %149 : vector<8x128xf32>
      %151 = arith.subf %148, %144 : vector<8x128xf32>
      %cst_53 = arith.constant 0.000000e+00 : f32
      %152 = vector.broadcast %cst_53 : f32 to vector<8x128xf32>
      %153 = arith.maximumf %151, %152 : vector<8x128xf32>
      %154 = arith.subf %150, %146 : vector<8x128xf32>
      %cst_54 = arith.constant 0.000000e+00 : f32
      %155 = vector.broadcast %cst_54 : f32 to vector<8x128xf32>
      %156 = arith.maximumf %154, %155 : vector<8x128xf32>
      %157 = arith.mulf %153, %156 : vector<8x128xf32>
      %158 = arith.subf %141, %139 : vector<1x1xf32>
      %159 = arith.subf %142, %140 : vector<1x1xf32>
      %160 = arith.mulf %158, %159 : vector<1x1xf32>
      %161 = vector.broadcast %160 : vector<1x1xf32> to vector<8x128xf32>
      %162 = arith.addf %10, %161 : vector<8x128xf32>
      %163 = arith.subf %162, %157 : vector<8x128xf32>
      %cst_55 = arith.constant 9.99999993E-9 : f32
      %164 = vector.broadcast %cst_55 : f32 to vector<8x128xf32>
      %165 = arith.addf %163, %164 : vector<8x128xf32>
      %166 = tpu.reciprocal %165 {approx = true} : vector<8x128xf32> -> vector<8x128xf32>
      %167 = arith.mulf %157, %166 : vector<8x128xf32>
      %cst_56 = arith.constant -1.000000e+09 : f32
      %168 = vector.broadcast %cst_56 : f32 to vector<8x128xf32>
      %169 = arith.select %22, %167, %168 : vector<8x128xi1>, vector<8x128xf32>
      %cst_57 = arith.constant dense<0xFF800000> : vector<128xf32>
      %170 = vector.multi_reduction <maximumf>, %169, %cst_57 [0] : vector<8x128xf32> to vector<128xf32>
      %171 = vector.shape_cast %170 : vector<128xf32> to vector<1x128xf32>
      %172 = vector.broadcast %171 : vector<1x128xf32> to vector<8x128xf32>
      %173 = arith.cmpf oeq, %169, %172 : vector<8x128xf32>
      %c8_i32_58 = arith.constant 8 : i32
      %174 = vector.broadcast %c8_i32_58 : i32 to vector<8x128xi32>
      %175 = arith.select %173, %13, %174 : vector<8x128xi1>, vector<8x128xi32>
      %cst_59 = arith.constant dense<2147483647> : vector<128xi32>
      %176 = vector.multi_reduction <minsi>, %175, %cst_59 [0] : vector<8x128xi32> to vector<128xi32>
      %177 = vector.shape_cast %176 : vector<128xi32> to vector<1x128xi32>
      %c8_i32_60 = arith.constant 8 : i32
      %178 = arith.muli %arg2, %c8_i32_60 : i32
      %179 = vector.broadcast %178 : i32 to vector<1x128xi32>
      %180 = arith.addi %179, %177 : vector<1x128xi32>
      %c128_i32_61 = arith.constant 128 : i32
      %181 = vector.broadcast %c128_i32_61 : i32 to vector<1x128xi32>
      %182 = arith.muli %180, %181 : vector<1x128xi32>
      %183 = arith.addi %182, %34 : vector<1x128xi32>
      %c2_62 = arith.constant 2 : index
      %c0_63 = arith.constant 0 : index
      %184 = vector.load %arg8[%c2_62, %c0_63] : memref<8x128xf32, #tpu.memory_space<vmem>>, vector<1x128xf32>
      %c2_64 = arith.constant 2 : index
      %c0_65 = arith.constant 0 : index
      %185 = vector.load %arg9[%c2_64, %c0_65] : memref<8x128xi32, #tpu.memory_space<vmem>>, vector<1x128xi32>
      %186 = arith.cmpf ogt, %171, %184 : vector<1x128xf32>
      %187 = arith.select %186, %171, %184 : vector<1x128xi1>, vector<1x128xf32>
      %c2_66 = arith.constant 2 : index
      %c0_67 = arith.constant 0 : index
      %188 = vector.load %arg8[%c2_66, %c0_67] : memref<8x128xf32, #tpu.memory_space<vmem>>, vector<1x128xf32>
      tpu.vector_store %arg8[%c2_66, %c0_67], %187 {strides = array<i32>} : memref<8x128xf32, #tpu.memory_space<vmem>>, vector<1x128xf32>,
      %189 = arith.select %186, %183, %185 : vector<1x128xi1>, vector<1x128xi32>
      %c2_68 = arith.constant 2 : index
      %c0_69 = arith.constant 0 : index
      %190 = vector.load %arg9[%c2_68, %c0_69] : memref<8x128xi32, #tpu.memory_space<vmem>>, vector<1x128xi32>
      tpu.vector_store %arg9[%c2_68, %c0_69], %189 {strides = array<i32>} : memref<8x128xi32, #tpu.memory_space<vmem>>, vector<1x128xi32>,
      %191 = vector.extract_strided_slice %12 {offsets = [3, 0], sizes = [1, 1], strides = [1, 1]} : vector<8x6xf32> to vector<1x1xf32>
      %192 = vector.extract_strided_slice %12 {offsets = [3, 1], sizes = [1, 1], strides = [1, 1]} : vector<8x6xf32> to vector<1x1xf32>
      %193 = vector.extract_strided_slice %12 {offsets = [3, 2], sizes = [1, 1], strides = [1, 1]} : vector<8x6xf32> to vector<1x1xf32>
      %194 = vector.extract_strided_slice %12 {offsets = [3, 3], sizes = [1, 1], strides = [1, 1]} : vector<8x6xf32> to vector<1x1xf32>
      %195 = vector.broadcast %191 : vector<1x1xf32> to vector<8x128xf32>
      %196 = arith.maximumf %1, %195 : vector<8x128xf32>
      %197 = vector.broadcast %192 : vector<1x1xf32> to vector<8x128xf32>
      %198 = arith.maximumf %3, %197 : vector<8x128xf32>
      %199 = vector.broadcast %193 : vector<1x1xf32> to vector<8x128xf32>
      %200 = arith.minimumf %5, %199 : vector<8x128xf32>
      %201 = vector.broadcast %194 : vector<1x1xf32> to vector<8x128xf32>
      %202 = arith.minimumf %7, %201 : vector<8x128xf32>
      %203 = arith.subf %200, %196 : vector<8x128xf32>
      %cst_70 = arith.constant 0.000000e+00 : f32
      %204 = vector.broadcast %cst_70 : f32 to vector<8x128xf32>
      %205 = arith.maximumf %203, %204 : vector<8x128xf32>
      %206 = arith.subf %202, %198 : vector<8x128xf32>
      %cst_71 = arith.constant 0.000000e+00 : f32
      %207 = vector.broadcast %cst_71 : f32 to vector<8x128xf32>
      %208 = arith.maximumf %206, %207 : vector<8x128xf32>
      %209 = arith.mulf %205, %208 : vector<8x128xf32>
      %210 = arith.subf %193, %191 : vector<1x1xf32>
      %211 = arith.subf %194, %192 : vector<1x1xf32>
      %212 = arith.mulf %210, %211 : vector<1x1xf32>
      %213 = vector.broadcast %212 : vector<1x1xf32> to vector<8x128xf32>
      %214 = arith.addf %10, %213 : vector<8x128xf32>
      %215 = arith.subf %214, %209 : vector<8x128xf32>
      %cst_72 = arith.constant 9.99999993E-9 : f32
      %216 = vector.broadcast %cst_72 : f32 to vector<8x128xf32>
      %217 = arith.addf %215, %216 : vector<8x128xf32>
      %218 = tpu.reciprocal %217 {approx = true} : vector<8x128xf32> -> vector<8x128xf32>
      %219 = arith.mulf %209, %218 : vector<8x128xf32>
      %cst_73 = arith.constant -1.000000e+09 : f32
      %220 = vector.broadcast %cst_73 : f32 to vector<8x128xf32>
      %221 = arith.select %22, %219, %220 : vector<8x128xi1>, vector<8x128xf32>
      %cst_74 = arith.constant dense<0xFF800000> : vector<128xf32>
      %222 = vector.multi_reduction <maximumf>, %221, %cst_74 [0] : vector<8x128xf32> to vector<128xf32>
      %223 = vector.shape_cast %222 : vector<128xf32> to vector<1x128xf32>
      %224 = vector.broadcast %223 : vector<1x128xf32> to vector<8x128xf32>
      %225 = arith.cmpf oeq, %221, %224 : vector<8x128xf32>
      %c8_i32_75 = arith.constant 8 : i32
      %226 = vector.broadcast %c8_i32_75 : i32 to vector<8x128xi32>
      %227 = arith.select %225, %13, %226 : vector<8x128xi1>, vector<8x128xi32>
      %cst_76 = arith.constant dense<2147483647> : vector<128xi32>
      %228 = vector.multi_reduction <minsi>, %227, %cst_76 [0] : vector<8x128xi32> to vector<128xi32>
      %229 = vector.shape_cast %228 : vector<128xi32> to vector<1x128xi32>
      %c8_i32_77 = arith.constant 8 : i32
      %230 = arith.muli %arg2, %c8_i32_77 : i32
      %231 = vector.broadcast %230 : i32 to vector<1x128xi32>
      %232 = arith.addi %231, %229 : vector<1x128xi32>
      %c128_i32_78 = arith.constant 128 : i32
      %233 = vector.broadcast %c128_i32_78 : i32 to vector<1x128xi32>
      %234 = arith.muli %232, %233 : vector<1x128xi32>
      %235 = arith.addi %234, %34 : vector<1x128xi32>
      %c3_79 = arith.constant 3 : index
      %c0_80 = arith.constant 0 : index
      %236 = vector.load %arg8[%c3_79, %c0_80] : memref<8x128xf32, #tpu.memory_space<vmem>>, vector<1x128xf32>
      %c3_81 = arith.constant 3 : index
      %c0_82 = arith.constant 0 : index
      %237 = vector.load %arg9[%c3_81, %c0_82] : memref<8x128xi32, #tpu.memory_space<vmem>>, vector<1x128xi32>
      %238 = arith.cmpf ogt, %223, %236 : vector<1x128xf32>
      %239 = arith.select %238, %223, %236 : vector<1x128xi1>, vector<1x128xf32>
      %c3_83 = arith.constant 3 : index
      %c0_84 = arith.constant 0 : index
      %240 = vector.load %arg8[%c3_83, %c0_84] : memref<8x128xf32, #tpu.memory_space<vmem>>, vector<1x128xf32>
      tpu.vector_store %arg8[%c3_83, %c0_84], %239 {strides = array<i32>} : memref<8x128xf32, #tpu.memory_space<vmem>>, vector<1x128xf32>,
      %241 = arith.select %238, %235, %237 : vector<1x128xi1>, vector<1x128xi32>
      %c3_85 = arith.constant 3 : index
      %c0_86 = arith.constant 0 : index
      %242 = vector.load %arg9[%c3_85, %c0_86] : memref<8x128xi32, #tpu.memory_space<vmem>>, vector<1x128xi32>
      tpu.vector_store %arg9[%c3_85, %c0_86], %241 {strides = array<i32>} : memref<8x128xi32, #tpu.memory_space<vmem>>, vector<1x128xi32>,
      %243 = vector.extract_strided_slice %12 {offsets = [4, 0], sizes = [1, 1], strides = [1, 1]} : vector<8x6xf32> to vector<1x1xf32>
      %244 = vector.extract_strided_slice %12 {offsets = [4, 1], sizes = [1, 1], strides = [1, 1]} : vector<8x6xf32> to vector<1x1xf32>
      %245 = vector.extract_strided_slice %12 {offsets = [4, 2], sizes = [1, 1], strides = [1, 1]} : vector<8x6xf32> to vector<1x1xf32>
      %246 = vector.extract_strided_slice %12 {offsets = [4, 3], sizes = [1, 1], strides = [1, 1]} : vector<8x6xf32> to vector<1x1xf32>
      %247 = vector.broadcast %243 : vector<1x1xf32> to vector<8x128xf32>
      %248 = arith.maximumf %1, %247 : vector<8x128xf32>
      %249 = vector.broadcast %244 : vector<1x1xf32> to vector<8x128xf32>
      %250 = arith.maximumf %3, %249 : vector<8x128xf32>
      %251 = vector.broadcast %245 : vector<1x1xf32> to vector<8x128xf32>
      %252 = arith.minimumf %5, %251 : vector<8x128xf32>
      %253 = vector.broadcast %246 : vector<1x1xf32> to vector<8x128xf32>
      %254 = arith.minimumf %7, %253 : vector<8x128xf32>
      %255 = arith.subf %252, %248 : vector<8x128xf32>
      %cst_87 = arith.constant 0.000000e+00 : f32
      %256 = vector.broadcast %cst_87 : f32 to vector<8x128xf32>
      %257 = arith.maximumf %255, %256 : vector<8x128xf32>
      %258 = arith.subf %254, %250 : vector<8x128xf32>
      %cst_88 = arith.constant 0.000000e+00 : f32
      %259 = vector.broadcast %cst_88 : f32 to vector<8x128xf32>
      %260 = arith.maximumf %258, %259 : vector<8x128xf32>
      %261 = arith.mulf %257, %260 : vector<8x128xf32>
      %262 = arith.subf %245, %243 : vector<1x1xf32>
      %263 = arith.subf %246, %244 : vector<1x1xf32>
      %264 = arith.mulf %262, %263 : vector<1x1xf32>
      %265 = vector.broadcast %264 : vector<1x1xf32> to vector<8x128xf32>
      %266 = arith.addf %10, %265 : vector<8x128xf32>
      %267 = arith.subf %266, %261 : vector<8x128xf32>
      %cst_89 = arith.constant 9.99999993E-9 : f32
      %268 = vector.broadcast %cst_89 : f32 to vector<8x128xf32>
      %269 = arith.addf %267, %268 : vector<8x128xf32>
      %270 = tpu.reciprocal %269 {approx = true} : vector<8x128xf32> -> vector<8x128xf32>
      %271 = arith.mulf %261, %270 : vector<8x128xf32>
      %cst_90 = arith.constant -1.000000e+09 : f32
      %272 = vector.broadcast %cst_90 : f32 to vector<8x128xf32>
      %273 = arith.select %22, %271, %272 : vector<8x128xi1>, vector<8x128xf32>
      %cst_91 = arith.constant dense<0xFF800000> : vector<128xf32>
      %274 = vector.multi_reduction <maximumf>, %273, %cst_91 [0] : vector<8x128xf32> to vector<128xf32>
      %275 = vector.shape_cast %274 : vector<128xf32> to vector<1x128xf32>
      %276 = vector.broadcast %275 : vector<1x128xf32> to vector<8x128xf32>
      %277 = arith.cmpf oeq, %273, %276 : vector<8x128xf32>
      %c8_i32_92 = arith.constant 8 : i32
      %278 = vector.broadcast %c8_i32_92 : i32 to vector<8x128xi32>
      %279 = arith.select %277, %13, %278 : vector<8x128xi1>, vector<8x128xi32>
      %cst_93 = arith.constant dense<2147483647> : vector<128xi32>
      %280 = vector.multi_reduction <minsi>, %279, %cst_93 [0] : vector<8x128xi32> to vector<128xi32>
      %281 = vector.shape_cast %280 : vector<128xi32> to vector<1x128xi32>
      %c8_i32_94 = arith.constant 8 : i32
      %282 = arith.muli %arg2, %c8_i32_94 : i32
      %283 = vector.broadcast %282 : i32 to vector<1x128xi32>
      %284 = arith.addi %283, %281 : vector<1x128xi32>
      %c128_i32_95 = arith.constant 128 : i32
      %285 = vector.broadcast %c128_i32_95 : i32 to vector<1x128xi32>
      %286 = arith.muli %284, %285 : vector<1x128xi32>
      %287 = arith.addi %286, %34 : vector<1x128xi32>
      %c4 = arith.constant 4 : index
      %c0_96 = arith.constant 0 : index
      %288 = vector.load %arg8[%c4, %c0_96] : memref<8x128xf32, #tpu.memory_space<vmem>>, vector<1x128xf32>
      %c4_97 = arith.constant 4 : index
      %c0_98 = arith.constant 0 : index
      %289 = vector.load %arg9[%c4_97, %c0_98] : memref<8x128xi32, #tpu.memory_space<vmem>>, vector<1x128xi32>
      %290 = arith.cmpf ogt, %275, %288 : vector<1x128xf32>
      %291 = arith.select %290, %275, %288 : vector<1x128xi1>, vector<1x128xf32>
      %c4_99 = arith.constant 4 : index
      %c0_100 = arith.constant 0 : index
      %292 = vector.load %arg8[%c4_99, %c0_100] : memref<8x128xf32, #tpu.memory_space<vmem>>, vector<1x128xf32>
      tpu.vector_store %arg8[%c4_99, %c0_100], %291 {strides = array<i32>} : memref<8x128xf32, #tpu.memory_space<vmem>>, vector<1x128xf32>,
      %293 = arith.select %290, %287, %289 : vector<1x128xi1>, vector<1x128xi32>
      %c4_101 = arith.constant 4 : index
      %c0_102 = arith.constant 0 : index
      %294 = vector.load %arg9[%c4_101, %c0_102] : memref<8x128xi32, #tpu.memory_space<vmem>>, vector<1x128xi32>
      tpu.vector_store %arg9[%c4_101, %c0_102], %293 {strides = array<i32>} : memref<8x128xi32, #tpu.memory_space<vmem>>, vector<1x128xi32>,
      %295 = vector.extract_strided_slice %12 {offsets = [5, 0], sizes = [1, 1], strides = [1, 1]} : vector<8x6xf32> to vector<1x1xf32>
      %296 = vector.extract_strided_slice %12 {offsets = [5, 1], sizes = [1, 1], strides = [1, 1]} : vector<8x6xf32> to vector<1x1xf32>
      %297 = vector.extract_strided_slice %12 {offsets = [5, 2], sizes = [1, 1], strides = [1, 1]} : vector<8x6xf32> to vector<1x1xf32>
      %298 = vector.extract_strided_slice %12 {offsets = [5, 3], sizes = [1, 1], strides = [1, 1]} : vector<8x6xf32> to vector<1x1xf32>
      %299 = vector.broadcast %295 : vector<1x1xf32> to vector<8x128xf32>
      %300 = arith.maximumf %1, %299 : vector<8x128xf32>
      %301 = vector.broadcast %296 : vector<1x1xf32> to vector<8x128xf32>
      %302 = arith.maximumf %3, %301 : vector<8x128xf32>
      %303 = vector.broadcast %297 : vector<1x1xf32> to vector<8x128xf32>
      %304 = arith.minimumf %5, %303 : vector<8x128xf32>
      %305 = vector.broadcast %298 : vector<1x1xf32> to vector<8x128xf32>
      %306 = arith.minimumf %7, %305 : vector<8x128xf32>
      %307 = arith.subf %304, %300 : vector<8x128xf32>
      %cst_103 = arith.constant 0.000000e+00 : f32
      %308 = vector.broadcast %cst_103 : f32 to vector<8x128xf32>
      %309 = arith.maximumf %307, %308 : vector<8x128xf32>
      %310 = arith.subf %306, %302 : vector<8x128xf32>
      %cst_104 = arith.constant 0.000000e+00 : f32
      %311 = vector.broadcast %cst_104 : f32 to vector<8x128xf32>
      %312 = arith.maximumf %310, %311 : vector<8x128xf32>
      %313 = arith.mulf %309, %312 : vector<8x128xf32>
      %314 = arith.subf %297, %295 : vector<1x1xf32>
      %315 = arith.subf %298, %296 : vector<1x1xf32>
      %316 = arith.mulf %314, %315 : vector<1x1xf32>
      %317 = vector.broadcast %316 : vector<1x1xf32> to vector<8x128xf32>
      %318 = arith.addf %10, %317 : vector<8x128xf32>
      %319 = arith.subf %318, %313 : vector<8x128xf32>
      %cst_105 = arith.constant 9.99999993E-9 : f32
      %320 = vector.broadcast %cst_105 : f32 to vector<8x128xf32>
      %321 = arith.addf %319, %320 : vector<8x128xf32>
      %322 = tpu.reciprocal %321 {approx = true} : vector<8x128xf32> -> vector<8x128xf32>
      %323 = arith.mulf %313, %322 : vector<8x128xf32>
      %cst_106 = arith.constant -1.000000e+09 : f32
      %324 = vector.broadcast %cst_106 : f32 to vector<8x128xf32>
      %325 = arith.select %22, %323, %324 : vector<8x128xi1>, vector<8x128xf32>
      %cst_107 = arith.constant dense<0xFF800000> : vector<128xf32>
      %326 = vector.multi_reduction <maximumf>, %325, %cst_107 [0] : vector<8x128xf32> to vector<128xf32>
      %327 = vector.shape_cast %326 : vector<128xf32> to vector<1x128xf32>
      %328 = vector.broadcast %327 : vector<1x128xf32> to vector<8x128xf32>
      %329 = arith.cmpf oeq, %325, %328 : vector<8x128xf32>
      %c8_i32_108 = arith.constant 8 : i32
      %330 = vector.broadcast %c8_i32_108 : i32 to vector<8x128xi32>
      %331 = arith.select %329, %13, %330 : vector<8x128xi1>, vector<8x128xi32>
      %cst_109 = arith.constant dense<2147483647> : vector<128xi32>
      %332 = vector.multi_reduction <minsi>, %331, %cst_109 [0] : vector<8x128xi32> to vector<128xi32>
      %333 = vector.shape_cast %332 : vector<128xi32> to vector<1x128xi32>
      %c8_i32_110 = arith.constant 8 : i32
      %334 = arith.muli %arg2, %c8_i32_110 : i32
      %335 = vector.broadcast %334 : i32 to vector<1x128xi32>
      %336 = arith.addi %335, %333 : vector<1x128xi32>
      %c128_i32_111 = arith.constant 128 : i32
      %337 = vector.broadcast %c128_i32_111 : i32 to vector<1x128xi32>
      %338 = arith.muli %336, %337 : vector<1x128xi32>
      %339 = arith.addi %338, %34 : vector<1x128xi32>
      %c5 = arith.constant 5 : index
      %c0_112 = arith.constant 0 : index
      %340 = vector.load %arg8[%c5, %c0_112] : memref<8x128xf32, #tpu.memory_space<vmem>>, vector<1x128xf32>
      %c5_113 = arith.constant 5 : index
      %c0_114 = arith.constant 0 : index
      %341 = vector.load %arg9[%c5_113, %c0_114] : memref<8x128xi32, #tpu.memory_space<vmem>>, vector<1x128xi32>
      %342 = arith.cmpf ogt, %327, %340 : vector<1x128xf32>
      %343 = arith.select %342, %327, %340 : vector<1x128xi1>, vector<1x128xf32>
      %c5_115 = arith.constant 5 : index
      %c0_116 = arith.constant 0 : index
      %344 = vector.load %arg8[%c5_115, %c0_116] : memref<8x128xf32, #tpu.memory_space<vmem>>, vector<1x128xf32>
      tpu.vector_store %arg8[%c5_115, %c0_116], %343 {strides = array<i32>} : memref<8x128xf32, #tpu.memory_space<vmem>>, vector<1x128xf32>,
      %345 = arith.select %342, %339, %341 : vector<1x128xi1>, vector<1x128xi32>
      %c5_117 = arith.constant 5 : index
      %c0_118 = arith.constant 0 : index
      %346 = vector.load %arg9[%c5_117, %c0_118] : memref<8x128xi32, #tpu.memory_space<vmem>>, vector<1x128xi32>
      tpu.vector_store %arg9[%c5_117, %c0_118], %345 {strides = array<i32>} : memref<8x128xi32, #tpu.memory_space<vmem>>, vector<1x128xi32>,
      %347 = vector.extract_strided_slice %12 {offsets = [6, 0], sizes = [1, 1], strides = [1, 1]} : vector<8x6xf32> to vector<1x1xf32>
      %348 = vector.extract_strided_slice %12 {offsets = [6, 1], sizes = [1, 1], strides = [1, 1]} : vector<8x6xf32> to vector<1x1xf32>
      %349 = vector.extract_strided_slice %12 {offsets = [6, 2], sizes = [1, 1], strides = [1, 1]} : vector<8x6xf32> to vector<1x1xf32>
      %350 = vector.extract_strided_slice %12 {offsets = [6, 3], sizes = [1, 1], strides = [1, 1]} : vector<8x6xf32> to vector<1x1xf32>
      %351 = vector.broadcast %347 : vector<1x1xf32> to vector<8x128xf32>
      %352 = arith.maximumf %1, %351 : vector<8x128xf32>
      %353 = vector.broadcast %348 : vector<1x1xf32> to vector<8x128xf32>
      %354 = arith.maximumf %3, %353 : vector<8x128xf32>
      %355 = vector.broadcast %349 : vector<1x1xf32> to vector<8x128xf32>
      %356 = arith.minimumf %5, %355 : vector<8x128xf32>
      %357 = vector.broadcast %350 : vector<1x1xf32> to vector<8x128xf32>
      %358 = arith.minimumf %7, %357 : vector<8x128xf32>
      %359 = arith.subf %356, %352 : vector<8x128xf32>
      %cst_119 = arith.constant 0.000000e+00 : f32
      %360 = vector.broadcast %cst_119 : f32 to vector<8x128xf32>
      %361 = arith.maximumf %359, %360 : vector<8x128xf32>
      %362 = arith.subf %358, %354 : vector<8x128xf32>
      %cst_120 = arith.constant 0.000000e+00 : f32
      %363 = vector.broadcast %cst_120 : f32 to vector<8x128xf32>
      %364 = arith.maximumf %362, %363 : vector<8x128xf32>
      %365 = arith.mulf %361, %364 : vector<8x128xf32>
      %366 = arith.subf %349, %347 : vector<1x1xf32>
      %367 = arith.subf %350, %348 : vector<1x1xf32>
      %368 = arith.mulf %366, %367 : vector<1x1xf32>
      %369 = vector.broadcast %368 : vector<1x1xf32> to vector<8x128xf32>
      %370 = arith.addf %10, %369 : vector<8x128xf32>
      %371 = arith.subf %370, %365 : vector<8x128xf32>
      %cst_121 = arith.constant 9.99999993E-9 : f32
      %372 = vector.broadcast %cst_121 : f32 to vector<8x128xf32>
      %373 = arith.addf %371, %372 : vector<8x128xf32>
      %374 = tpu.reciprocal %373 {approx = true} : vector<8x128xf32> -> vector<8x128xf32>
      %375 = arith.mulf %365, %374 : vector<8x128xf32>
      %cst_122 = arith.constant -1.000000e+09 : f32
      %376 = vector.broadcast %cst_122 : f32 to vector<8x128xf32>
      %377 = arith.select %22, %375, %376 : vector<8x128xi1>, vector<8x128xf32>
      %cst_123 = arith.constant dense<0xFF800000> : vector<128xf32>
      %378 = vector.multi_reduction <maximumf>, %377, %cst_123 [0] : vector<8x128xf32> to vector<128xf32>
      %379 = vector.shape_cast %378 : vector<128xf32> to vector<1x128xf32>
      %380 = vector.broadcast %379 : vector<1x128xf32> to vector<8x128xf32>
      %381 = arith.cmpf oeq, %377, %380 : vector<8x128xf32>
      %c8_i32_124 = arith.constant 8 : i32
      %382 = vector.broadcast %c8_i32_124 : i32 to vector<8x128xi32>
      %383 = arith.select %381, %13, %382 : vector<8x128xi1>, vector<8x128xi32>
      %cst_125 = arith.constant dense<2147483647> : vector<128xi32>
      %384 = vector.multi_reduction <minsi>, %383, %cst_125 [0] : vector<8x128xi32> to vector<128xi32>
      %385 = vector.shape_cast %384 : vector<128xi32> to vector<1x128xi32>
      %c8_i32_126 = arith.constant 8 : i32
      %386 = arith.muli %arg2, %c8_i32_126 : i32
      %387 = vector.broadcast %386 : i32 to vector<1x128xi32>
      %388 = arith.addi %387, %385 : vector<1x128xi32>
      %c128_i32_127 = arith.constant 128 : i32
      %389 = vector.broadcast %c128_i32_127 : i32 to vector<1x128xi32>
      %390 = arith.muli %388, %389 : vector<1x128xi32>
      %391 = arith.addi %390, %34 : vector<1x128xi32>
      %c6 = arith.constant 6 : index
      %c0_128 = arith.constant 0 : index
      %392 = vector.load %arg8[%c6, %c0_128] : memref<8x128xf32, #tpu.memory_space<vmem>>, vector<1x128xf32>
      %c6_129 = arith.constant 6 : index
      %c0_130 = arith.constant 0 : index
      %393 = vector.load %arg9[%c6_129, %c0_130] : memref<8x128xi32, #tpu.memory_space<vmem>>, vector<1x128xi32>
      %394 = arith.cmpf ogt, %379, %392 : vector<1x128xf32>
      %395 = arith.select %394, %379, %392 : vector<1x128xi1>, vector<1x128xf32>
      %c6_131 = arith.constant 6 : index
      %c0_132 = arith.constant 0 : index
      %396 = vector.load %arg8[%c6_131, %c0_132] : memref<8x128xf32, #tpu.memory_space<vmem>>, vector<1x128xf32>
      tpu.vector_store %arg8[%c6_131, %c0_132], %395 {strides = array<i32>} : memref<8x128xf32, #tpu.memory_space<vmem>>, vector<1x128xf32>,
      %397 = arith.select %394, %391, %393 : vector<1x128xi1>, vector<1x128xi32>
      %c6_133 = arith.constant 6 : index
      %c0_134 = arith.constant 0 : index
      %398 = vector.load %arg9[%c6_133, %c0_134] : memref<8x128xi32, #tpu.memory_space<vmem>>, vector<1x128xi32>
      tpu.vector_store %arg9[%c6_133, %c0_134], %397 {strides = array<i32>} : memref<8x128xi32, #tpu.memory_space<vmem>>, vector<1x128xi32>,
      %399 = vector.extract_strided_slice %12 {offsets = [7, 0], sizes = [1, 1], strides = [1, 1]} : vector<8x6xf32> to vector<1x1xf32>
      %400 = vector.extract_strided_slice %12 {offsets = [7, 1], sizes = [1, 1], strides = [1, 1]} : vector<8x6xf32> to vector<1x1xf32>
      %401 = vector.extract_strided_slice %12 {offsets = [7, 2], sizes = [1, 1], strides = [1, 1]} : vector<8x6xf32> to vector<1x1xf32>
      %402 = vector.extract_strided_slice %12 {offsets = [7, 3], sizes = [1, 1], strides = [1, 1]} : vector<8x6xf32> to vector<1x1xf32>
      %403 = vector.broadcast %399 : vector<1x1xf32> to vector<8x128xf32>
      %404 = arith.maximumf %1, %403 : vector<8x128xf32>
      %405 = vector.broadcast %400 : vector<1x1xf32> to vector<8x128xf32>
      %406 = arith.maximumf %3, %405 : vector<8x128xf32>
      %407 = vector.broadcast %401 : vector<1x1xf32> to vector<8x128xf32>
      %408 = arith.minimumf %5, %407 : vector<8x128xf32>
      %409 = vector.broadcast %402 : vector<1x1xf32> to vector<8x128xf32>
      %410 = arith.minimumf %7, %409 : vector<8x128xf32>
      %411 = arith.subf %408, %404 : vector<8x128xf32>
      %cst_135 = arith.constant 0.000000e+00 : f32
      %412 = vector.broadcast %cst_135 : f32 to vector<8x128xf32>
      %413 = arith.maximumf %411, %412 : vector<8x128xf32>
      %414 = arith.subf %410, %406 : vector<8x128xf32>
      %cst_136 = arith.constant 0.000000e+00 : f32
      %415 = vector.broadcast %cst_136 : f32 to vector<8x128xf32>
      %416 = arith.maximumf %414, %415 : vector<8x128xf32>
      %417 = arith.mulf %413, %416 : vector<8x128xf32>
      %418 = arith.subf %401, %399 : vector<1x1xf32>
      %419 = arith.subf %402, %400 : vector<1x1xf32>
      %420 = arith.mulf %418, %419 : vector<1x1xf32>
      %421 = vector.broadcast %420 : vector<1x1xf32> to vector<8x128xf32>
      %422 = arith.addf %10, %421 : vector<8x128xf32>
      %423 = arith.subf %422, %417 : vector<8x128xf32>
      %cst_137 = arith.constant 9.99999993E-9 : f32
      %424 = vector.broadcast %cst_137 : f32 to vector<8x128xf32>
      %425 = arith.addf %423, %424 : vector<8x128xf32>
      %426 = tpu.reciprocal %425 {approx = true} : vector<8x128xf32> -> vector<8x128xf32>
      %427 = arith.mulf %417, %426 : vector<8x128xf32>
      %cst_138 = arith.constant -1.000000e+09 : f32
      %428 = vector.broadcast %cst_138 : f32 to vector<8x128xf32>
      %429 = arith.select %22, %427, %428 : vector<8x128xi1>, vector<8x128xf32>
      %cst_139 = arith.constant dense<0xFF800000> : vector<128xf32>
      %430 = vector.multi_reduction <maximumf>, %429, %cst_139 [0] : vector<8x128xf32> to vector<128xf32>
      %431 = vector.shape_cast %430 : vector<128xf32> to vector<1x128xf32>
      %432 = vector.broadcast %431 : vector<1x128xf32> to vector<8x128xf32>
      %433 = arith.cmpf oeq, %429, %432 : vector<8x128xf32>
      %c8_i32_140 = arith.constant 8 : i32
      %434 = vector.broadcast %c8_i32_140 : i32 to vector<8x128xi32>
      %435 = arith.select %433, %13, %434 : vector<8x128xi1>, vector<8x128xi32>
      %cst_141 = arith.constant dense<2147483647> : vector<128xi32>
      %436 = vector.multi_reduction <minsi>, %435, %cst_141 [0] : vector<8x128xi32> to vector<128xi32>
      %437 = vector.shape_cast %436 : vector<128xi32> to vector<1x128xi32>
      %c8_i32_142 = arith.constant 8 : i32
      %438 = arith.muli %arg2, %c8_i32_142 : i32
      %439 = vector.broadcast %438 : i32 to vector<1x128xi32>
      %440 = arith.addi %439, %437 : vector<1x128xi32>
      %c128_i32_143 = arith.constant 128 : i32
      %441 = vector.broadcast %c128_i32_143 : i32 to vector<1x128xi32>
      %442 = arith.muli %440, %441 : vector<1x128xi32>
      %443 = arith.addi %442, %34 : vector<1x128xi32>
      %c7 = arith.constant 7 : index
      %c0_144 = arith.constant 0 : index
      %444 = vector.load %arg8[%c7, %c0_144] : memref<8x128xf32, #tpu.memory_space<vmem>>, vector<1x128xf32>
      %c7_145 = arith.constant 7 : index
      %c0_146 = arith.constant 0 : index
      %445 = vector.load %arg9[%c7_145, %c0_146] : memref<8x128xi32, #tpu.memory_space<vmem>>, vector<1x128xi32>
      %446 = arith.cmpf ogt, %431, %444 : vector<1x128xf32>
      %447 = arith.select %446, %431, %444 : vector<1x128xi1>, vector<1x128xf32>
      %c7_147 = arith.constant 7 : index
      %c0_148 = arith.constant 0 : index
      %448 = vector.load %arg8[%c7_147, %c0_148] : memref<8x128xf32, #tpu.memory_space<vmem>>, vector<1x128xf32>
      tpu.vector_store %arg8[%c7_147, %c0_148], %447 {strides = array<i32>} : memref<8x128xf32, #tpu.memory_space<vmem>>, vector<1x128xf32>,
      %449 = arith.select %446, %443, %445 : vector<1x128xi1>, vector<1x128xi32>
      %c7_149 = arith.constant 7 : index
      %c0_150 = arith.constant 0 : index
      %450 = vector.load %arg9[%c7_149, %c0_150] : memref<8x128xi32, #tpu.memory_space<vmem>>, vector<1x128xi32>
      tpu.vector_store %arg9[%c7_149, %c0_150], %449 {strides = array<i32>} : memref<8x128xi32, #tpu.memory_space<vmem>>, vector<1x128xi32>,
    } else {
    }
    %c1_i32 = arith.constant 1 : i32
    %31 = arith.cmpi eq, %arg1, %c1_i32 : i32
    %32 = arith.extui %31 : i1 to i32
    %c0_i32_19 = arith.constant 0 : i32
    %33 = arith.cmpi ne, %32, %c0_i32_19 : i32
    scf.if %33 {
      %cst = arith.constant -1.000000e+09 : f32
      %34 = vector.broadcast %cst : f32 to vector<8x128xf32>
      %cst_20 = arith.constant 0.000000e+00 : f32
      %35 = vector.broadcast %cst_20 : f32 to vector<8x128xf32>
      %cst_21 = arith.constant 0.000000e+00 : f32
      %36 = vector.broadcast %cst_21 : f32 to vector<8x128xf32>
      %cst_22 = arith.constant 0.000000e+00 : f32
      %37 = vector.broadcast %cst_22 : f32 to vector<8x128xf32>
      %cst_23 = arith.constant 0.000000e+00 : f32
      %38 = vector.broadcast %cst_23 : f32 to vector<8x128xf32>
      %cst_24 = arith.constant 0.000000e+00 : f32
      %39 = vector.broadcast %cst_24 : f32 to vector<8x128xf32>
      %cst_25 = arith.constant -1.000000e+00 : f32
      %40 = vector.broadcast %cst_25 : f32 to vector<8x128xf32>
      %false = arith.constant false
      %41 = vector.broadcast %false : i1 to vector<8x128xi1>
      %42 = vector.extract_strided_slice %12 {offsets = [0, 0], sizes = [1, 1], strides = [1, 1]} : vector<8x6xf32> to vector<1x1xf32>
      %43 = vector.extract_strided_slice %12 {offsets = [0, 1], sizes = [1, 1], strides = [1, 1]} : vector<8x6xf32> to vector<1x1xf32>
      %44 = vector.extract_strided_slice %12 {offsets = [0, 2], sizes = [1, 1], strides = [1, 1]} : vector<8x6xf32> to vector<1x1xf32>
      %45 = vector.extract_strided_slice %12 {offsets = [0, 3], sizes = [1, 1], strides = [1, 1]} : vector<8x6xf32> to vector<1x1xf32>
      %46 = vector.extract_strided_slice %12 {offsets = [0, 4], sizes = [1, 1], strides = [1, 1]} : vector<8x6xf32> to vector<1x1xf32>
      %47 = vector.extract_strided_slice %12 {offsets = [0, 5], sizes = [1, 1], strides = [1, 1]} : vector<8x6xf32> to vector<1x1xf32>
      %cst_26 = arith.constant -1.000000e+00 : f32
      %48 = vector.broadcast %cst_26 : f32 to vector<1x1xf32>
      %49 = arith.cmpf one, %47, %48 : vector<1x1xf32>
      %50 = vector.broadcast %42 : vector<1x1xf32> to vector<8x128xf32>
      %51 = arith.maximumf %1, %50 : vector<8x128xf32>
      %52 = vector.broadcast %43 : vector<1x1xf32> to vector<8x128xf32>
      %53 = arith.maximumf %3, %52 : vector<8x128xf32>
      %54 = vector.broadcast %44 : vector<1x1xf32> to vector<8x128xf32>
      %55 = arith.minimumf %5, %54 : vector<8x128xf32>
      %56 = vector.broadcast %45 : vector<1x1xf32> to vector<8x128xf32>
      %57 = arith.minimumf %7, %56 : vector<8x128xf32>
      %58 = arith.subf %55, %51 : vector<8x128xf32>
      %cst_27 = arith.constant 0.000000e+00 : f32
      %59 = vector.broadcast %cst_27 : f32 to vector<8x128xf32>
      %60 = arith.maximumf %58, %59 : vector<8x128xf32>
      %61 = arith.subf %57, %53 : vector<8x128xf32>
      %cst_28 = arith.constant 0.000000e+00 : f32
      %62 = vector.broadcast %cst_28 : f32 to vector<8x128xf32>
      %63 = arith.maximumf %61, %62 : vector<8x128xf32>
      %64 = arith.mulf %60, %63 : vector<8x128xf32>
      %65 = arith.subf %44, %42 : vector<1x1xf32>
      %66 = arith.subf %45, %43 : vector<1x1xf32>
      %67 = arith.mulf %65, %66 : vector<1x1xf32>
      %68 = vector.broadcast %67 : vector<1x1xf32> to vector<8x128xf32>
      %69 = arith.addf %10, %68 : vector<8x128xf32>
      %70 = arith.subf %69, %64 : vector<8x128xf32>
      %cst_29 = arith.constant 9.99999993E-9 : f32
      %71 = vector.broadcast %cst_29 : f32 to vector<8x128xf32>
      %72 = arith.addf %70, %71 : vector<8x128xf32>
      %73 = tpu.reciprocal %72 {approx = true} : vector<8x128xf32> -> vector<8x128xf32>
      %74 = arith.mulf %64, %73 : vector<8x128xf32>
      %cst_30 = arith.constant -1.000000e+09 : f32
      %75 = vector.shape_cast %49 : vector<1x1xi1> to vector<1x1xi1>
      %76 = vector.broadcast %75 : vector<1x1xi1> to vector<8x128xi1>
      %77 = vector.broadcast %cst_30 : f32 to vector<8x128xf32>
      %78 = arith.select %76, %74, %77 : vector<8x128xi1>, vector<8x128xf32>
      %c0_31 = arith.constant 0 : index
      %c0_32 = arith.constant 0 : index
      %79 = vector.load %arg8[%c0_31, %c0_32] : memref<8x128xf32, #tpu.memory_space<vmem>>, vector<1x128xf32>
      %c0_33 = arith.constant 0 : index
      %c0_34 = arith.constant 0 : index
      %80 = vector.load %arg9[%c0_33, %c0_34] : memref<8x128xi32, #tpu.memory_space<vmem>>, vector<1x128xi32>
      %cst_35 = arith.constant dense<0xFF800000> : vector<1xf32>
      %81 = vector.multi_reduction <maximumf>, %79, %cst_35 [1] : vector<1x128xf32> to vector<1xf32>
      %82 = vector.shape_cast %81 : vector<1xf32> to vector<1x1xf32>
      %83 = vector.broadcast %82 : vector<1x1xf32> to vector<1x128xf32>
      %84 = arith.cmpf oeq, %79, %83 : vector<1x128xf32>
      %c1073741824_i32 = arith.constant 1073741824 : i32
      %85 = vector.broadcast %c1073741824_i32 : i32 to vector<1x128xi32>
      %86 = arith.select %84, %80, %85 : vector<1x128xi1>, vector<1x128xi32>
      %cst_36 = arith.constant dense<2147483647> : vector<1xi32>
      %87 = vector.multi_reduction <minsi>, %86, %cst_36 [1] : vector<1x128xi32> to vector<1xi32>
      %88 = vector.shape_cast %87 : vector<1xi32> to vector<1x1xi32>
      %89 = vector.broadcast %88 : vector<1x1xi32> to vector<8x128xi32>
      %90 = arith.cmpi eq, %20, %89 : vector<8x128xi32>
      %cst_37 = arith.constant 5.000000e-01 : f32
      %91 = vector.broadcast %cst_37 : f32 to vector<1x1xf32>
      %92 = arith.cmpf olt, %82, %91 : vector<1x1xf32>
      %93 = vector.broadcast %92 : vector<1x1xi1> to vector<8x128xi1>
      %94 = arith.andi %90, %93 : vector<8x128xi1>
      %95 = vector.broadcast %49 : vector<1x1xi1> to vector<8x128xi1>
      %96 = arith.andi %94, %95 : vector<8x128xi1>
      %97 = arith.ori %41, %96 : vector<8x128xi1>
      %98 = arith.cmpf ogt, %78, %34 : vector<8x128xf32>
      %99 = arith.select %98, %78, %34 : vector<8x128xi1>, vector<8x128xf32>
      %100 = vector.shape_cast %42 : vector<1x1xf32> to vector<1x1xf32>
      %101 = vector.broadcast %100 : vector<1x1xf32> to vector<8x128xf32>
      %102 = arith.select %98, %101, %35 : vector<8x128xi1>, vector<8x128xf32>
      %103 = vector.shape_cast %43 : vector<1x1xf32> to vector<1x1xf32>
      %104 = vector.broadcast %103 : vector<1x1xf32> to vector<8x128xf32>
      %105 = arith.select %98, %104, %36 : vector<8x128xi1>, vector<8x128xf32>
      %106 = vector.shape_cast %44 : vector<1x1xf32> to vector<1x1xf32>
      %107 = vector.broadcast %106 : vector<1x1xf32> to vector<8x128xf32>
      %108 = arith.select %98, %107, %37 : vector<8x128xi1>, vector<8x128xf32>
      %109 = vector.shape_cast %45 : vector<1x1xf32> to vector<1x1xf32>
      %110 = vector.broadcast %109 : vector<1x1xf32> to vector<8x128xf32>
      %111 = arith.select %98, %110, %38 : vector<8x128xi1>, vector<8x128xf32>
      %112 = vector.shape_cast %46 : vector<1x1xf32> to vector<1x1xf32>
      %113 = vector.broadcast %112 : vector<1x1xf32> to vector<8x128xf32>
      %114 = arith.select %98, %113, %39 : vector<8x128xi1>, vector<8x128xf32>
      %115 = vector.shape_cast %47 : vector<1x1xf32> to vector<1x1xf32>
      %116 = vector.broadcast %115 : vector<1x1xf32> to vector<8x128xf32>
      %117 = arith.select %98, %116, %40 : vector<8x128xi1>, vector<8x128xf32>
      %118 = vector.extract_strided_slice %12 {offsets = [1, 0], sizes = [1, 1], strides = [1, 1]} : vector<8x6xf32> to vector<1x1xf32>
      %119 = vector.extract_strided_slice %12 {offsets = [1, 1], sizes = [1, 1], strides = [1, 1]} : vector<8x6xf32> to vector<1x1xf32>
      %120 = vector.extract_strided_slice %12 {offsets = [1, 2], sizes = [1, 1], strides = [1, 1]} : vector<8x6xf32> to vector<1x1xf32>
      %121 = vector.extract_strided_slice %12 {offsets = [1, 3], sizes = [1, 1], strides = [1, 1]} : vector<8x6xf32> to vector<1x1xf32>
      %122 = vector.extract_strided_slice %12 {offsets = [1, 4], sizes = [1, 1], strides = [1, 1]} : vector<8x6xf32> to vector<1x1xf32>
      %123 = vector.extract_strided_slice %12 {offsets = [1, 5], sizes = [1, 1], strides = [1, 1]} : vector<8x6xf32> to vector<1x1xf32>
      %cst_38 = arith.constant -1.000000e+00 : f32
      %124 = vector.broadcast %cst_38 : f32 to vector<1x1xf32>
      %125 = arith.cmpf one, %123, %124 : vector<1x1xf32>
      %126 = vector.broadcast %118 : vector<1x1xf32> to vector<8x128xf32>
      %127 = arith.maximumf %1, %126 : vector<8x128xf32>
      %128 = vector.broadcast %119 : vector<1x1xf32> to vector<8x128xf32>
      %129 = arith.maximumf %3, %128 : vector<8x128xf32>
      %130 = vector.broadcast %120 : vector<1x1xf32> to vector<8x128xf32>
      %131 = arith.minimumf %5, %130 : vector<8x128xf32>
      %132 = vector.broadcast %121 : vector<1x1xf32> to vector<8x128xf32>
      %133 = arith.minimumf %7, %132 : vector<8x128xf32>
      %134 = arith.subf %131, %127 : vector<8x128xf32>
      %cst_39 = arith.constant 0.000000e+00 : f32
      %135 = vector.broadcast %cst_39 : f32 to vector<8x128xf32>
      %136 = arith.maximumf %134, %135 : vector<8x128xf32>
      %137 = arith.subf %133, %129 : vector<8x128xf32>
      %cst_40 = arith.constant 0.000000e+00 : f32
      %138 = vector.broadcast %cst_40 : f32 to vector<8x128xf32>
      %139 = arith.maximumf %137, %138 : vector<8x128xf32>
      %140 = arith.mulf %136, %139 : vector<8x128xf32>
      %141 = arith.subf %120, %118 : vector<1x1xf32>
      %142 = arith.subf %121, %119 : vector<1x1xf32>
      %143 = arith.mulf %141, %142 : vector<1x1xf32>
      %144 = vector.broadcast %143 : vector<1x1xf32> to vector<8x128xf32>
      %145 = arith.addf %10, %144 : vector<8x128xf32>
      %146 = arith.subf %145, %140 : vector<8x128xf32>
      %cst_41 = arith.constant 9.99999993E-9 : f32
      %147 = vector.broadcast %cst_41 : f32 to vector<8x128xf32>
      %148 = arith.addf %146, %147 : vector<8x128xf32>
      %149 = tpu.reciprocal %148 {approx = true} : vector<8x128xf32> -> vector<8x128xf32>
      %150 = arith.mulf %140, %149 : vector<8x128xf32>
      %cst_42 = arith.constant -1.000000e+09 : f32
      %151 = vector.shape_cast %125 : vector<1x1xi1> to vector<1x1xi1>
      %152 = vector.broadcast %151 : vector<1x1xi1> to vector<8x128xi1>
      %153 = vector.broadcast %cst_42 : f32 to vector<8x128xf32>
      %154 = arith.select %152, %150, %153 : vector<8x128xi1>, vector<8x128xf32>
      %c1_43 = arith.constant 1 : index
      %c0_44 = arith.constant 0 : index
      %155 = vector.load %arg8[%c1_43, %c0_44] : memref<8x128xf32, #tpu.memory_space<vmem>>, vector<1x128xf32>
      %c1_45 = arith.constant 1 : index
      %c0_46 = arith.constant 0 : index
      %156 = vector.load %arg9[%c1_45, %c0_46] : memref<8x128xi32, #tpu.memory_space<vmem>>, vector<1x128xi32>
      %cst_47 = arith.constant dense<0xFF800000> : vector<1xf32>
      %157 = vector.multi_reduction <maximumf>, %155, %cst_47 [1] : vector<1x128xf32> to vector<1xf32>
      %158 = vector.shape_cast %157 : vector<1xf32> to vector<1x1xf32>
      %159 = vector.broadcast %158 : vector<1x1xf32> to vector<1x128xf32>
      %160 = arith.cmpf oeq, %155, %159 : vector<1x128xf32>
      %c1073741824_i32_48 = arith.constant 1073741824 : i32
      %161 = vector.broadcast %c1073741824_i32_48 : i32 to vector<1x128xi32>
      %162 = arith.select %160, %156, %161 : vector<1x128xi1>, vector<1x128xi32>
      %cst_49 = arith.constant dense<2147483647> : vector<1xi32>
      %163 = vector.multi_reduction <minsi>, %162, %cst_49 [1] : vector<1x128xi32> to vector<1xi32>
      %164 = vector.shape_cast %163 : vector<1xi32> to vector<1x1xi32>
      %165 = vector.broadcast %164 : vector<1x1xi32> to vector<8x128xi32>
      %166 = arith.cmpi eq, %20, %165 : vector<8x128xi32>
      %cst_50 = arith.constant 5.000000e-01 : f32
      %167 = vector.broadcast %cst_50 : f32 to vector<1x1xf32>
      %168 = arith.cmpf olt, %158, %167 : vector<1x1xf32>
      %169 = vector.broadcast %168 : vector<1x1xi1> to vector<8x128xi1>
      %170 = arith.andi %166, %169 : vector<8x128xi1>
      %171 = vector.broadcast %125 : vector<1x1xi1> to vector<8x128xi1>
      %172 = arith.andi %170, %171 : vector<8x128xi1>
      %173 = arith.ori %97, %172 : vector<8x128xi1>
      %174 = arith.cmpf ogt, %154, %99 : vector<8x128xf32>
      %175 = arith.select %174, %154, %99 : vector<8x128xi1>, vector<8x128xf32>
      %176 = vector.shape_cast %118 : vector<1x1xf32> to vector<1x1xf32>
      %177 = vector.broadcast %176 : vector<1x1xf32> to vector<8x128xf32>
      %178 = arith.select %174, %177, %102 : vector<8x128xi1>, vector<8x128xf32>
      %179 = vector.shape_cast %119 : vector<1x1xf32> to vector<1x1xf32>
      %180 = vector.broadcast %179 : vector<1x1xf32> to vector<8x128xf32>
      %181 = arith.select %174, %180, %105 : vector<8x128xi1>, vector<8x128xf32>
      %182 = vector.shape_cast %120 : vector<1x1xf32> to vector<1x1xf32>
      %183 = vector.broadcast %182 : vector<1x1xf32> to vector<8x128xf32>
      %184 = arith.select %174, %183, %108 : vector<8x128xi1>, vector<8x128xf32>
      %185 = vector.shape_cast %121 : vector<1x1xf32> to vector<1x1xf32>
      %186 = vector.broadcast %185 : vector<1x1xf32> to vector<8x128xf32>
      %187 = arith.select %174, %186, %111 : vector<8x128xi1>, vector<8x128xf32>
      %188 = vector.shape_cast %122 : vector<1x1xf32> to vector<1x1xf32>
      %189 = vector.broadcast %188 : vector<1x1xf32> to vector<8x128xf32>
      %190 = arith.select %174, %189, %114 : vector<8x128xi1>, vector<8x128xf32>
      %191 = vector.shape_cast %123 : vector<1x1xf32> to vector<1x1xf32>
      %192 = vector.broadcast %191 : vector<1x1xf32> to vector<8x128xf32>
      %193 = arith.select %174, %192, %117 : vector<8x128xi1>, vector<8x128xf32>
      %194 = vector.extract_strided_slice %12 {offsets = [2, 0], sizes = [1, 1], strides = [1, 1]} : vector<8x6xf32> to vector<1x1xf32>
      %195 = vector.extract_strided_slice %12 {offsets = [2, 1], sizes = [1, 1], strides = [1, 1]} : vector<8x6xf32> to vector<1x1xf32>
      %196 = vector.extract_strided_slice %12 {offsets = [2, 2], sizes = [1, 1], strides = [1, 1]} : vector<8x6xf32> to vector<1x1xf32>
      %197 = vector.extract_strided_slice %12 {offsets = [2, 3], sizes = [1, 1], strides = [1, 1]} : vector<8x6xf32> to vector<1x1xf32>
      %198 = vector.extract_strided_slice %12 {offsets = [2, 4], sizes = [1, 1], strides = [1, 1]} : vector<8x6xf32> to vector<1x1xf32>
      %199 = vector.extract_strided_slice %12 {offsets = [2, 5], sizes = [1, 1], strides = [1, 1]} : vector<8x6xf32> to vector<1x1xf32>
      %cst_51 = arith.constant -1.000000e+00 : f32
      %200 = vector.broadcast %cst_51 : f32 to vector<1x1xf32>
      %201 = arith.cmpf one, %199, %200 : vector<1x1xf32>
      %202 = vector.broadcast %194 : vector<1x1xf32> to vector<8x128xf32>
      %203 = arith.maximumf %1, %202 : vector<8x128xf32>
      %204 = vector.broadcast %195 : vector<1x1xf32> to vector<8x128xf32>
      %205 = arith.maximumf %3, %204 : vector<8x128xf32>
      %206 = vector.broadcast %196 : vector<1x1xf32> to vector<8x128xf32>
      %207 = arith.minimumf %5, %206 : vector<8x128xf32>
      %208 = vector.broadcast %197 : vector<1x1xf32> to vector<8x128xf32>
      %209 = arith.minimumf %7, %208 : vector<8x128xf32>
      %210 = arith.subf %207, %203 : vector<8x128xf32>
      %cst_52 = arith.constant 0.000000e+00 : f32
      %211 = vector.broadcast %cst_52 : f32 to vector<8x128xf32>
      %212 = arith.maximumf %210, %211 : vector<8x128xf32>
      %213 = arith.subf %209, %205 : vector<8x128xf32>
      %cst_53 = arith.constant 0.000000e+00 : f32
      %214 = vector.broadcast %cst_53 : f32 to vector<8x128xf32>
      %215 = arith.maximumf %213, %214 : vector<8x128xf32>
      %216 = arith.mulf %212, %215 : vector<8x128xf32>
      %217 = arith.subf %196, %194 : vector<1x1xf32>
      %218 = arith.subf %197, %195 : vector<1x1xf32>
      %219 = arith.mulf %217, %218 : vector<1x1xf32>
      %220 = vector.broadcast %219 : vector<1x1xf32> to vector<8x128xf32>
      %221 = arith.addf %10, %220 : vector<8x128xf32>
      %222 = arith.subf %221, %216 : vector<8x128xf32>
      %cst_54 = arith.constant 9.99999993E-9 : f32
      %223 = vector.broadcast %cst_54 : f32 to vector<8x128xf32>
      %224 = arith.addf %222, %223 : vector<8x128xf32>
      %225 = tpu.reciprocal %224 {approx = true} : vector<8x128xf32> -> vector<8x128xf32>
      %226 = arith.mulf %216, %225 : vector<8x128xf32>
      %cst_55 = arith.constant -1.000000e+09 : f32
      %227 = vector.shape_cast %201 : vector<1x1xi1> to vector<1x1xi1>
      %228 = vector.broadcast %227 : vector<1x1xi1> to vector<8x128xi1>
      %229 = vector.broadcast %cst_55 : f32 to vector<8x128xf32>
      %230 = arith.select %228, %226, %229 : vector<8x128xi1>, vector<8x128xf32>
      %c2_56 = arith.constant 2 : index
      %c0_57 = arith.constant 0 : index
      %231 = vector.load %arg8[%c2_56, %c0_57] : memref<8x128xf32, #tpu.memory_space<vmem>>, vector<1x128xf32>
      %c2_58 = arith.constant 2 : index
      %c0_59 = arith.constant 0 : index
      %232 = vector.load %arg9[%c2_58, %c0_59] : memref<8x128xi32, #tpu.memory_space<vmem>>, vector<1x128xi32>
      %cst_60 = arith.constant dense<0xFF800000> : vector<1xf32>
      %233 = vector.multi_reduction <maximumf>, %231, %cst_60 [1] : vector<1x128xf32> to vector<1xf32>
      %234 = vector.shape_cast %233 : vector<1xf32> to vector<1x1xf32>
      %235 = vector.broadcast %234 : vector<1x1xf32> to vector<1x128xf32>
      %236 = arith.cmpf oeq, %231, %235 : vector<1x128xf32>
      %c1073741824_i32_61 = arith.constant 1073741824 : i32
      %237 = vector.broadcast %c1073741824_i32_61 : i32 to vector<1x128xi32>
      %238 = arith.select %236, %232, %237 : vector<1x128xi1>, vector<1x128xi32>
      %cst_62 = arith.constant dense<2147483647> : vector<1xi32>
      %239 = vector.multi_reduction <minsi>, %238, %cst_62 [1] : vector<1x128xi32> to vector<1xi32>
      %240 = vector.shape_cast %239 : vector<1xi32> to vector<1x1xi32>
      %241 = vector.broadcast %240 : vector<1x1xi32> to vector<8x128xi32>
      %242 = arith.cmpi eq, %20, %241 : vector<8x128xi32>
      %cst_63 = arith.constant 5.000000e-01 : f32
      %243 = vector.broadcast %cst_63 : f32 to vector<1x1xf32>
      %244 = arith.cmpf olt, %234, %243 : vector<1x1xf32>
      %245 = vector.broadcast %244 : vector<1x1xi1> to vector<8x128xi1>
      %246 = arith.andi %242, %245 : vector<8x128xi1>
      %247 = vector.broadcast %201 : vector<1x1xi1> to vector<8x128xi1>
      %248 = arith.andi %246, %247 : vector<8x128xi1>
      %249 = arith.ori %173, %248 : vector<8x128xi1>
      %250 = arith.cmpf ogt, %230, %175 : vector<8x128xf32>
      %251 = arith.select %250, %230, %175 : vector<8x128xi1>, vector<8x128xf32>
      %252 = vector.shape_cast %194 : vector<1x1xf32> to vector<1x1xf32>
      %253 = vector.broadcast %252 : vector<1x1xf32> to vector<8x128xf32>
      %254 = arith.select %250, %253, %178 : vector<8x128xi1>, vector<8x128xf32>
      %255 = vector.shape_cast %195 : vector<1x1xf32> to vector<1x1xf32>
      %256 = vector.broadcast %255 : vector<1x1xf32> to vector<8x128xf32>
      %257 = arith.select %250, %256, %181 : vector<8x128xi1>, vector<8x128xf32>
      %258 = vector.shape_cast %196 : vector<1x1xf32> to vector<1x1xf32>
      %259 = vector.broadcast %258 : vector<1x1xf32> to vector<8x128xf32>
      %260 = arith.select %250, %259, %184 : vector<8x128xi1>, vector<8x128xf32>
      %261 = vector.shape_cast %197 : vector<1x1xf32> to vector<1x1xf32>
      %262 = vector.broadcast %261 : vector<1x1xf32> to vector<8x128xf32>
      %263 = arith.select %250, %262, %187 : vector<8x128xi1>, vector<8x128xf32>
      %264 = vector.shape_cast %198 : vector<1x1xf32> to vector<1x1xf32>
      %265 = vector.broadcast %264 : vector<1x1xf32> to vector<8x128xf32>
      %266 = arith.select %250, %265, %190 : vector<8x128xi1>, vector<8x128xf32>
      %267 = vector.shape_cast %199 : vector<1x1xf32> to vector<1x1xf32>
      %268 = vector.broadcast %267 : vector<1x1xf32> to vector<8x128xf32>
      %269 = arith.select %250, %268, %193 : vector<8x128xi1>, vector<8x128xf32>
      %270 = vector.extract_strided_slice %12 {offsets = [3, 0], sizes = [1, 1], strides = [1, 1]} : vector<8x6xf32> to vector<1x1xf32>
      %271 = vector.extract_strided_slice %12 {offsets = [3, 1], sizes = [1, 1], strides = [1, 1]} : vector<8x6xf32> to vector<1x1xf32>
      %272 = vector.extract_strided_slice %12 {offsets = [3, 2], sizes = [1, 1], strides = [1, 1]} : vector<8x6xf32> to vector<1x1xf32>
      %273 = vector.extract_strided_slice %12 {offsets = [3, 3], sizes = [1, 1], strides = [1, 1]} : vector<8x6xf32> to vector<1x1xf32>
      %274 = vector.extract_strided_slice %12 {offsets = [3, 4], sizes = [1, 1], strides = [1, 1]} : vector<8x6xf32> to vector<1x1xf32>
      %275 = vector.extract_strided_slice %12 {offsets = [3, 5], sizes = [1, 1], strides = [1, 1]} : vector<8x6xf32> to vector<1x1xf32>
      %cst_64 = arith.constant -1.000000e+00 : f32
      %276 = vector.broadcast %cst_64 : f32 to vector<1x1xf32>
      %277 = arith.cmpf one, %275, %276 : vector<1x1xf32>
      %278 = vector.broadcast %270 : vector<1x1xf32> to vector<8x128xf32>
      %279 = arith.maximumf %1, %278 : vector<8x128xf32>
      %280 = vector.broadcast %271 : vector<1x1xf32> to vector<8x128xf32>
      %281 = arith.maximumf %3, %280 : vector<8x128xf32>
      %282 = vector.broadcast %272 : vector<1x1xf32> to vector<8x128xf32>
      %283 = arith.minimumf %5, %282 : vector<8x128xf32>
      %284 = vector.broadcast %273 : vector<1x1xf32> to vector<8x128xf32>
      %285 = arith.minimumf %7, %284 : vector<8x128xf32>
      %286 = arith.subf %283, %279 : vector<8x128xf32>
      %cst_65 = arith.constant 0.000000e+00 : f32
      %287 = vector.broadcast %cst_65 : f32 to vector<8x128xf32>
      %288 = arith.maximumf %286, %287 : vector<8x128xf32>
      %289 = arith.subf %285, %281 : vector<8x128xf32>
      %cst_66 = arith.constant 0.000000e+00 : f32
      %290 = vector.broadcast %cst_66 : f32 to vector<8x128xf32>
      %291 = arith.maximumf %289, %290 : vector<8x128xf32>
      %292 = arith.mulf %288, %291 : vector<8x128xf32>
      %293 = arith.subf %272, %270 : vector<1x1xf32>
      %294 = arith.subf %273, %271 : vector<1x1xf32>
      %295 = arith.mulf %293, %294 : vector<1x1xf32>
      %296 = vector.broadcast %295 : vector<1x1xf32> to vector<8x128xf32>
      %297 = arith.addf %10, %296 : vector<8x128xf32>
      %298 = arith.subf %297, %292 : vector<8x128xf32>
      %cst_67 = arith.constant 9.99999993E-9 : f32
      %299 = vector.broadcast %cst_67 : f32 to vector<8x128xf32>
      %300 = arith.addf %298, %299 : vector<8x128xf32>
      %301 = tpu.reciprocal %300 {approx = true} : vector<8x128xf32> -> vector<8x128xf32>
      %302 = arith.mulf %292, %301 : vector<8x128xf32>
      %cst_68 = arith.constant -1.000000e+09 : f32
      %303 = vector.shape_cast %277 : vector<1x1xi1> to vector<1x1xi1>
      %304 = vector.broadcast %303 : vector<1x1xi1> to vector<8x128xi1>
      %305 = vector.broadcast %cst_68 : f32 to vector<8x128xf32>
      %306 = arith.select %304, %302, %305 : vector<8x128xi1>, vector<8x128xf32>
      %c3_69 = arith.constant 3 : index
      %c0_70 = arith.constant 0 : index
      %307 = vector.load %arg8[%c3_69, %c0_70] : memref<8x128xf32, #tpu.memory_space<vmem>>, vector<1x128xf32>
      %c3_71 = arith.constant 3 : index
      %c0_72 = arith.constant 0 : index
      %308 = vector.load %arg9[%c3_71, %c0_72] : memref<8x128xi32, #tpu.memory_space<vmem>>, vector<1x128xi32>
      %cst_73 = arith.constant dense<0xFF800000> : vector<1xf32>
      %309 = vector.multi_reduction <maximumf>, %307, %cst_73 [1] : vector<1x128xf32> to vector<1xf32>
      %310 = vector.shape_cast %309 : vector<1xf32> to vector<1x1xf32>
      %311 = vector.broadcast %310 : vector<1x1xf32> to vector<1x128xf32>
      %312 = arith.cmpf oeq, %307, %311 : vector<1x128xf32>
      %c1073741824_i32_74 = arith.constant 1073741824 : i32
      %313 = vector.broadcast %c1073741824_i32_74 : i32 to vector<1x128xi32>
      %314 = arith.select %312, %308, %313 : vector<1x128xi1>, vector<1x128xi32>
      %cst_75 = arith.constant dense<2147483647> : vector<1xi32>
      %315 = vector.multi_reduction <minsi>, %314, %cst_75 [1] : vector<1x128xi32> to vector<1xi32>
      %316 = vector.shape_cast %315 : vector<1xi32> to vector<1x1xi32>
      %317 = vector.broadcast %316 : vector<1x1xi32> to vector<8x128xi32>
      %318 = arith.cmpi eq, %20, %317 : vector<8x128xi32>
      %cst_76 = arith.constant 5.000000e-01 : f32
      %319 = vector.broadcast %cst_76 : f32 to vector<1x1xf32>
      %320 = arith.cmpf olt, %310, %319 : vector<1x1xf32>
      %321 = vector.broadcast %320 : vector<1x1xi1> to vector<8x128xi1>
      %322 = arith.andi %318, %321 : vector<8x128xi1>
      %323 = vector.broadcast %277 : vector<1x1xi1> to vector<8x128xi1>
      %324 = arith.andi %322, %323 : vector<8x128xi1>
      %325 = arith.ori %249, %324 : vector<8x128xi1>
      %326 = arith.cmpf ogt, %306, %251 : vector<8x128xf32>
      %327 = arith.select %326, %306, %251 : vector<8x128xi1>, vector<8x128xf32>
      %328 = vector.shape_cast %270 : vector<1x1xf32> to vector<1x1xf32>
      %329 = vector.broadcast %328 : vector<1x1xf32> to vector<8x128xf32>
      %330 = arith.select %326, %329, %254 : vector<8x128xi1>, vector<8x128xf32>
      %331 = vector.shape_cast %271 : vector<1x1xf32> to vector<1x1xf32>
      %332 = vector.broadcast %331 : vector<1x1xf32> to vector<8x128xf32>
      %333 = arith.select %326, %332, %257 : vector<8x128xi1>, vector<8x128xf32>
      %334 = vector.shape_cast %272 : vector<1x1xf32> to vector<1x1xf32>
      %335 = vector.broadcast %334 : vector<1x1xf32> to vector<8x128xf32>
      %336 = arith.select %326, %335, %260 : vector<8x128xi1>, vector<8x128xf32>
      %337 = vector.shape_cast %273 : vector<1x1xf32> to vector<1x1xf32>
      %338 = vector.broadcast %337 : vector<1x1xf32> to vector<8x128xf32>
      %339 = arith.select %326, %338, %263 : vector<8x128xi1>, vector<8x128xf32>
      %340 = vector.shape_cast %274 : vector<1x1xf32> to vector<1x1xf32>
      %341 = vector.broadcast %340 : vector<1x1xf32> to vector<8x128xf32>
      %342 = arith.select %326, %341, %266 : vector<8x128xi1>, vector<8x128xf32>
      %343 = vector.shape_cast %275 : vector<1x1xf32> to vector<1x1xf32>
      %344 = vector.broadcast %343 : vector<1x1xf32> to vector<8x128xf32>
      %345 = arith.select %326, %344, %269 : vector<8x128xi1>, vector<8x128xf32>
      %346 = vector.extract_strided_slice %12 {offsets = [4, 0], sizes = [1, 1], strides = [1, 1]} : vector<8x6xf32> to vector<1x1xf32>
      %347 = vector.extract_strided_slice %12 {offsets = [4, 1], sizes = [1, 1], strides = [1, 1]} : vector<8x6xf32> to vector<1x1xf32>
      %348 = vector.extract_strided_slice %12 {offsets = [4, 2], sizes = [1, 1], strides = [1, 1]} : vector<8x6xf32> to vector<1x1xf32>
      %349 = vector.extract_strided_slice %12 {offsets = [4, 3], sizes = [1, 1], strides = [1, 1]} : vector<8x6xf32> to vector<1x1xf32>
      %350 = vector.extract_strided_slice %12 {offsets = [4, 4], sizes = [1, 1], strides = [1, 1]} : vector<8x6xf32> to vector<1x1xf32>
      %351 = vector.extract_strided_slice %12 {offsets = [4, 5], sizes = [1, 1], strides = [1, 1]} : vector<8x6xf32> to vector<1x1xf32>
      %cst_77 = arith.constant -1.000000e+00 : f32
      %352 = vector.broadcast %cst_77 : f32 to vector<1x1xf32>
      %353 = arith.cmpf one, %351, %352 : vector<1x1xf32>
      %354 = vector.broadcast %346 : vector<1x1xf32> to vector<8x128xf32>
      %355 = arith.maximumf %1, %354 : vector<8x128xf32>
      %356 = vector.broadcast %347 : vector<1x1xf32> to vector<8x128xf32>
      %357 = arith.maximumf %3, %356 : vector<8x128xf32>
      %358 = vector.broadcast %348 : vector<1x1xf32> to vector<8x128xf32>
      %359 = arith.minimumf %5, %358 : vector<8x128xf32>
      %360 = vector.broadcast %349 : vector<1x1xf32> to vector<8x128xf32>
      %361 = arith.minimumf %7, %360 : vector<8x128xf32>
      %362 = arith.subf %359, %355 : vector<8x128xf32>
      %cst_78 = arith.constant 0.000000e+00 : f32
      %363 = vector.broadcast %cst_78 : f32 to vector<8x128xf32>
      %364 = arith.maximumf %362, %363 : vector<8x128xf32>
      %365 = arith.subf %361, %357 : vector<8x128xf32>
      %cst_79 = arith.constant 0.000000e+00 : f32
      %366 = vector.broadcast %cst_79 : f32 to vector<8x128xf32>
      %367 = arith.maximumf %365, %366 : vector<8x128xf32>
      %368 = arith.mulf %364, %367 : vector<8x128xf32>
      %369 = arith.subf %348, %346 : vector<1x1xf32>
      %370 = arith.subf %349, %347 : vector<1x1xf32>
      %371 = arith.mulf %369, %370 : vector<1x1xf32>
      %372 = vector.broadcast %371 : vector<1x1xf32> to vector<8x128xf32>
      %373 = arith.addf %10, %372 : vector<8x128xf32>
      %374 = arith.subf %373, %368 : vector<8x128xf32>
      %cst_80 = arith.constant 9.99999993E-9 : f32
      %375 = vector.broadcast %cst_80 : f32 to vector<8x128xf32>
      %376 = arith.addf %374, %375 : vector<8x128xf32>
      %377 = tpu.reciprocal %376 {approx = true} : vector<8x128xf32> -> vector<8x128xf32>
      %378 = arith.mulf %368, %377 : vector<8x128xf32>
      %cst_81 = arith.constant -1.000000e+09 : f32
      %379 = vector.shape_cast %353 : vector<1x1xi1> to vector<1x1xi1>
      %380 = vector.broadcast %379 : vector<1x1xi1> to vector<8x128xi1>
      %381 = vector.broadcast %cst_81 : f32 to vector<8x128xf32>
      %382 = arith.select %380, %378, %381 : vector<8x128xi1>, vector<8x128xf32>
      %c4 = arith.constant 4 : index
      %c0_82 = arith.constant 0 : index
      %383 = vector.load %arg8[%c4, %c0_82] : memref<8x128xf32, #tpu.memory_space<vmem>>, vector<1x128xf32>
      %c4_83 = arith.constant 4 : index
      %c0_84 = arith.constant 0 : index
      %384 = vector.load %arg9[%c4_83, %c0_84] : memref<8x128xi32, #tpu.memory_space<vmem>>, vector<1x128xi32>
      %cst_85 = arith.constant dense<0xFF800000> : vector<1xf32>
      %385 = vector.multi_reduction <maximumf>, %383, %cst_85 [1] : vector<1x128xf32> to vector<1xf32>
      %386 = vector.shape_cast %385 : vector<1xf32> to vector<1x1xf32>
      %387 = vector.broadcast %386 : vector<1x1xf32> to vector<1x128xf32>
      %388 = arith.cmpf oeq, %383, %387 : vector<1x128xf32>
      %c1073741824_i32_86 = arith.constant 1073741824 : i32
      %389 = vector.broadcast %c1073741824_i32_86 : i32 to vector<1x128xi32>
      %390 = arith.select %388, %384, %389 : vector<1x128xi1>, vector<1x128xi32>
      %cst_87 = arith.constant dense<2147483647> : vector<1xi32>
      %391 = vector.multi_reduction <minsi>, %390, %cst_87 [1] : vector<1x128xi32> to vector<1xi32>
      %392 = vector.shape_cast %391 : vector<1xi32> to vector<1x1xi32>
      %393 = vector.broadcast %392 : vector<1x1xi32> to vector<8x128xi32>
      %394 = arith.cmpi eq, %20, %393 : vector<8x128xi32>
      %cst_88 = arith.constant 5.000000e-01 : f32
      %395 = vector.broadcast %cst_88 : f32 to vector<1x1xf32>
      %396 = arith.cmpf olt, %386, %395 : vector<1x1xf32>
      %397 = vector.broadcast %396 : vector<1x1xi1> to vector<8x128xi1>
      %398 = arith.andi %394, %397 : vector<8x128xi1>
      %399 = vector.broadcast %353 : vector<1x1xi1> to vector<8x128xi1>
      %400 = arith.andi %398, %399 : vector<8x128xi1>
      %401 = arith.ori %325, %400 : vector<8x128xi1>
      %402 = arith.cmpf ogt, %382, %327 : vector<8x128xf32>
      %403 = arith.select %402, %382, %327 : vector<8x128xi1>, vector<8x128xf32>
      %404 = vector.shape_cast %346 : vector<1x1xf32> to vector<1x1xf32>
      %405 = vector.broadcast %404 : vector<1x1xf32> to vector<8x128xf32>
      %406 = arith.select %402, %405, %330 : vector<8x128xi1>, vector<8x128xf32>
      %407 = vector.shape_cast %347 : vector<1x1xf32> to vector<1x1xf32>
      %408 = vector.broadcast %407 : vector<1x1xf32> to vector<8x128xf32>
      %409 = arith.select %402, %408, %333 : vector<8x128xi1>, vector<8x128xf32>
      %410 = vector.shape_cast %348 : vector<1x1xf32> to vector<1x1xf32>
      %411 = vector.broadcast %410 : vector<1x1xf32> to vector<8x128xf32>
      %412 = arith.select %402, %411, %336 : vector<8x128xi1>, vector<8x128xf32>
      %413 = vector.shape_cast %349 : vector<1x1xf32> to vector<1x1xf32>
      %414 = vector.broadcast %413 : vector<1x1xf32> to vector<8x128xf32>
      %415 = arith.select %402, %414, %339 : vector<8x128xi1>, vector<8x128xf32>
      %416 = vector.shape_cast %350 : vector<1x1xf32> to vector<1x1xf32>
      %417 = vector.broadcast %416 : vector<1x1xf32> to vector<8x128xf32>
      %418 = arith.select %402, %417, %342 : vector<8x128xi1>, vector<8x128xf32>
      %419 = vector.shape_cast %351 : vector<1x1xf32> to vector<1x1xf32>
      %420 = vector.broadcast %419 : vector<1x1xf32> to vector<8x128xf32>
      %421 = arith.select %402, %420, %345 : vector<8x128xi1>, vector<8x128xf32>
      %422 = vector.extract_strided_slice %12 {offsets = [5, 0], sizes = [1, 1], strides = [1, 1]} : vector<8x6xf32> to vector<1x1xf32>
      %423 = vector.extract_strided_slice %12 {offsets = [5, 1], sizes = [1, 1], strides = [1, 1]} : vector<8x6xf32> to vector<1x1xf32>
      %424 = vector.extract_strided_slice %12 {offsets = [5, 2], sizes = [1, 1], strides = [1, 1]} : vector<8x6xf32> to vector<1x1xf32>
      %425 = vector.extract_strided_slice %12 {offsets = [5, 3], sizes = [1, 1], strides = [1, 1]} : vector<8x6xf32> to vector<1x1xf32>
      %426 = vector.extract_strided_slice %12 {offsets = [5, 4], sizes = [1, 1], strides = [1, 1]} : vector<8x6xf32> to vector<1x1xf32>
      %427 = vector.extract_strided_slice %12 {offsets = [5, 5], sizes = [1, 1], strides = [1, 1]} : vector<8x6xf32> to vector<1x1xf32>
      %cst_89 = arith.constant -1.000000e+00 : f32
      %428 = vector.broadcast %cst_89 : f32 to vector<1x1xf32>
      %429 = arith.cmpf one, %427, %428 : vector<1x1xf32>
      %430 = vector.broadcast %422 : vector<1x1xf32> to vector<8x128xf32>
      %431 = arith.maximumf %1, %430 : vector<8x128xf32>
      %432 = vector.broadcast %423 : vector<1x1xf32> to vector<8x128xf32>
      %433 = arith.maximumf %3, %432 : vector<8x128xf32>
      %434 = vector.broadcast %424 : vector<1x1xf32> to vector<8x128xf32>
      %435 = arith.minimumf %5, %434 : vector<8x128xf32>
      %436 = vector.broadcast %425 : vector<1x1xf32> to vector<8x128xf32>
      %437 = arith.minimumf %7, %436 : vector<8x128xf32>
      %438 = arith.subf %435, %431 : vector<8x128xf32>
      %cst_90 = arith.constant 0.000000e+00 : f32
      %439 = vector.broadcast %cst_90 : f32 to vector<8x128xf32>
      %440 = arith.maximumf %438, %439 : vector<8x128xf32>
      %441 = arith.subf %437, %433 : vector<8x128xf32>
      %cst_91 = arith.constant 0.000000e+00 : f32
      %442 = vector.broadcast %cst_91 : f32 to vector<8x128xf32>
      %443 = arith.maximumf %441, %442 : vector<8x128xf32>
      %444 = arith.mulf %440, %443 : vector<8x128xf32>
      %445 = arith.subf %424, %422 : vector<1x1xf32>
      %446 = arith.subf %425, %423 : vector<1x1xf32>
      %447 = arith.mulf %445, %446 : vector<1x1xf32>
      %448 = vector.broadcast %447 : vector<1x1xf32> to vector<8x128xf32>
      %449 = arith.addf %10, %448 : vector<8x128xf32>
      %450 = arith.subf %449, %444 : vector<8x128xf32>
      %cst_92 = arith.constant 9.99999993E-9 : f32
      %451 = vector.broadcast %cst_92 : f32 to vector<8x128xf32>
      %452 = arith.addf %450, %451 : vector<8x128xf32>
      %453 = tpu.reciprocal %452 {approx = true} : vector<8x128xf32> -> vector<8x128xf32>
      %454 = arith.mulf %444, %453 : vector<8x128xf32>
      %cst_93 = arith.constant -1.000000e+09 : f32
      %455 = vector.shape_cast %429 : vector<1x1xi1> to vector<1x1xi1>
      %456 = vector.broadcast %455 : vector<1x1xi1> to vector<8x128xi1>
      %457 = vector.broadcast %cst_93 : f32 to vector<8x128xf32>
      %458 = arith.select %456, %454, %457 : vector<8x128xi1>, vector<8x128xf32>
      %c5 = arith.constant 5 : index
      %c0_94 = arith.constant 0 : index
      %459 = vector.load %arg8[%c5, %c0_94] : memref<8x128xf32, #tpu.memory_space<vmem>>, vector<1x128xf32>
      %c5_95 = arith.constant 5 : index
      %c0_96 = arith.constant 0 : index
      %460 = vector.load %arg9[%c5_95, %c0_96] : memref<8x128xi32, #tpu.memory_space<vmem>>, vector<1x128xi32>
      %cst_97 = arith.constant dense<0xFF800000> : vector<1xf32>
      %461 = vector.multi_reduction <maximumf>, %459, %cst_97 [1] : vector<1x128xf32> to vector<1xf32>
      %462 = vector.shape_cast %461 : vector<1xf32> to vector<1x1xf32>
      %463 = vector.broadcast %462 : vector<1x1xf32> to vector<1x128xf32>
      %464 = arith.cmpf oeq, %459, %463 : vector<1x128xf32>
      %c1073741824_i32_98 = arith.constant 1073741824 : i32
      %465 = vector.broadcast %c1073741824_i32_98 : i32 to vector<1x128xi32>
      %466 = arith.select %464, %460, %465 : vector<1x128xi1>, vector<1x128xi32>
      %cst_99 = arith.constant dense<2147483647> : vector<1xi32>
      %467 = vector.multi_reduction <minsi>, %466, %cst_99 [1] : vector<1x128xi32> to vector<1xi32>
      %468 = vector.shape_cast %467 : vector<1xi32> to vector<1x1xi32>
      %469 = vector.broadcast %468 : vector<1x1xi32> to vector<8x128xi32>
      %470 = arith.cmpi eq, %20, %469 : vector<8x128xi32>
      %cst_100 = arith.constant 5.000000e-01 : f32
      %471 = vector.broadcast %cst_100 : f32 to vector<1x1xf32>
      %472 = arith.cmpf olt, %462, %471 : vector<1x1xf32>
      %473 = vector.broadcast %472 : vector<1x1xi1> to vector<8x128xi1>
      %474 = arith.andi %470, %473 : vector<8x128xi1>
      %475 = vector.broadcast %429 : vector<1x1xi1> to vector<8x128xi1>
      %476 = arith.andi %474, %475 : vector<8x128xi1>
      %477 = arith.ori %401, %476 : vector<8x128xi1>
      %478 = arith.cmpf ogt, %458, %403 : vector<8x128xf32>
      %479 = arith.select %478, %458, %403 : vector<8x128xi1>, vector<8x128xf32>
      %480 = vector.shape_cast %422 : vector<1x1xf32> to vector<1x1xf32>
      %481 = vector.broadcast %480 : vector<1x1xf32> to vector<8x128xf32>
      %482 = arith.select %478, %481, %406 : vector<8x128xi1>, vector<8x128xf32>
      %483 = vector.shape_cast %423 : vector<1x1xf32> to vector<1x1xf32>
      %484 = vector.broadcast %483 : vector<1x1xf32> to vector<8x128xf32>
      %485 = arith.select %478, %484, %409 : vector<8x128xi1>, vector<8x128xf32>
      %486 = vector.shape_cast %424 : vector<1x1xf32> to vector<1x1xf32>
      %487 = vector.broadcast %486 : vector<1x1xf32> to vector<8x128xf32>
      %488 = arith.select %478, %487, %412 : vector<8x128xi1>, vector<8x128xf32>
      %489 = vector.shape_cast %425 : vector<1x1xf32> to vector<1x1xf32>
      %490 = vector.broadcast %489 : vector<1x1xf32> to vector<8x128xf32>
      %491 = arith.select %478, %490, %415 : vector<8x128xi1>, vector<8x128xf32>
      %492 = vector.shape_cast %426 : vector<1x1xf32> to vector<1x1xf32>
      %493 = vector.broadcast %492 : vector<1x1xf32> to vector<8x128xf32>
      %494 = arith.select %478, %493, %418 : vector<8x128xi1>, vector<8x128xf32>
      %495 = vector.shape_cast %427 : vector<1x1xf32> to vector<1x1xf32>
      %496 = vector.broadcast %495 : vector<1x1xf32> to vector<8x128xf32>
      %497 = arith.select %478, %496, %421 : vector<8x128xi1>, vector<8x128xf32>
      %498 = vector.extract_strided_slice %12 {offsets = [6, 0], sizes = [1, 1], strides = [1, 1]} : vector<8x6xf32> to vector<1x1xf32>
      %499 = vector.extract_strided_slice %12 {offsets = [6, 1], sizes = [1, 1], strides = [1, 1]} : vector<8x6xf32> to vector<1x1xf32>
      %500 = vector.extract_strided_slice %12 {offsets = [6, 2], sizes = [1, 1], strides = [1, 1]} : vector<8x6xf32> to vector<1x1xf32>
      %501 = vector.extract_strided_slice %12 {offsets = [6, 3], sizes = [1, 1], strides = [1, 1]} : vector<8x6xf32> to vector<1x1xf32>
      %502 = vector.extract_strided_slice %12 {offsets = [6, 4], sizes = [1, 1], strides = [1, 1]} : vector<8x6xf32> to vector<1x1xf32>
      %503 = vector.extract_strided_slice %12 {offsets = [6, 5], sizes = [1, 1], strides = [1, 1]} : vector<8x6xf32> to vector<1x1xf32>
      %cst_101 = arith.constant -1.000000e+00 : f32
      %504 = vector.broadcast %cst_101 : f32 to vector<1x1xf32>
      %505 = arith.cmpf one, %503, %504 : vector<1x1xf32>
      %506 = vector.broadcast %498 : vector<1x1xf32> to vector<8x128xf32>
      %507 = arith.maximumf %1, %506 : vector<8x128xf32>
      %508 = vector.broadcast %499 : vector<1x1xf32> to vector<8x128xf32>
      %509 = arith.maximumf %3, %508 : vector<8x128xf32>
      %510 = vector.broadcast %500 : vector<1x1xf32> to vector<8x128xf32>
      %511 = arith.minimumf %5, %510 : vector<8x128xf32>
      %512 = vector.broadcast %501 : vector<1x1xf32> to vector<8x128xf32>
      %513 = arith.minimumf %7, %512 : vector<8x128xf32>
      %514 = arith.subf %511, %507 : vector<8x128xf32>
      %cst_102 = arith.constant 0.000000e+00 : f32
      %515 = vector.broadcast %cst_102 : f32 to vector<8x128xf32>
      %516 = arith.maximumf %514, %515 : vector<8x128xf32>
      %517 = arith.subf %513, %509 : vector<8x128xf32>
      %cst_103 = arith.constant 0.000000e+00 : f32
      %518 = vector.broadcast %cst_103 : f32 to vector<8x128xf32>
      %519 = arith.maximumf %517, %518 : vector<8x128xf32>
      %520 = arith.mulf %516, %519 : vector<8x128xf32>
      %521 = arith.subf %500, %498 : vector<1x1xf32>
      %522 = arith.subf %501, %499 : vector<1x1xf32>
      %523 = arith.mulf %521, %522 : vector<1x1xf32>
      %524 = vector.broadcast %523 : vector<1x1xf32> to vector<8x128xf32>
      %525 = arith.addf %10, %524 : vector<8x128xf32>
      %526 = arith.subf %525, %520 : vector<8x128xf32>
      %cst_104 = arith.constant 9.99999993E-9 : f32
      %527 = vector.broadcast %cst_104 : f32 to vector<8x128xf32>
      %528 = arith.addf %526, %527 : vector<8x128xf32>
      %529 = tpu.reciprocal %528 {approx = true} : vector<8x128xf32> -> vector<8x128xf32>
      %530 = arith.mulf %520, %529 : vector<8x128xf32>
      %cst_105 = arith.constant -1.000000e+09 : f32
      %531 = vector.shape_cast %505 : vector<1x1xi1> to vector<1x1xi1>
      %532 = vector.broadcast %531 : vector<1x1xi1> to vector<8x128xi1>
      %533 = vector.broadcast %cst_105 : f32 to vector<8x128xf32>
      %534 = arith.select %532, %530, %533 : vector<8x128xi1>, vector<8x128xf32>
      %c6 = arith.constant 6 : index
      %c0_106 = arith.constant 0 : index
      %535 = vector.load %arg8[%c6, %c0_106] : memref<8x128xf32, #tpu.memory_space<vmem>>, vector<1x128xf32>
      %c6_107 = arith.constant 6 : index
      %c0_108 = arith.constant 0 : index
      %536 = vector.load %arg9[%c6_107, %c0_108] : memref<8x128xi32, #tpu.memory_space<vmem>>, vector<1x128xi32>
      %cst_109 = arith.constant dense<0xFF800000> : vector<1xf32>
      %537 = vector.multi_reduction <maximumf>, %535, %cst_109 [1] : vector<1x128xf32> to vector<1xf32>
      %538 = vector.shape_cast %537 : vector<1xf32> to vector<1x1xf32>
      %539 = vector.broadcast %538 : vector<1x1xf32> to vector<1x128xf32>
      %540 = arith.cmpf oeq, %535, %539 : vector<1x128xf32>
      %c1073741824_i32_110 = arith.constant 1073741824 : i32
      %541 = vector.broadcast %c1073741824_i32_110 : i32 to vector<1x128xi32>
      %542 = arith.select %540, %536, %541 : vector<1x128xi1>, vector<1x128xi32>
      %cst_111 = arith.constant dense<2147483647> : vector<1xi32>
      %543 = vector.multi_reduction <minsi>, %542, %cst_111 [1] : vector<1x128xi32> to vector<1xi32>
      %544 = vector.shape_cast %543 : vector<1xi32> to vector<1x1xi32>
      %545 = vector.broadcast %544 : vector<1x1xi32> to vector<8x128xi32>
      %546 = arith.cmpi eq, %20, %545 : vector<8x128xi32>
      %cst_112 = arith.constant 5.000000e-01 : f32
      %547 = vector.broadcast %cst_112 : f32 to vector<1x1xf32>
      %548 = arith.cmpf olt, %538, %547 : vector<1x1xf32>
      %549 = vector.broadcast %548 : vector<1x1xi1> to vector<8x128xi1>
      %550 = arith.andi %546, %549 : vector<8x128xi1>
      %551 = vector.broadcast %505 : vector<1x1xi1> to vector<8x128xi1>
      %552 = arith.andi %550, %551 : vector<8x128xi1>
      %553 = arith.ori %477, %552 : vector<8x128xi1>
      %554 = arith.cmpf ogt, %534, %479 : vector<8x128xf32>
      %555 = arith.select %554, %534, %479 : vector<8x128xi1>, vector<8x128xf32>
      %556 = vector.shape_cast %498 : vector<1x1xf32> to vector<1x1xf32>
      %557 = vector.broadcast %556 : vector<1x1xf32> to vector<8x128xf32>
      %558 = arith.select %554, %557, %482 : vector<8x128xi1>, vector<8x128xf32>
      %559 = vector.shape_cast %499 : vector<1x1xf32> to vector<1x1xf32>
      %560 = vector.broadcast %559 : vector<1x1xf32> to vector<8x128xf32>
      %561 = arith.select %554, %560, %485 : vector<8x128xi1>, vector<8x128xf32>
      %562 = vector.shape_cast %500 : vector<1x1xf32> to vector<1x1xf32>
      %563 = vector.broadcast %562 : vector<1x1xf32> to vector<8x128xf32>
      %564 = arith.select %554, %563, %488 : vector<8x128xi1>, vector<8x128xf32>
      %565 = vector.shape_cast %501 : vector<1x1xf32> to vector<1x1xf32>
      %566 = vector.broadcast %565 : vector<1x1xf32> to vector<8x128xf32>
      %567 = arith.select %554, %566, %491 : vector<8x128xi1>, vector<8x128xf32>
      %568 = vector.shape_cast %502 : vector<1x1xf32> to vector<1x1xf32>
      %569 = vector.broadcast %568 : vector<1x1xf32> to vector<8x128xf32>
      %570 = arith.select %554, %569, %494 : vector<8x128xi1>, vector<8x128xf32>
      %571 = vector.shape_cast %503 : vector<1x1xf32> to vector<1x1xf32>
      %572 = vector.broadcast %571 : vector<1x1xf32> to vector<8x128xf32>
      %573 = arith.select %554, %572, %497 : vector<8x128xi1>, vector<8x128xf32>
      %574 = vector.extract_strided_slice %12 {offsets = [7, 0], sizes = [1, 1], strides = [1, 1]} : vector<8x6xf32> to vector<1x1xf32>
      %575 = vector.extract_strided_slice %12 {offsets = [7, 1], sizes = [1, 1], strides = [1, 1]} : vector<8x6xf32> to vector<1x1xf32>
      %576 = vector.extract_strided_slice %12 {offsets = [7, 2], sizes = [1, 1], strides = [1, 1]} : vector<8x6xf32> to vector<1x1xf32>
      %577 = vector.extract_strided_slice %12 {offsets = [7, 3], sizes = [1, 1], strides = [1, 1]} : vector<8x6xf32> to vector<1x1xf32>
      %578 = vector.extract_strided_slice %12 {offsets = [7, 4], sizes = [1, 1], strides = [1, 1]} : vector<8x6xf32> to vector<1x1xf32>
      %579 = vector.extract_strided_slice %12 {offsets = [7, 5], sizes = [1, 1], strides = [1, 1]} : vector<8x6xf32> to vector<1x1xf32>
      %cst_113 = arith.constant -1.000000e+00 : f32
      %580 = vector.broadcast %cst_113 : f32 to vector<1x1xf32>
      %581 = arith.cmpf one, %579, %580 : vector<1x1xf32>
      %582 = vector.broadcast %574 : vector<1x1xf32> to vector<8x128xf32>
      %583 = arith.maximumf %1, %582 : vector<8x128xf32>
      %584 = vector.broadcast %575 : vector<1x1xf32> to vector<8x128xf32>
      %585 = arith.maximumf %3, %584 : vector<8x128xf32>
      %586 = vector.broadcast %576 : vector<1x1xf32> to vector<8x128xf32>
      %587 = arith.minimumf %5, %586 : vector<8x128xf32>
      %588 = vector.broadcast %577 : vector<1x1xf32> to vector<8x128xf32>
      %589 = arith.minimumf %7, %588 : vector<8x128xf32>
      %590 = arith.subf %587, %583 : vector<8x128xf32>
      %cst_114 = arith.constant 0.000000e+00 : f32
      %591 = vector.broadcast %cst_114 : f32 to vector<8x128xf32>
      %592 = arith.maximumf %590, %591 : vector<8x128xf32>
      %593 = arith.subf %589, %585 : vector<8x128xf32>
      %cst_115 = arith.constant 0.000000e+00 : f32
      %594 = vector.broadcast %cst_115 : f32 to vector<8x128xf32>
      %595 = arith.maximumf %593, %594 : vector<8x128xf32>
      %596 = arith.mulf %592, %595 : vector<8x128xf32>
      %597 = arith.subf %576, %574 : vector<1x1xf32>
      %598 = arith.subf %577, %575 : vector<1x1xf32>
      %599 = arith.mulf %597, %598 : vector<1x1xf32>
      %600 = vector.broadcast %599 : vector<1x1xf32> to vector<8x128xf32>
      %601 = arith.addf %10, %600 : vector<8x128xf32>
      %602 = arith.subf %601, %596 : vector<8x128xf32>
      %cst_116 = arith.constant 9.99999993E-9 : f32
      %603 = vector.broadcast %cst_116 : f32 to vector<8x128xf32>
      %604 = arith.addf %602, %603 : vector<8x128xf32>
      %605 = tpu.reciprocal %604 {approx = true} : vector<8x128xf32> -> vector<8x128xf32>
      %606 = arith.mulf %596, %605 : vector<8x128xf32>
      %cst_117 = arith.constant -1.000000e+09 : f32
      %607 = vector.shape_cast %581 : vector<1x1xi1> to vector<1x1xi1>
      %608 = vector.broadcast %607 : vector<1x1xi1> to vector<8x128xi1>
      %609 = vector.broadcast %cst_117 : f32 to vector<8x128xf32>
      %610 = arith.select %608, %606, %609 : vector<8x128xi1>, vector<8x128xf32>
      %c7 = arith.constant 7 : index
      %c0_118 = arith.constant 0 : index
      %611 = vector.load %arg8[%c7, %c0_118] : memref<8x128xf32, #tpu.memory_space<vmem>>, vector<1x128xf32>
      %c7_119 = arith.constant 7 : index
      %c0_120 = arith.constant 0 : index
      %612 = vector.load %arg9[%c7_119, %c0_120] : memref<8x128xi32, #tpu.memory_space<vmem>>, vector<1x128xi32>
      %cst_121 = arith.constant dense<0xFF800000> : vector<1xf32>
      %613 = vector.multi_reduction <maximumf>, %611, %cst_121 [1] : vector<1x128xf32> to vector<1xf32>
      %614 = vector.shape_cast %613 : vector<1xf32> to vector<1x1xf32>
      %615 = vector.broadcast %614 : vector<1x1xf32> to vector<1x128xf32>
      %616 = arith.cmpf oeq, %611, %615 : vector<1x128xf32>
      %c1073741824_i32_122 = arith.constant 1073741824 : i32
      %617 = vector.broadcast %c1073741824_i32_122 : i32 to vector<1x128xi32>
      %618 = arith.select %616, %612, %617 : vector<1x128xi1>, vector<1x128xi32>
      %cst_123 = arith.constant dense<2147483647> : vector<1xi32>
      %619 = vector.multi_reduction <minsi>, %618, %cst_123 [1] : vector<1x128xi32> to vector<1xi32>
      %620 = vector.shape_cast %619 : vector<1xi32> to vector<1x1xi32>
      %621 = vector.broadcast %620 : vector<1x1xi32> to vector<8x128xi32>
      %622 = arith.cmpi eq, %20, %621 : vector<8x128xi32>
      %cst_124 = arith.constant 5.000000e-01 : f32
      %623 = vector.broadcast %cst_124 : f32 to vector<1x1xf32>
      %624 = arith.cmpf olt, %614, %623 : vector<1x1xf32>
      %625 = vector.broadcast %624 : vector<1x1xi1> to vector<8x128xi1>
      %626 = arith.andi %622, %625 : vector<8x128xi1>
      %627 = vector.broadcast %581 : vector<1x1xi1> to vector<8x128xi1>
      %628 = arith.andi %626, %627 : vector<8x128xi1>
      %629 = arith.ori %553, %628 : vector<8x128xi1>
      %630 = arith.cmpf ogt, %610, %555 : vector<8x128xf32>
      %631 = arith.select %630, %610, %555 : vector<8x128xi1>, vector<8x128xf32>
      %632 = vector.shape_cast %574 : vector<1x1xf32> to vector<1x1xf32>
      %633 = vector.broadcast %632 : vector<1x1xf32> to vector<8x128xf32>
      %634 = arith.select %630, %633, %558 : vector<8x128xi1>, vector<8x128xf32>
      %635 = vector.shape_cast %575 : vector<1x1xf32> to vector<1x1xf32>
      %636 = vector.broadcast %635 : vector<1x1xf32> to vector<8x128xf32>
      %637 = arith.select %630, %636, %561 : vector<8x128xi1>, vector<8x128xf32>
      %638 = vector.shape_cast %576 : vector<1x1xf32> to vector<1x1xf32>
      %639 = vector.broadcast %638 : vector<1x1xf32> to vector<8x128xf32>
      %640 = arith.select %630, %639, %564 : vector<8x128xi1>, vector<8x128xf32>
      %641 = vector.shape_cast %577 : vector<1x1xf32> to vector<1x1xf32>
      %642 = vector.broadcast %641 : vector<1x1xf32> to vector<8x128xf32>
      %643 = arith.select %630, %642, %567 : vector<8x128xi1>, vector<8x128xf32>
      %644 = vector.shape_cast %578 : vector<1x1xf32> to vector<1x1xf32>
      %645 = vector.broadcast %644 : vector<1x1xf32> to vector<8x128xf32>
      %646 = arith.select %630, %645, %570 : vector<8x128xi1>, vector<8x128xf32>
      %647 = vector.shape_cast %579 : vector<1x1xf32> to vector<1x1xf32>
      %648 = vector.broadcast %647 : vector<1x1xf32> to vector<8x128xf32>
      %649 = arith.select %630, %648, %573 : vector<8x128xi1>, vector<8x128xf32>
      %cst_125 = arith.constant 5.000000e-01 : f32
      %650 = vector.broadcast %cst_125 : f32 to vector<8x128xf32>
      %651 = arith.cmpf oge, %631, %650 : vector<8x128xf32>
      %652 = arith.ori %651, %629 : vector<8x128xi1>
      %cst_126 = arith.constant 4.000000e-01 : f32
      %653 = vector.broadcast %cst_126 : f32 to vector<8x128xf32>
      %654 = arith.cmpf olt, %631, %653 : vector<8x128xf32>
      %655 = arith.ori %652, %654 : vector<8x128xi1>
      %656 = arith.andi %652, %22 : vector<8x128xi1>
      %657 = arith.andi %655, %22 : vector<8x128xi1>
      %658 = arith.extui %656 : vector<8x128xi1> to vector<8x128xi32>
      %659 = arith.sitofp %658 : vector<8x128xi32> to vector<8x128xf32>
      %cst_127 = arith.constant 0.000000e+00 : f32
      %660 = vector.broadcast %cst_127 : f32 to vector<8x128xf32>
      %c0_128 = arith.constant 0 : index
      %c0_129 = arith.constant 0 : index
      %c0_130 = arith.constant 0 : index
      %c0_131 = arith.constant 0 : index
      %661 = vector.load %arg3[%c0_128, %c0_129, %c0_130, %c0_131] : memref<1x4x8x128xf32, #tpu.memory_space<vmem>>, vector<1x1x8x128xf32>
      %662 = vector.shape_cast %661 : vector<1x1x8x128xf32> to vector<8x128xf32>
      %cst_132 = arith.constant 9.99999974E-5 : f32
      %cst_133 = arith.constant 0.999899983 : f32
      %663 = vector.broadcast %cst_132 : f32 to vector<8x128xf32>
      %664 = arith.maximumf %663, %662 : vector<8x128xf32>
      %665 = vector.broadcast %cst_133 : f32 to vector<8x128xf32>
      %666 = arith.minimumf %665, %664 : vector<8x128xf32>
      %cst_134 = arith.constant 0.000000e+00 : f32
      %667 = vector.broadcast %cst_134 : f32 to vector<8x128xf32>
      %668 = arith.cmpf oeq, %649, %667 : vector<8x128xf32>
      %669 = arith.andi %656, %668 : vector<8x128xi1>
      %cst_135 = arith.constant 2.500000e-01 : f32
      %cst_136 = arith.constant 7.500000e-01 : f32
      %670 = vector.broadcast %cst_135 : f32 to vector<8x128xf32>
      %671 = vector.broadcast %cst_136 : f32 to vector<8x128xf32>
      %672 = arith.select %669, %670, %671 : vector<8x128xi1>, vector<8x128xf32>
      %cst_137 = arith.constant 1.000000e+00 : f32
      %673 = vector.broadcast %cst_137 : f32 to vector<8x128xf32>
      %674 = arith.subf %673, %666 : vector<8x128xf32>
      %675 = arith.select %669, %674, %666 : vector<8x128xi1>, vector<8x128xf32>
      %cst_138 = arith.constant 1.000000e+00 : f32
      %676 = vector.broadcast %cst_138 : f32 to vector<8x128xf32>
      %677 = arith.subf %676, %675 : vector<8x128xf32>
      %cst_139 = arith.constant 9.99999997E-7 : f32
      %678 = vector.broadcast %cst_139 : f32 to vector<8x128xf32>
      %679 = arith.addf %677, %678 : vector<8x128xf32>
      %680 = math.log %679 : vector<8x128xf32>
      %cst_140 = arith.constant 0.000000e+00 : f32
      %681 = vector.broadcast %cst_140 : f32 to vector<8x128xf32>
      %682 = arith.subf %681, %680 : vector<8x128xf32>
      %683 = arith.mulf %672, %675 : vector<8x128xf32>
      %684 = arith.mulf %683, %675 : vector<8x128xf32>
      %685 = arith.mulf %684, %682 : vector<8x128xf32>
      %cst_141 = arith.constant 0.000000e+00 : f32
      %686 = vector.broadcast %cst_141 : f32 to vector<8x128xf32>
      %687 = arith.select %657, %685, %686 : vector<8x128xi1>, vector<8x128xf32>
      %688 = arith.addf %660, %687 : vector<8x128xf32>
      %c0_142 = arith.constant 0 : index
      %c1_143 = arith.constant 1 : index
      %c0_144 = arith.constant 0 : index
      %c0_145 = arith.constant 0 : index
      %689 = vector.load %arg3[%c0_142, %c1_143, %c0_144, %c0_145] : memref<1x4x8x128xf32, #tpu.memory_space<vmem>>, vector<1x1x8x128xf32>
      %690 = vector.shape_cast %689 : vector<1x1x8x128xf32> to vector<8x128xf32>
      %cst_146 = arith.constant 9.99999974E-5 : f32
      %cst_147 = arith.constant 0.999899983 : f32
      %691 = vector.broadcast %cst_146 : f32 to vector<8x128xf32>
      %692 = arith.maximumf %691, %690 : vector<8x128xf32>
      %693 = vector.broadcast %cst_147 : f32 to vector<8x128xf32>
      %694 = arith.minimumf %693, %692 : vector<8x128xf32>
      %cst_148 = arith.constant 1.000000e+00 : f32
      %695 = vector.broadcast %cst_148 : f32 to vector<8x128xf32>
      %696 = arith.cmpf oeq, %649, %695 : vector<8x128xf32>
      %697 = arith.andi %656, %696 : vector<8x128xi1>
      %cst_149 = arith.constant 2.500000e-01 : f32
      %cst_150 = arith.constant 7.500000e-01 : f32
      %698 = vector.broadcast %cst_149 : f32 to vector<8x128xf32>
      %699 = vector.broadcast %cst_150 : f32 to vector<8x128xf32>
      %700 = arith.select %697, %698, %699 : vector<8x128xi1>, vector<8x128xf32>
      %cst_151 = arith.constant 1.000000e+00 : f32
      %701 = vector.broadcast %cst_151 : f32 to vector<8x128xf32>
      %702 = arith.subf %701, %694 : vector<8x128xf32>
      %703 = arith.select %697, %702, %694 : vector<8x128xi1>, vector<8x128xf32>
      %cst_152 = arith.constant 1.000000e+00 : f32
      %704 = vector.broadcast %cst_152 : f32 to vector<8x128xf32>
      %705 = arith.subf %704, %703 : vector<8x128xf32>
      %cst_153 = arith.constant 9.99999997E-7 : f32
      %706 = vector.broadcast %cst_153 : f32 to vector<8x128xf32>
      %707 = arith.addf %705, %706 : vector<8x128xf32>
      %708 = math.log %707 : vector<8x128xf32>
      %cst_154 = arith.constant 0.000000e+00 : f32
      %709 = vector.broadcast %cst_154 : f32 to vector<8x128xf32>
      %710 = arith.subf %709, %708 : vector<8x128xf32>
      %711 = arith.mulf %700, %703 : vector<8x128xf32>
      %712 = arith.mulf %711, %703 : vector<8x128xf32>
      %713 = arith.mulf %712, %710 : vector<8x128xf32>
      %cst_155 = arith.constant 0.000000e+00 : f32
      %714 = vector.broadcast %cst_155 : f32 to vector<8x128xf32>
      %715 = arith.select %657, %713, %714 : vector<8x128xi1>, vector<8x128xf32>
      %716 = arith.addf %688, %715 : vector<8x128xf32>
      %c0_156 = arith.constant 0 : index
      %c2_157 = arith.constant 2 : index
      %c0_158 = arith.constant 0 : index
      %c0_159 = arith.constant 0 : index
      %717 = vector.load %arg3[%c0_156, %c2_157, %c0_158, %c0_159] : memref<1x4x8x128xf32, #tpu.memory_space<vmem>>, vector<1x1x8x128xf32>
      %718 = vector.shape_cast %717 : vector<1x1x8x128xf32> to vector<8x128xf32>
      %cst_160 = arith.constant 9.99999974E-5 : f32
      %cst_161 = arith.constant 0.999899983 : f32
      %719 = vector.broadcast %cst_160 : f32 to vector<8x128xf32>
      %720 = arith.maximumf %719, %718 : vector<8x128xf32>
      %721 = vector.broadcast %cst_161 : f32 to vector<8x128xf32>
      %722 = arith.minimumf %721, %720 : vector<8x128xf32>
      %cst_162 = arith.constant 2.000000e+00 : f32
      %723 = vector.broadcast %cst_162 : f32 to vector<8x128xf32>
      %724 = arith.cmpf oeq, %649, %723 : vector<8x128xf32>
      %725 = arith.andi %656, %724 : vector<8x128xi1>
      %cst_163 = arith.constant 2.500000e-01 : f32
      %cst_164 = arith.constant 7.500000e-01 : f32
      %726 = vector.broadcast %cst_163 : f32 to vector<8x128xf32>
      %727 = vector.broadcast %cst_164 : f32 to vector<8x128xf32>
      %728 = arith.select %725, %726, %727 : vector<8x128xi1>, vector<8x128xf32>
      %cst_165 = arith.constant 1.000000e+00 : f32
      %729 = vector.broadcast %cst_165 : f32 to vector<8x128xf32>
      %730 = arith.subf %729, %722 : vector<8x128xf32>
      %731 = arith.select %725, %730, %722 : vector<8x128xi1>, vector<8x128xf32>
      %cst_166 = arith.constant 1.000000e+00 : f32
      %732 = vector.broadcast %cst_166 : f32 to vector<8x128xf32>
      %733 = arith.subf %732, %731 : vector<8x128xf32>
      %cst_167 = arith.constant 9.99999997E-7 : f32
      %734 = vector.broadcast %cst_167 : f32 to vector<8x128xf32>
      %735 = arith.addf %733, %734 : vector<8x128xf32>
      %736 = math.log %735 : vector<8x128xf32>
      %cst_168 = arith.constant 0.000000e+00 : f32
      %737 = vector.broadcast %cst_168 : f32 to vector<8x128xf32>
      %738 = arith.subf %737, %736 : vector<8x128xf32>
      %739 = arith.mulf %728, %731 : vector<8x128xf32>
      %740 = arith.mulf %739, %731 : vector<8x128xf32>
      %741 = arith.mulf %740, %738 : vector<8x128xf32>
      %cst_169 = arith.constant 0.000000e+00 : f32
      %742 = vector.broadcast %cst_169 : f32 to vector<8x128xf32>
      %743 = arith.select %657, %741, %742 : vector<8x128xi1>, vector<8x128xf32>
      %744 = arith.addf %716, %743 : vector<8x128xf32>
      %c0_170 = arith.constant 0 : index
      %c3_171 = arith.constant 3 : index
      %c0_172 = arith.constant 0 : index
      %c0_173 = arith.constant 0 : index
      %745 = vector.load %arg3[%c0_170, %c3_171, %c0_172, %c0_173] : memref<1x4x8x128xf32, #tpu.memory_space<vmem>>, vector<1x1x8x128xf32>
      %746 = vector.shape_cast %745 : vector<1x1x8x128xf32> to vector<8x128xf32>
      %cst_174 = arith.constant 9.99999974E-5 : f32
      %cst_175 = arith.constant 0.999899983 : f32
      %747 = vector.broadcast %cst_174 : f32 to vector<8x128xf32>
      %748 = arith.maximumf %747, %746 : vector<8x128xf32>
      %749 = vector.broadcast %cst_175 : f32 to vector<8x128xf32>
      %750 = arith.minimumf %749, %748 : vector<8x128xf32>
      %cst_176 = arith.constant 3.000000e+00 : f32
      %751 = vector.broadcast %cst_176 : f32 to vector<8x128xf32>
      %752 = arith.cmpf oeq, %649, %751 : vector<8x128xf32>
      %753 = arith.andi %656, %752 : vector<8x128xi1>
      %cst_177 = arith.constant 2.500000e-01 : f32
      %cst_178 = arith.constant 7.500000e-01 : f32
      %754 = vector.broadcast %cst_177 : f32 to vector<8x128xf32>
      %755 = vector.broadcast %cst_178 : f32 to vector<8x128xf32>
      %756 = arith.select %753, %754, %755 : vector<8x128xi1>, vector<8x128xf32>
      %cst_179 = arith.constant 1.000000e+00 : f32
      %757 = vector.broadcast %cst_179 : f32 to vector<8x128xf32>
      %758 = arith.subf %757, %750 : vector<8x128xf32>
      %759 = arith.select %753, %758, %750 : vector<8x128xi1>, vector<8x128xf32>
      %cst_180 = arith.constant 1.000000e+00 : f32
      %760 = vector.broadcast %cst_180 : f32 to vector<8x128xf32>
      %761 = arith.subf %760, %759 : vector<8x128xf32>
      %cst_181 = arith.constant 9.99999997E-7 : f32
      %762 = vector.broadcast %cst_181 : f32 to vector<8x128xf32>
      %763 = arith.addf %761, %762 : vector<8x128xf32>
      %764 = math.log %763 : vector<8x128xf32>
      %cst_182 = arith.constant 0.000000e+00 : f32
      %765 = vector.broadcast %cst_182 : f32 to vector<8x128xf32>
      %766 = arith.subf %765, %764 : vector<8x128xf32>
      %767 = arith.mulf %756, %759 : vector<8x128xf32>
      %768 = arith.mulf %767, %759 : vector<8x128xf32>
      %769 = arith.mulf %768, %766 : vector<8x128xf32>
      %cst_183 = arith.constant 0.000000e+00 : f32
      %770 = vector.broadcast %cst_183 : f32 to vector<8x128xf32>
      %771 = arith.select %657, %769, %770 : vector<8x128xi1>, vector<8x128xf32>
      %772 = arith.addf %744, %771 : vector<8x128xf32>
      %c0_184 = arith.constant 0 : index
      %c4_185 = arith.constant 4 : index
      %c0_186 = arith.constant 0 : index
      %c0_187 = arith.constant 0 : index
      %773 = vector.load %arg5[%c0_184, %c4_185, %c0_186, %c0_187] : memref<1x5x8x128xf32, #tpu.memory_space<vmem>>, vector<1x1x8x128xf32>
      %774 = vector.shape_cast %773 : vector<1x1x8x128xf32> to vector<8x128xf32>
      %775 = arith.subf %5, %1 : vector<8x128xf32>
      %cst_188 = arith.constant 1.000000e-03 : f32
      %776 = vector.broadcast %cst_188 : f32 to vector<8x128xf32>
      %777 = arith.maximumf %775, %776 : vector<8x128xf32>
      %778 = arith.subf %7, %3 : vector<8x128xf32>
      %cst_189 = arith.constant 1.000000e-03 : f32
      %779 = vector.broadcast %cst_189 : f32 to vector<8x128xf32>
      %780 = arith.maximumf %778, %779 : vector<8x128xf32>
      %781 = tpu.reciprocal %777 {approx = true} : vector<8x128xf32> -> vector<8x128xf32>
      %782 = tpu.reciprocal %780 {approx = true} : vector<8x128xf32> -> vector<8x128xf32>
      %cst_190 = arith.constant 5.000000e-01 : f32
      %783 = vector.broadcast %cst_190 : f32 to vector<8x128xf32>
      %784 = arith.mulf %783, %777 : vector<8x128xf32>
      %785 = arith.addf %1, %784 : vector<8x128xf32>
      %cst_191 = arith.constant 5.000000e-01 : f32
      %786 = vector.broadcast %cst_191 : f32 to vector<8x128xf32>
      %787 = arith.mulf %786, %780 : vector<8x128xf32>
      %788 = arith.addf %3, %787 : vector<8x128xf32>
      %789 = arith.subf %640, %634 : vector<8x128xf32>
      %cst_192 = arith.constant 1.000000e-03 : f32
      %790 = vector.broadcast %cst_192 : f32 to vector<8x128xf32>
      %791 = arith.maximumf %789, %790 : vector<8x128xf32>
      %792 = arith.subf %643, %637 : vector<8x128xf32>
      %cst_193 = arith.constant 1.000000e-03 : f32
      %793 = vector.broadcast %cst_193 : f32 to vector<8x128xf32>
      %794 = arith.maximumf %792, %793 : vector<8x128xf32>
      %cst_194 = arith.constant 5.000000e-01 : f32
      %795 = vector.broadcast %cst_194 : f32 to vector<8x128xf32>
      %796 = arith.mulf %795, %791 : vector<8x128xf32>
      %797 = arith.addf %634, %796 : vector<8x128xf32>
      %cst_195 = arith.constant 5.000000e-01 : f32
      %798 = vector.broadcast %cst_195 : f32 to vector<8x128xf32>
      %799 = arith.mulf %798, %794 : vector<8x128xf32>
      %800 = arith.addf %637, %799 : vector<8x128xf32>
      %801 = arith.subf %797, %785 : vector<8x128xf32>
      %802 = arith.mulf %801, %781 : vector<8x128xf32>
      %803 = arith.subf %800, %788 : vector<8x128xf32>
      %804 = arith.mulf %803, %782 : vector<8x128xf32>
      %805 = arith.mulf %791, %781 : vector<8x128xf32>
      %806 = math.log %805 : vector<8x128xf32>
      %807 = arith.mulf %794, %782 : vector<8x128xf32>
      %808 = math.log %807 : vector<8x128xf32>
      %809 = arith.subf %646, %774 : vector<8x128xf32>
      %cst_196 = arith.constant 0.0174532924 : f32
      %810 = vector.broadcast %cst_196 : f32 to vector<8x128xf32>
      %811 = arith.mulf %809, %810 : vector<8x128xf32>
      %cst_197 = arith.constant 0.000000e+00 : f32
      %812 = vector.broadcast %cst_197 : f32 to vector<8x128xf32>
      %c0_198 = arith.constant 0 : index
      %c0_199 = arith.constant 0 : index
      %c0_200 = arith.constant 0 : index
      %c0_201 = arith.constant 0 : index
      %813 = vector.load %arg4[%c0_198, %c0_199, %c0_200, %c0_201] : memref<1x5x8x128xf32, #tpu.memory_space<vmem>>, vector<1x1x8x128xf32>
      %814 = vector.shape_cast %813 : vector<1x1x8x128xf32> to vector<8x128xf32>
      %815 = arith.subf %814, %802 : vector<8x128xf32>
      %816 = math.absf %815 : vector<8x128xf32>
      %cst_202 = arith.constant 0.111111112 : f32
      %817 = vector.broadcast %cst_202 : f32 to vector<8x128xf32>
      %818 = arith.cmpf olt, %816, %817 : vector<8x128xf32>
      %cst_203 = arith.constant 4.500000e+00 : f32
      %819 = vector.broadcast %cst_203 : f32 to vector<8x128xf32>
      %820 = arith.mulf %819, %816 : vector<8x128xf32>
      %821 = arith.mulf %820, %816 : vector<8x128xf32>
      %cst_204 = arith.constant 0.055555556 : f32
      %822 = vector.broadcast %cst_204 : f32 to vector<8x128xf32>
      %823 = arith.subf %816, %822 : vector<8x128xf32>
      %824 = arith.select %818, %821, %823 : vector<8x128xi1>, vector<8x128xf32>
      %825 = arith.addf %812, %824 : vector<8x128xf32>
      %c0_205 = arith.constant 0 : index
      %c1_206 = arith.constant 1 : index
      %c0_207 = arith.constant 0 : index
      %c0_208 = arith.constant 0 : index
      %826 = vector.load %arg4[%c0_205, %c1_206, %c0_207, %c0_208] : memref<1x5x8x128xf32, #tpu.memory_space<vmem>>, vector<1x1x8x128xf32>
      %827 = vector.shape_cast %826 : vector<1x1x8x128xf32> to vector<8x128xf32>
      %828 = arith.subf %827, %804 : vector<8x128xf32>
      %829 = math.absf %828 : vector<8x128xf32>
      %cst_209 = arith.constant 0.111111112 : f32
      %830 = vector.broadcast %cst_209 : f32 to vector<8x128xf32>
      %831 = arith.cmpf olt, %829, %830 : vector<8x128xf32>
      %cst_210 = arith.constant 4.500000e+00 : f32
      %832 = vector.broadcast %cst_210 : f32 to vector<8x128xf32>
      %833 = arith.mulf %832, %829 : vector<8x128xf32>
      %834 = arith.mulf %833, %829 : vector<8x128xf32>
      %cst_211 = arith.constant 0.055555556 : f32
      %835 = vector.broadcast %cst_211 : f32 to vector<8x128xf32>
      %836 = arith.subf %829, %835 : vector<8x128xf32>
      %837 = arith.select %831, %834, %836 : vector<8x128xi1>, vector<8x128xf32>
      %838 = arith.addf %825, %837 : vector<8x128xf32>
      %c0_212 = arith.constant 0 : index
      %c2_213 = arith.constant 2 : index
      %c0_214 = arith.constant 0 : index
      %c0_215 = arith.constant 0 : index
      %839 = vector.load %arg4[%c0_212, %c2_213, %c0_214, %c0_215] : memref<1x5x8x128xf32, #tpu.memory_space<vmem>>, vector<1x1x8x128xf32>
      %840 = vector.shape_cast %839 : vector<1x1x8x128xf32> to vector<8x128xf32>
      %841 = arith.subf %840, %806 : vector<8x128xf32>
      %842 = math.absf %841 : vector<8x128xf32>
      %cst_216 = arith.constant 0.111111112 : f32
      %843 = vector.broadcast %cst_216 : f32 to vector<8x128xf32>
      %844 = arith.cmpf olt, %842, %843 : vector<8x128xf32>
      %cst_217 = arith.constant 4.500000e+00 : f32
      %845 = vector.broadcast %cst_217 : f32 to vector<8x128xf32>
      %846 = arith.mulf %845, %842 : vector<8x128xf32>
      %847 = arith.mulf %846, %842 : vector<8x128xf32>
      %cst_218 = arith.constant 0.055555556 : f32
      %848 = vector.broadcast %cst_218 : f32 to vector<8x128xf32>
      %849 = arith.subf %842, %848 : vector<8x128xf32>
      %850 = arith.select %844, %847, %849 : vector<8x128xi1>, vector<8x128xf32>
      %851 = arith.addf %838, %850 : vector<8x128xf32>
      %c0_219 = arith.constant 0 : index
      %c3_220 = arith.constant 3 : index
      %c0_221 = arith.constant 0 : index
      %c0_222 = arith.constant 0 : index
      %852 = vector.load %arg4[%c0_219, %c3_220, %c0_221, %c0_222] : memref<1x5x8x128xf32, #tpu.memory_space<vmem>>, vector<1x1x8x128xf32>
      %853 = vector.shape_cast %852 : vector<1x1x8x128xf32> to vector<8x128xf32>
      %854 = arith.subf %853, %808 : vector<8x128xf32>
      %855 = math.absf %854 : vector<8x128xf32>
      %cst_223 = arith.constant 0.111111112 : f32
      %856 = vector.broadcast %cst_223 : f32 to vector<8x128xf32>
      %857 = arith.cmpf olt, %855, %856 : vector<8x128xf32>
      %cst_224 = arith.constant 4.500000e+00 : f32
      %858 = vector.broadcast %cst_224 : f32 to vector<8x128xf32>
      %859 = arith.mulf %858, %855 : vector<8x128xf32>
      %860 = arith.mulf %859, %855 : vector<8x128xf32>
      %cst_225 = arith.constant 0.055555556 : f32
      %861 = vector.broadcast %cst_225 : f32 to vector<8x128xf32>
      %862 = arith.subf %855, %861 : vector<8x128xf32>
      %863 = arith.select %857, %860, %862 : vector<8x128xi1>, vector<8x128xf32>
      %864 = arith.addf %851, %863 : vector<8x128xf32>
      %c0_226 = arith.constant 0 : index
      %c4_227 = arith.constant 4 : index
      %c0_228 = arith.constant 0 : index
      %c0_229 = arith.constant 0 : index
      %865 = vector.load %arg4[%c0_226, %c4_227, %c0_228, %c0_229] : memref<1x5x8x128xf32, #tpu.memory_space<vmem>>, vector<1x1x8x128xf32>
      %866 = vector.shape_cast %865 : vector<1x1x8x128xf32> to vector<8x128xf32>
      %867 = arith.subf %866, %811 : vector<8x128xf32>
      %868 = math.absf %867 : vector<8x128xf32>
      %cst_230 = arith.constant 0.111111112 : f32
      %869 = vector.broadcast %cst_230 : f32 to vector<8x128xf32>
      %870 = arith.cmpf olt, %868, %869 : vector<8x128xf32>
      %cst_231 = arith.constant 4.500000e+00 : f32
      %871 = vector.broadcast %cst_231 : f32 to vector<8x128xf32>
      %872 = arith.mulf %871, %868 : vector<8x128xf32>
      %873 = arith.mulf %872, %868 : vector<8x128xf32>
      %cst_232 = arith.constant 0.055555556 : f32
      %874 = vector.broadcast %cst_232 : f32 to vector<8x128xf32>
      %875 = arith.subf %868, %874 : vector<8x128xf32>
      %876 = arith.select %870, %873, %875 : vector<8x128xi1>, vector<8x128xf32>
      %877 = arith.addf %864, %876 : vector<8x128xf32>
      %878 = arith.mulf %877, %659 : vector<8x128xf32>
      %c0_233 = arith.constant 0 : index
      %c0_234 = arith.constant 0 : index
      %c0_235 = arith.constant 0 : index
      %879 = vector.load %arg10[%c0_233, %c0_234, %c0_235] : memref<3x8x128xf32, #tpu.memory_space<vmem>>, vector<1x8x128xf32>
      %880 = vector.shape_cast %879 : vector<1x8x128xf32> to vector<8x128xf32>
      %881 = arith.addf %880, %772 : vector<8x128xf32>
      %c0_236 = arith.constant 0 : index
      %c0_237 = arith.constant 0 : index
      %c0_238 = arith.constant 0 : index
      %882 = vector.load %arg10[%c0_236, %c0_237, %c0_238] : memref<3x8x128xf32, #tpu.memory_space<vmem>>, vector<1x8x128xf32>
      %883 = vector.shape_cast %882 : vector<1x8x128xf32> to vector<8x128xf32>
      %884 = vector.shape_cast %881 : vector<8x128xf32> to vector<1x8x128xf32>
      tpu.vector_store %arg10[%c0_236, %c0_237, %c0_238], %884 {strides = array<i32>} : memref<3x8x128xf32, #tpu.memory_space<vmem>>, vector<1x8x128xf32>,
      %c1_239 = arith.constant 1 : index
      %c0_240 = arith.constant 0 : index
      %c0_241 = arith.constant 0 : index
      %885 = vector.load %arg10[%c1_239, %c0_240, %c0_241] : memref<3x8x128xf32, #tpu.memory_space<vmem>>, vector<1x8x128xf32>
      %886 = vector.shape_cast %885 : vector<1x8x128xf32> to vector<8x128xf32>
      %887 = arith.addf %886, %878 : vector<8x128xf32>
      %c1_242 = arith.constant 1 : index
      %c0_243 = arith.constant 0 : index
      %c0_244 = arith.constant 0 : index
      %888 = vector.load %arg10[%c1_242, %c0_243, %c0_244] : memref<3x8x128xf32, #tpu.memory_space<vmem>>, vector<1x8x128xf32>
      %889 = vector.shape_cast %888 : vector<1x8x128xf32> to vector<8x128xf32>
      %890 = vector.shape_cast %887 : vector<8x128xf32> to vector<1x8x128xf32>
      tpu.vector_store %arg10[%c1_242, %c0_243, %c0_244], %890 {strides = array<i32>} : memref<3x8x128xf32, #tpu.memory_space<vmem>>, vector<1x8x128xf32>,
      %c2_245 = arith.constant 2 : index
      %c0_246 = arith.constant 0 : index
      %c0_247 = arith.constant 0 : index
      %891 = vector.load %arg10[%c2_245, %c0_246, %c0_247] : memref<3x8x128xf32, #tpu.memory_space<vmem>>, vector<1x8x128xf32>
      %892 = vector.shape_cast %891 : vector<1x8x128xf32> to vector<8x128xf32>
      %893 = arith.addf %892, %659 : vector<8x128xf32>
      %c2_248 = arith.constant 2 : index
      %c0_249 = arith.constant 0 : index
      %c0_250 = arith.constant 0 : index
      %894 = vector.load %arg10[%c2_248, %c0_249, %c0_250] : memref<3x8x128xf32, #tpu.memory_space<vmem>>, vector<1x8x128xf32>
      %895 = vector.shape_cast %894 : vector<1x8x128xf32> to vector<8x128xf32>
      %896 = vector.shape_cast %893 : vector<8x128xf32> to vector<1x8x128xf32>
      tpu.vector_store %arg10[%c2_248, %c0_249, %c0_250], %896 {strides = array<i32>} : memref<3x8x128xf32, #tpu.memory_space<vmem>>, vector<1x8x128xf32>,
      %c1_i32_251 = arith.constant 1 : i32
      %897 = arith.cmpi eq, %arg2, %c1_i32_251 : i32
      %898 = arith.extui %897 : i1 to i32
      %c0_i32_252 = arith.constant 0 : i32
      %899 = arith.cmpi ne, %898, %c0_i32_252 : i32
      scf.if %899 {
        %900 = vector.extract_strided_slice %12 {offsets = [0, 5], sizes = [8, 1], strides = [1, 1]} : vector<8x6xf32> to vector<8x1xf32>
        %cst_253 = arith.constant -1.000000e+00 : f32
        %901 = vector.broadcast %cst_253 : f32 to vector<8x1xf32>
        %902 = arith.cmpf one, %900, %901 : vector<8x1xf32>
        %903 = arith.extui %902 : vector<8x1xi1> to vector<8x1xi32>
        %904 = arith.sitofp %903 : vector<8x1xi32> to vector<8x1xf32>
        %905 = vector.shape_cast %904 : vector<8x1xf32> to vector<1x8x1xf32>
        %cst_254 = arith.constant dense<0.000000e+00> : vector<1xf32>
        %906 = vector.multi_reduction <add>, %905, %cst_254 [1, 2] : vector<1x8x1xf32> to vector<1xf32>
        %907 = vector.shape_cast %906 : vector<1xf32> to vector<1x1x1xf32>
        %908 = vector.extract %907[0, 0, 0] : f32 from vector<1x1x1xf32>
        %c0_255 = arith.constant 0 : index
        %c0_256 = arith.constant 0 : index
        %c0_257 = arith.constant 0 : index
        %909 = vector.load %arg10[%c0_255, %c0_256, %c0_257] : memref<3x8x128xf32, #tpu.memory_space<vmem>>, vector<1x8x128xf32>
        %910 = vector.shape_cast %909 : vector<1x8x128xf32> to vector<8x128xf32>
        %911 = vector.shape_cast %910 : vector<8x128xf32> to vector<1x8x128xf32>
        %cst_258 = arith.constant dense<0.000000e+00> : vector<1xf32>
        %912 = vector.multi_reduction <add>, %911, %cst_258 [1, 2] : vector<1x8x128xf32> to vector<1xf32>
        %913 = vector.shape_cast %912 : vector<1xf32> to vector<1x1x1xf32>
        %914 = vector.extract %913[0, 0, 0] : f32 from vector<1x1x1xf32>
        %c1_259 = arith.constant 1 : index
        %c0_260 = arith.constant 0 : index
        %c0_261 = arith.constant 0 : index
        %915 = vector.load %arg10[%c1_259, %c0_260, %c0_261] : memref<3x8x128xf32, #tpu.memory_space<vmem>>, vector<1x8x128xf32>
        %916 = vector.shape_cast %915 : vector<1x8x128xf32> to vector<8x128xf32>
        %917 = vector.shape_cast %916 : vector<8x128xf32> to vector<1x8x128xf32>
        %cst_262 = arith.constant dense<0.000000e+00> : vector<1xf32>
        %918 = vector.multi_reduction <add>, %917, %cst_262 [1, 2] : vector<1x8x128xf32> to vector<1xf32>
        %919 = vector.shape_cast %918 : vector<1xf32> to vector<1x1x1xf32>
        %920 = vector.extract %919[0, 0, 0] : f32 from vector<1x1x1xf32>
        %c2_263 = arith.constant 2 : index
        %c0_264 = arith.constant 0 : index
        %c0_265 = arith.constant 0 : index
        %921 = vector.load %arg10[%c2_263, %c0_264, %c0_265] : memref<3x8x128xf32, #tpu.memory_space<vmem>>, vector<1x8x128xf32>
        %922 = vector.shape_cast %921 : vector<1x8x128xf32> to vector<8x128xf32>
        %923 = vector.shape_cast %922 : vector<8x128xf32> to vector<1x8x128xf32>
        %cst_266 = arith.constant dense<0.000000e+00> : vector<1xf32>
        %924 = vector.multi_reduction <add>, %923, %cst_266 [1, 2] : vector<1x8x128xf32> to vector<1xf32>
        %925 = vector.shape_cast %924 : vector<1xf32> to vector<1x1x1xf32>
        %926 = vector.extract %925[0, 0, 0] : f32 from vector<1x1x1xf32>
        %927 = tpu.iota {dimensions = array<i32: 2>} : vector<1x1x4xi32>
        %c0_i32_267 = arith.constant 0 : i32
        %928 = vector.broadcast %c0_i32_267 : i32 to vector<1x1x4xi32>
        %929 = arith.cmpi eq, %927, %928 : vector<1x1x4xi32>
        %cst_268 = arith.constant 0.000000e+00 : f32
        %930 = vector.broadcast %914 : f32 to vector<1x1x4xf32>
        %931 = vector.broadcast %cst_268 : f32 to vector<1x1x4xf32>
        %932 = arith.select %929, %930, %931 : vector<1x1x4xi1>, vector<1x1x4xf32>
        %c1_i32_269 = arith.constant 1 : i32
        %933 = vector.broadcast %c1_i32_269 : i32 to vector<1x1x4xi32>
        %934 = arith.cmpi eq, %927, %933 : vector<1x1x4xi32>
        %cst_270 = arith.constant 0.000000e+00 : f32
        %935 = vector.broadcast %920 : f32 to vector<1x1x4xf32>
        %936 = vector.broadcast %cst_270 : f32 to vector<1x1x4xf32>
        %937 = arith.select %934, %935, %936 : vector<1x1x4xi1>, vector<1x1x4xf32>
        %938 = arith.addf %932, %937 : vector<1x1x4xf32>
        %c2_i32 = arith.constant 2 : i32
        %939 = vector.broadcast %c2_i32 : i32 to vector<1x1x4xi32>
        %940 = arith.cmpi eq, %927, %939 : vector<1x1x4xi32>
        %cst_271 = arith.constant 0.000000e+00 : f32
        %941 = vector.broadcast %926 : f32 to vector<1x1x4xf32>
        %942 = vector.broadcast %cst_271 : f32 to vector<1x1x4xf32>
        %943 = arith.select %940, %941, %942 : vector<1x1x4xi1>, vector<1x1x4xf32>
        %944 = arith.addf %938, %943 : vector<1x1x4xf32>
        %c3_i32 = arith.constant 3 : i32
        %945 = vector.broadcast %c3_i32 : i32 to vector<1x1x4xi32>
        %946 = arith.cmpi eq, %927, %945 : vector<1x1x4xi32>
        %cst_272 = arith.constant 0.000000e+00 : f32
        %947 = vector.broadcast %908 : f32 to vector<1x1x4xf32>
        %948 = vector.broadcast %cst_272 : f32 to vector<1x1x4xf32>
        %949 = arith.select %946, %947, %948 : vector<1x1x4xi1>, vector<1x1x4xf32>
        %950 = arith.addf %944, %949 : vector<1x1x4xf32>
        %c0_273 = arith.constant 0 : index
        %c0_274 = arith.constant 0 : index
        %c0_275 = arith.constant 0 : index
        %951 = vector.load %arg7[%c0_273, %c0_274, %c0_275] : memref<1x1x4xf32, #tpu.memory_space<vmem>>, vector<1x1x4xf32>
        tpu.vector_store %arg7[%c0_273, %c0_274, %c0_275], %950 {strides = array<i32>} : memref<1x1x4xf32, #tpu.memory_space<vmem>>, vector<1x1x4xf32>,
      } else {
      }
    } else {
    }
    return
  }
  func.func @transform_0(%arg0: i32, %arg1: i32, %arg2: i32) -> (i32, i32, i32, i32) {
    %0 = arith.muli %arg2, %arg1 : i32
    %c0_i32 = arith.constant 0 : i32
    %c0_i32_0 = arith.constant 0 : i32
    %c0_i32_1 = arith.constant 0 : i32
    return %arg0, %c0_i32, %0, %c0_i32_0 : i32, i32, i32, i32
  }
  func.func @transform_1(%arg0: i32, %arg1: i32, %arg2: i32) -> (i32, i32, i32, i32) {
    %0 = arith.muli %arg2, %arg1 : i32
    %c0_i32 = arith.constant 0 : i32
    %c0_i32_0 = arith.constant 0 : i32
    %c0_i32_1 = arith.constant 0 : i32
    return %arg0, %c0_i32, %0, %c0_i32_0 : i32, i32, i32, i32
  }
  func.func @transform_2(%arg0: i32, %arg1: i32, %arg2: i32) -> (i32, i32, i32, i32) {
    %c0_i32 = arith.constant 0 : i32
    %c0_i32_0 = arith.constant 0 : i32
    %c0_i32_1 = arith.constant 0 : i32
    return %arg0, %c0_i32, %arg2, %c0_i32_0 : i32, i32, i32, i32
  }
  func.func @transform_3(%arg0: i32, %arg1: i32, %arg2: i32) -> (i32, i32, i32) {
    %c0_i32 = arith.constant 0 : i32
    %c0_i32_0 = arith.constant 0 : i32
    %c0_i32_1 = arith.constant 0 : i32
    return %arg0, %c0_i32, %c0_i32_0 : i32, i32, i32
  }
  func.func @transform_4(%arg0: i32, %arg1: i32, %arg2: i32) -> (i32, i32, i32) {
    %c0_i32 = arith.constant 0 : i32
    %c0_i32_0 = arith.constant 0 : i32
    %c0_i32_1 = arith.constant 0 : i32
    return %arg0, %c0_i32, %c0_i32_0 : i32, i32, i32
  }
}

</mosaic_0001>

<llo_original>
// kernel: integrated_loss.1
$region0: #{integrated_loss.1}
  #allocation0 [shape = 'u32[]', space=smem, size = 0x4, offset = 0x4, fixed_abs, tag = 'smem constant byte address 0x4 - core index']
  #allocation1 [shape = 'u32[72,128]{1,0:T(1,128)}', space=vmem, size = 0x9000, scoped, tag = 'internal scratch']
  #allocation2 [shape = 'f32[8,128]{1,0:T(8,128)}', space=vmem, size = 0x1000, scoped, tag = 'scratch operand']
  #allocation3 [shape = 's32[8,128]{1,0:T(8,128)}', space=vmem, size = 0x1000, scoped, tag = 'scratch operand']
  #allocation4 [shape = 'f32[3,8,128]{2,1,0:T(8,128)}', space=vmem, size = 0x3000, scoped, tag = 'scratch operand']
  %s0 = inlined_call_operand.vmem [shape: f32[2,4,16,128], index: 0, kind: input, shape index: {}]
  %s1 = inlined_call_operand.vmem [shape: f32[2,5,16,128], index: 1, kind: input, shape index: {}]
  %s2 = inlined_call_operand.vmem [shape: f32[2,5,16,128], index: 2, kind: input, shape index: {}]
  %s3 = inlined_call_operand.vmem [shape: f32[2,8,6], index: 3, kind: input, shape index: {}]
  %s4 = inlined_call_operand.vmem [shape: f32[2,1,4], index: 4, kind: output, shape index: {}]
  %s5 = sld [smem:[#allocation0]]
  $region179: #{integrated_loss.1} parent=0
    _
  %s7 = ssub.s32 1, %s5
  %s8 = scalar_select 0, %s7, %s5
  $region1: #{integrated_loss.1} parent=0
    #allocation5 [shape = 'u8[32768]{0}', space=vmem, size = 0x8000, scoped, tag = 'input window, operand 0']
    #allocation6 [shape = 'u8[40960]{0}', space=vmem, size = 0xa000, scoped, tag = 'input window, operand 1']
    #allocation7 [shape = 'u8[40960]{0}', space=vmem, size = 0xa000, scoped, tag = 'input window, operand 2']
    loop: start=0, step=1, limit=10
    $region2: #{integrated_loss.1} parent=1 // loop_pre_header
      _
    $region3: #{integrated_loss.1} parent=1 // loop_header
      %s10 = sphi 0, %s14
      %p11 = scmp.ge.s32.totalorder %s10, 10
      %s17 = sphi 0, %s36
      %s18 = sphi 0, %s32
      %s19 = sphi 0, %s28
      %s20 = sphi 0, %s17
      %s21 = sphi 0, %s18
      %s22 = sphi 0, %s19
      %s23 = sphi 0, %s20
      %s24 = sphi 0, %s21
      %s25 = sphi 0, %s22
      %s43 = sphi 0, %s45
      %s46 = sphi 0, %s43
      %s47 = sphi 0, %s46
      %s63 = sphi 0, %s47
      %s73 = sphi 0, %s75
      %s76 = sphi 0, %s73
      %s77 = sphi 0, %s76
      %s93 = sphi 0, %s77
      %s101 = sphi 0, %s103
      %s104 = sphi 0, %s101
      %s105 = sphi 0, %s104
      %s121 = sphi 0, %s105
      %s127 = sphi 0, %s129
      %s130 = sphi 0, %s127
      %s131 = sphi 0, %s130
      %s147 = sphi 0, %s131
      %s153 = sphi 0, %s155
      %s156 = sphi 0, %s153
      %s157 = sphi 0, %s156
      %s173 = sphi 0, %s157
    $region4: #{integrated_loss.1} parent=1 // loop_header_branch
      %13 = sbr.rel (%p11) target = $region8
    $region5: #{integrated_loss.1} parent=1 // loop_body
      %s15 = ssub.s32 %s10, 1
      %s16 = ssub.s32 %s10, 2
      %s26 = sadd.s32 1, %s19
      %p27 = scmp.ge.s32.totalorder %s26, 2
      %s28 = scalar_select %p27, 0, %s26
      %s29 = sadd.s32 1, %s18
      %s30 = scalar_select %p27, %s29, %s18
      %p31 = scmp.ge.s32.totalorder %s30, 2
      %s32 = scalar_select %p31, 0, %s30
      %s33 = sadd.s32 1, %s17
      %s34 = scalar_select %p31, %s33, %s17
      %p35 = scmp.ge.s32.totalorder %s34, 2
      %s36 = scalar_select %p35, 0, %s34
      %s37 = smul.u32 %s19, %s18
      %s38 = smul.u32 %s28, %s32
      %s39 = ssub.s32 %s17, %s36
      %s40 = ssub.s32 %s37, %s38
      %s41 = sor.u32 %s39, %s40
      %p42 = scmp.eq.s32.totalorder %s41, 0
      %s44 = sadd.s32 %s43, 1
      %s45 = scalar_select %p42, %s43, %s44
      %p48 = pneg %p42
      %p49 = scmp.eq.s32.totalorder %s10, 7
      %p50 = por %p48, %p49
      %p51 = scmp.ne.s32.totalorder %s43, %s46
      %p52 = scmp.eq.s32.totalorder %s10, 0
      %p53 = por %p51, %p52
      %p54 = scmp.ne.s32.totalorder %s43, %s46
      %p55 = scmp.eq.s32.totalorder %s15, 7
      %p56 = por %p54, %p55
      %p57 = scmp.ne.s32.totalorder %s46, %s47
      %p58 = scmp.eq.s32.totalorder %s15, 0
      %p59 = por %p57, %p58
      %p60 = scmp.ne.s32.totalorder %s46, %s47
      %p61 = scmp.eq.s32.totalorder %s16, 7
      %p62 = por %p60, %p61
      %p64 = scmp.ne.s32.totalorder %s47, %s63
      %p65 = scmp.eq.s32.totalorder %s16, 0
      %p66 = por %p64, %p65
      %s67 = smul.u32 %s19, %s18
      %s68 = smul.u32 %s28, %s32
      %s69 = ssub.s32 %s17, %s36
      %s70 = ssub.s32 %s67, %s68
      %s71 = sor.u32 %s69, %s70
      %p72 = scmp.eq.s32.totalorder %s71, 0
      %s74 = sadd.s32 %s73, 1
      %s75 = scalar_select %p72, %s73, %s74
      %p78 = pneg %p72
      %p79 = scmp.eq.s32.totalorder %s10, 7
      %p80 = por %p78, %p79
      %p81 = scmp.ne.s32.totalorder %s73, %s76
      %p82 = scmp.eq.s32.totalorder %s10, 0
      %p83 = por %p81, %p82
      %p84 = scmp.ne.s32.totalorder %s73, %s76
      %p85 = scmp.eq.s32.totalorder %s15, 7
      %p86 = por %p84, %p85
      %p87 = scmp.ne.s32.totalorder %s76, %s77
      %p88 = scmp.eq.s32.totalorder %s15, 0
      %p89 = por %p87, %p88
      %p90 = scmp.ne.s32.totalorder %s76, %s77
      %p91 = scmp.eq.s32.totalorder %s16, 7
      %p92 = por %p90, %p91
      %p94 = scmp.ne.s32.totalorder %s77, %s93
      %p95 = scmp.eq.s32.totalorder %s16, 0
      %p96 = por %p94, %p95
      %s97 = ssub.s32 %s17, %s36
      %s98 = ssub.s32 %s19, %s28
      %s99 = sor.u32 %s97, %s98
      %p100 = scmp.eq.s32.totalorder %s99, 0
      %s102 = sadd.s32 %s101, 1
      %s103 = scalar_select %p100, %s101, %s102
      %p106 = pneg %p100
      %p107 = scmp.eq.s32.totalorder %s10, 7
      %p108 = por %p106, %p107
      %p109 = scmp.ne.s32.totalorder %s101, %s104
      %p110 = scmp.eq.s32.totalorder %s10, 0
      %p111 = por %p109, %p110
      %p112 = scmp.ne.s32.totalorder %s101, %s104
      %p113 = scmp.eq.s32.totalorder %s15, 7
      %p114 = por %p112, %p113
      %p115 = scmp.ne.s32.totalorder %s104, %s105
      %p116 = scmp.eq.s32.totalorder %s15, 0
      %p117 = por %p115, %p116
      %p118 = scmp.ne.s32.totalorder %s104, %s105
      %p119 = scmp.eq.s32.totalorder %s16, 7
      %p120 = por %p118, %p119
      %p122 = scmp.ne.s32.totalorder %s105, %s121
      %p123 = scmp.eq.s32.totalorder %s16, 0
      %p124 = por %p122, %p123
      %s125 = ssub.s32 %s17, %s36
      %p126 = scmp.eq.s32.totalorder %s125, 0
      %s128 = sadd.s32 %s127, 1
      %s129 = scalar_select %p126, %s127, %s128
      %p132 = pneg %p126
      %p133 = scmp.eq.s32.totalorder %s10, 7
      %p134 = por %p132, %p133
      %p135 = scmp.ne.s32.totalorder %s127, %s130
      %p136 = scmp.eq.s32.totalorder %s10, 0
      %p137 = por %p135, %p136
      %p138 = scmp.ne.s32.totalorder %s127, %s130
      %p139 = scmp.eq.s32.totalorder %s15, 7
      %p140 = por %p138, %p139
      %p141 = scmp.ne.s32.totalorder %s130, %s131
      %p142 = scmp.eq.s32.totalorder %s15, 0
      %p143 = por %p141, %p142
      %p144 = scmp.ne.s32.totalorder %s130, %s131
      %p145 = scmp.eq.s32.totalorder %s16, 7
      %p146 = por %p144, %p145
      %p148 = scmp.ne.s32.totalorder %s131, %s147
      %p149 = scmp.eq.s32.totalorder %s16, 0
      %p150 = por %p148, %p149
      %s151 = ssub.s32 %s17, %s36
      %p152 = scmp.eq.s32.totalorder %s151, 0
      %s154 = sadd.s32 %s153, 1
      %s155 = scalar_select %p152, %s153, %s154
      %p158 = pneg %p152
      %p159 = scmp.eq.s32.totalorder %s10, 7
      %p160 = por %p158, %p159
      %p161 = scmp.ne.s32.totalorder %s153, %s156
      %p162 = scmp.eq.s32.totalorder %s10, 0
      %p163 = por %p161, %p162
      %p164 = scmp.ne.s32.totalorder %s153, %s156
      %p165 = scmp.eq.s32.totalorder %s15, 7
      %p166 = por %p164, %p165
      %p167 = scmp.ne.s32.totalorder %s156, %s157
      %p168 = scmp.eq.s32.totalorder %s15, 0
      %p169 = por %p167, %p168
      %p170 = scmp.ne.s32.totalorder %s156, %s157
      %p171 = scmp.eq.s32.totalorder %s16, 7
      %p172 = por %p170, %p171
      %p174 = scmp.ne.s32.totalorder %s157, %s173
      %p175 = scmp.eq.s32.totalorder %s16, 0
      %p176 = por %p174, %p175
      %p177 = scmp.le.s32.totalorder 1, %s10
      %p178 = scmp.lt.s32.totalorder %s10, 9
      %p179 = pnand %p177, %p178
      %p180 = pneg %p179
      // Predicated region
      $region9: #{integrated_loss.1} parent=5 // pred_check
        _
      $region10: #{integrated_loss.1} parent=5 // pred_check_branch
        %182 = sbr.rel (%p179) target = $region12
      $region11: #{integrated_loss.1} parent=5 // pred_region
        %s183 = ssub.s32 %s10, 1
      $region12: #{integrated_loss.1} parent=5 // pred_fallthru
        _
      %p184 = scmp.lt.s32.totalorder %s10, 8
      // Predicated region
      $region13: #{integrated_loss.1} parent=5 // pred_check
        %p185 = pneg %p184
      $region14: #{integrated_loss.1} parent=5 // pred_check_branch
        %187 = sbr.rel (%p185) target = $region16
      $region15: #{integrated_loss.1} parent=5 // pred_region
        // Predicated region
        $region17: #{integrated_loss.1} parent=15 // pred_check
          %p188 = pneg %p53
        $region18: #{integrated_loss.1} parent=15 // pred_check_branch
          %190 = sbr.rel (%p188) target = $region20
        $region19: #{integrated_loss.1} parent=15 // pred_region
          %s191 = sand.u32 %s43, 1
          %s192 = sand.u32 %s43, 1
          %s193 = smul.addr %s192, 32
          %s194 = scalar_lea.vmem [#allocation5], %s193
          %s195 = smul.u32 %s19, %s18
          %s196 = smul.addr %s17, 8
          %s197 = sadd.s32 %s195, %s196
          %s198 = smul.addr %s197, 8
          %s199 = scalar_lea.vmem %s0, %s198
          // Predicated region
          $region21: #{integrated_loss.1} parent=19 // pred_check
            _
          $region22: #{integrated_loss.1} parent=19 // pred_check_branch
            %201 = sbr.rel (0) target = $region24
          $region23: #{integrated_loss.1} parent=19 // pred_region
            // Predicated region
            $region25: #{integrated_loss.1} parent=23 // pred_check
              _
            $region26: #{integrated_loss.1} parent=23 // pred_check_branch
              %203 = sbr.rel (0) target = $region28
            $region27: #{integrated_loss.1} parent=23 // pred_region
              // Predicated region
              $region40: #{integrated_loss.1} parent=27 // pred_check
                _
              $region41: #{integrated_loss.1} parent=27 // pred_check_branch
                %225 = sbr.rel (0) target = $region43
              $region42: #{integrated_loss.1} parent=27 // pred_region
                loop: start=0, step=1, limit=1
                $region44: #{integrated_loss.1} parent=42 // loop_pre_header
                  _
                $region45: #{integrated_loss.1} parent=42 // loop_header
                  %s227 = sphi 0, %s231
                  %p228 = scmp.ge.s32.totalorder %s227, 1
                  %s232 = sphi %s199, %s199
                  %s233 = sphi %s194, %s194
                $region46: #{integrated_loss.1} parent=42 // loop_header_branch
                  %230 = sbr.rel (%p228) target = $region50
                $region47: #{integrated_loss.1} parent=42 // loop_body
                  %v234 = vld [vmem:[%s232] sm:$0xff]
                  %235 = vst [vmem:[%s233] sm:$0xff] %v234
                  %v236 = vld [vmem:[%s232 + $0x10] sm:$0xff]
                  %237 = vst [vmem:[%s233 + $0x8] sm:$0xff] %v236
                  %v238 = vld [vmem:[%s232 + $0x20] sm:$0xff]
                  %239 = vst [vmem:[%s233 + $0x10] sm:$0xff] %v238
                  %v240 = vld [vmem:[%s232 + $0x30] sm:$0xff]
                  %241 = vst [vmem:[%s233 + $0x18] sm:$0xff] %v240
                $region48: #{integrated_loss.1} parent=42 // loop_footer
                  %s231 = sadd.s32 1, %s227
                $region49: #{integrated_loss.1} parent=42 // loop_footer_branch
                  %226 = sbr.rel target = $region45
                $region50: #{integrated_loss.1} parent=42 // loop_exit
                  _
              $region43: #{integrated_loss.1} parent=27 // pred_fallthru
                _
              // Predicated region
              $region51: #{integrated_loss.1} parent=27 // pred_check
                _
              $region52: #{integrated_loss.1} parent=27 // pred_check_branch
                %243 = sbr.rel target = $region54
              $region53: #{integrated_loss.1} parent=27 // pred_region
                _
              $region54: #{integrated_loss.1} parent=27 // pred_fallthru
                _
            $region28: #{integrated_loss.1} parent=23 // pred_fallthru
              _
            // Predicated region
            $region29: #{integrated_loss.1} parent=23 // pred_check
              _
            $region30: #{integrated_loss.1} parent=23 // pred_check_branch
              %205 = sbr.rel target = $region32
            $region31: #{integrated_loss.1} parent=23 // pred_region
              %s207 = ssub.s32 256, 1
              loop: start=0, step=1, limit=1
              $region33: #{integrated_loss.1} parent=31 // loop_pre_header
                _
              $region34: #{integrated_loss.1} parent=31 // loop_header
                %s209 = sphi 0, %s213
                %p210 = scmp.ge.s32.totalorder %s209, 1
                %s214 = sphi %s199, %s199
                %s215 = sphi %s194, %s194
              $region35: #{integrated_loss.1} parent=31 // loop_header_branch
                %212 = sbr.rel (%p210) target = $region39
              $region36: #{integrated_loss.1} parent=31 // loop_body
                %v216 = vld [vmem:[%s214] sm:%s207]
                %217 = vst [vmem:[%s215] sm:%s207] %v216
                %v218 = vld [vmem:[%s214 + $0x10] sm:%s207]
                %219 = vst [vmem:[%s215 + $0x8] sm:%s207] %v218
                %v220 = vld [vmem:[%s214 + $0x20] sm:%s207]
                %221 = vst [vmem:[%s215 + $0x10] sm:%s207] %v220
                %v222 = vld [vmem:[%s214 + $0x30] sm:%s207]
                %223 = vst [vmem:[%s215 + $0x18] sm:%s207] %v222
              $region37: #{integrated_loss.1} parent=31 // loop_footer
                %s213 = sadd.s32 1, %s209
              $region38: #{integrated_loss.1} parent=31 // loop_footer_branch
                %208 = sbr.rel target = $region34
              $region39: #{integrated_loss.1} parent=31 // loop_exit
                _
            $region32: #{integrated_loss.1} parent=23 // pred_fallthru
              _
          $region24: #{integrated_loss.1} parent=19 // pred_fallthru
            _
          %244 = vnop
        $region20: #{integrated_loss.1} parent=15 // pred_fallthru
          _
        // Predicated region
        $region55: #{integrated_loss.1} parent=15 // pred_check
          %p245 = pneg %p83
        $region56: #{integrated_loss.1} parent=15 // pred_check_branch
          %247 = sbr.rel (%p245) target = $region58
        $region57: #{integrated_loss.1} parent=15 // pred_region
          %s248 = sand.u32 %s73, 1
          %s249 = sand.u32 %s73, 1
          %s250 = smul.addr %s249, 40
          %s251 = scalar_lea.vmem [#allocation6], %s250
          %s252 = smul.u32 %s19, %s18
          %s253 = smul.addr %s17, 10
          %s254 = sadd.s32 %s252, %s253
          %s255 = smul.addr %s254, 8
          %s256 = scalar_lea.vmem %s1, %s255
          // Predicated region
          $region59: #{integrated_loss.1} parent=57 // pred_check
            _
          $region60: #{integrated_loss.1} parent=57 // pred_check_branch
            %258 = sbr.rel (0) target = $region62
          $region61: #{integrated_loss.1} parent=57 // pred_region
            // Predicated region
            $region63: #{integrated_loss.1} parent=61 // pred_check
              _
            $region64: #{integrated_loss.1} parent=61 // pred_check_branch
              %260 = sbr.rel (0) target = $region66
            $region65: #{integrated_loss.1} parent=61 // pred_region
              // Predicated region
              $region78: #{integrated_loss.1} parent=65 // pred_check
                _
              $region79: #{integrated_loss.1} parent=65 // pred_check_branch
                %284 = sbr.rel (0) target = $region81
              $region80: #{integrated_loss.1} parent=65 // pred_region
                loop: start=0, step=1, limit=1
                $region82: #{integrated_loss.1} parent=80 // loop_pre_header
                  _
                $region83: #{integrated_loss.1} parent=80 // loop_header
                  %s286 = sphi 0, %s290
                  %p287 = scmp.ge.s32.totalorder %s286, 1
                  %s291 = sphi %s256, %s256
                  %s292 = sphi %s251, %s251
                $region84: #{integrated_loss.1} parent=80 // loop_header_branch
                  %289 = sbr.rel (%p287) target = $region88
                $region85: #{integrated_loss.1} parent=80 // loop_body
                  %v293 = vld [vmem:[%s291] sm:$0xff]
                  %294 = vst [vmem:[%s292] sm:$0xff] %v293
                  %v295 = vld [vmem:[%s291 + $0x10] sm:$0xff]
                  %296 = vst [vmem:[%s292 + $0x8] sm:$0xff] %v295
                  %v297 = vld [vmem:[%s291 + $0x20] sm:$0xff]
                  %298 = vst [vmem:[%s292 + $0x10] sm:$0xff] %v297
                  %v299 = vld [vmem:[%s291 + $0x30] sm:$0xff]
                  %300 = vst [vmem:[%s292 + $0x18] sm:$0xff] %v299
                  %v301 = vld [vmem:[%s291 + $0x40] sm:$0xff]
                  %302 = vst [vmem:[%s292 + $0x20] sm:$0xff] %v301
                $region86: #{integrated_loss.1} parent=80 // loop_footer
                  %s290 = sadd.s32 1, %s286
                $region87: #{integrated_loss.1} parent=80 // loop_footer_branch
                  %285 = sbr.rel target = $region83
                $region88: #{integrated_loss.1} parent=80 // loop_exit
                  _
              $region81: #{integrated_loss.1} parent=65 // pred_fallthru
                _
              // Predicated region
              $region89: #{integrated_loss.1} parent=65 // pred_check
                _
              $region90: #{integrated_loss.1} parent=65 // pred_check_branch
                %304 = sbr.rel target = $region92
              $region91: #{integrated_loss.1} parent=65 // pred_region
                _
              $region92: #{integrated_loss.1} parent=65 // pred_fallthru
                _
            $region66: #{integrated_loss.1} parent=61 // pred_fallthru
              _
            // Predicated region
            $region67: #{integrated_loss.1} parent=61 // pred_check
              _
            $region68: #{integrated_loss.1} parent=61 // pred_check_branch
              %262 = sbr.rel target = $region70
            $region69: #{integrated_loss.1} parent=61 // pred_region
              %s264 = ssub.s32 256, 1
              loop: start=0, step=1, limit=1
              $region71: #{integrated_loss.1} parent=69 // loop_pre_header
                _
              $region72: #{integrated_loss.1} parent=69 // loop_header
                %s266 = sphi 0, %s270
                %p267 = scmp.ge.s32.totalorder %s266, 1
                %s271 = sphi %s256, %s256
                %s272 = sphi %s251, %s251
              $region73: #{integrated_loss.1} parent=69 // loop_header_branch
                %269 = sbr.rel (%p267) target = $region77
              $region74: #{integrated_loss.1} parent=69 // loop_body
                %v273 = vld [vmem:[%s271] sm:%s264]
                %274 = vst [vmem:[%s272] sm:%s264] %v273
                %v275 = vld [vmem:[%s271 + $0x10] sm:%s264]
                %276 = vst [vmem:[%s272 + $0x8] sm:%s264] %v275
                %v277 = vld [vmem:[%s271 + $0x20] sm:%s264]
                %278 = vst [vmem:[%s272 + $0x10] sm:%s264] %v277
                %v279 = vld [vmem:[%s271 + $0x30] sm:%s264]
                %280 = vst [vmem:[%s272 + $0x18] sm:%s264] %v279
                %v281 = vld [vmem:[%s271 + $0x40] sm:%s264]
                %282 = vst [vmem:[%s272 + $0x20] sm:%s264] %v281
              $region75: #{integrated_loss.1} parent=69 // loop_footer
                %s270 = sadd.s32 1, %s266
              $region76: #{integrated_loss.1} parent=69 // loop_footer_branch
                %265 = sbr.rel target = $region72
              $region77: #{integrated_loss.1} parent=69 // loop_exit
                _
            $region70: #{integrated_loss.1} parent=61 // pred_fallthru
              _
          $region62: #{integrated_loss.1} parent=57 // pred_fallthru
            _
          %305 = vnop
        $region58: #{integrated_loss.1} parent=15 // pred_fallthru
          _
        // Predicated region
        $region93: #{integrated_loss.1} parent=15 // pred_check
          %p306 = pneg %p111
        $region94: #{integrated_loss.1} parent=15 // pred_check_branch
          %308 = sbr.rel (%p306) target = $region96
        $region95: #{integrated_loss.1} parent=15 // pred_region
          %s309 = sand.u32 %s101, 1
          %s310 = sand.u32 %s101, 1
          %s311 = smul.addr %s310, 40
          %s312 = scalar_lea.vmem [#allocation7], %s311
          %s313 = smul.addr %s17, 10
          %s314 = sadd.s32 %s19, %s313
          %s315 = smul.addr %s314, 8
          %s316 = scalar_lea.vmem %s2, %s315
          // Predicated region
          $region97: #{integrated_loss.1} parent=95 // pred_check
            _
          $region98: #{integrated_loss.1} parent=95 // pred_check_branch
            %318 = sbr.rel (0) target = $region100
          $region99: #{integrated_loss.1} parent=95 // pred_region
            // Predicated region
            $region101: #{integrated_loss.1} parent=99 // pred_check
              _
            $region102: #{integrated_loss.1} parent=99 // pred_check_branch
              %320 = sbr.rel (0) target = $region104
            $region103: #{integrated_loss.1} parent=99 // pred_region
              // Predicated region
              $region116: #{integrated_loss.1} parent=103 // pred_check
                _
              $region117: #{integrated_loss.1} parent=103 // pred_check_branch
                %344 = sbr.rel (0) target = $region119
              $region118: #{integrated_loss.1} parent=103 // pred_region
                loop: start=0, step=1, limit=1
                $region120: #{integrated_loss.1} parent=118 // loop_pre_header
                  _
                $region121: #{integrated_loss.1} parent=118 // loop_header
                  %s346 = sphi 0, %s350
                  %p347 = scmp.ge.s32.totalorder %s346, 1
                  %s351 = sphi %s316, %s316
                  %s352 = sphi %s312, %s312
                $region122: #{integrated_loss.1} parent=118 // loop_header_branch
                  %349 = sbr.rel (%p347) target = $region126
                $region123: #{integrated_loss.1} parent=118 // loop_body
                  %v353 = vld [vmem:[%s351] sm:$0xff]
                  %354 = vst [vmem:[%s352] sm:$0xff] %v353
                  %v355 = vld [vmem:[%s351 + $0x10] sm:$0xff]
                  %356 = vst [vmem:[%s352 + $0x8] sm:$0xff] %v355
                  %v357 = vld [vmem:[%s351 + $0x20] sm:$0xff]
                  %358 = vst [vmem:[%s352 + $0x10] sm:$0xff] %v357
                  %v359 = vld [vmem:[%s351 + $0x30] sm:$0xff]
                  %360 = vst [vmem:[%s352 + $0x18] sm:$0xff] %v359
                  %v361 = vld [vmem:[%s351 + $0x40] sm:$0xff]
                  %362 = vst [vmem:[%s352 + $0x20] sm:$0xff] %v361
                $region124: #{integrated_loss.1} parent=118 // loop_footer
                  %s350 = sadd.s32 1, %s346
                $region125: #{integrated_loss.1} parent=118 // loop_footer_branch
                  %345 = sbr.rel target = $region121
                $region126: #{integrated_loss.1} parent=118 // loop_exit
                  _
              $region119: #{integrated_loss.1} parent=103 // pred_fallthru
                _
              // Predicated region
              $region127: #{integrated_loss.1} parent=103 // pred_check
                _
              $region128: #{integrated_loss.1} parent=103 // pred_check_branch
                %364 = sbr.rel target = $region130
              $region129: #{integrated_loss.1} parent=103 // pred_region
                _
              $region130: #{integrated_loss.1} parent=103 // pred_fallthru
                _
            $region104: #{integrated_loss.1} parent=99 // pred_fallthru
              _
            // Predicated region
            $region105: #{integrated_loss.1} parent=99 // pred_check
              _
            $region106: #{integrated_loss.1} parent=99 // pred_check_branch
              %322 = sbr.rel target = $region108
            $region107: #{integrated_loss.1} parent=99 // pred_region
              %s324 = ssub.s32 256, 1
              loop: start=0, step=1, limit=1
              $region109: #{integrated_loss.1} parent=107 // loop_pre_header
                _
              $region110: #{integrated_loss.1} parent=107 // loop_header
                %s326 = sphi 0, %s330
                %p327 = scmp.ge.s32.totalorder %s326, 1
                %s331 = sphi %s316, %s316
                %s332 = sphi %s312, %s312
              $region111: #{integrated_loss.1} parent=107 // loop_header_branch
                %329 = sbr.rel (%p327) target = $region115
              $region112: #{integrated_loss.1} parent=107 // loop_body
                %v333 = vld [vmem:[%s331] sm:%s324]
                %334 = vst [vmem:[%s332] sm:%s324] %v333
                %v335 = vld [vmem:[%s331 + $0x10] sm:%s324]
                %336 = vst [vmem:[%s332 + $0x8] sm:%s324] %v335
                %v337 = vld [vmem:[%s331 + $0x20] sm:%s324]
                %338 = vst [vmem:[%s332 + $0x10] sm:%s324] %v337
                %v339 = vld [vmem:[%s331 + $0x30] sm:%s324]
                %340 = vst [vmem:[%s332 + $0x18] sm:%s324] %v339
                %v341 = vld [vmem:[%s331 + $0x40] sm:%s324]
                %342 = vst [vmem:[%s332 + $0x20] sm:%s324] %v341
              $region113: #{integrated_loss.1} parent=107 // loop_footer
                %s330 = sadd.s32 1, %s326
              $region114: #{integrated_loss.1} parent=107 // loop_footer_branch
                %325 = sbr.rel target = $region110
              $region115: #{integrated_loss.1} parent=107 // loop_exit
                _
            $region108: #{integrated_loss.1} parent=99 // pred_fallthru
              _
          $region100: #{integrated_loss.1} parent=95 // pred_fallthru
            _
          %365 = vnop
        $region96: #{integrated_loss.1} parent=15 // pred_fallthru
          _
        // Predicated region
        $region131: #{integrated_loss.1} parent=15 // pred_check
          %p366 = pneg %p137
        $region132: #{integrated_loss.1} parent=15 // pred_check_branch
          %368 = sbr.rel (%p366) target = $region134
        $region133: #{integrated_loss.1} parent=15 // pred_region
          %p369 = scmp.lt.s32.totalorder %s17, 1
          %s370 = scalar_select %p369, %s17, 1
          %s371 = smul.addr %s370, 8
          %s372 = scalar_lea.vmem %s3, %s371
        $region134: #{integrated_loss.1} parent=15 // pred_fallthru
          _
      $region16: #{integrated_loss.1} parent=5 // pred_fallthru
        _
      %p373 = scmp.le.s32.totalorder 1, %s10
      %p374 = scmp.lt.s32.totalorder %s10, 9
      %p375 = pnand %p373, %p374
      %p376 = pneg %p375
      // Predicated region
      $region135: #{integrated_loss.1} parent=5 // pred_check
        _
      $region136: #{integrated_loss.1} parent=5 // pred_check_branch
        %378 = sbr.rel (%p375) target = $region138
      $region137: #{integrated_loss.1} parent=5 // pred_region
        %s379 = ssub.s32 %s10, 1
        %s380 = sand.u32 %s46, 1
        %s381 = sand.u32 %s46, 1
        %s382 = smul.addr %s381, 32
        %s383 = scalar_lea.vmem [#allocation5], %s382
        // Predicated region
        $region139: #{integrated_loss.1} parent=137 // pred_check
          %p384 = pneg %p59
        $region140: #{integrated_loss.1} parent=137 // pred_check_branch
          %386 = sbr.rel (%p384) target = $region142
        $region141: #{integrated_loss.1} parent=137 // pred_region
          _
        $region142: #{integrated_loss.1} parent=137 // pred_fallthru
          _
        %s387 = sand.u32 %s76, 1
        %s388 = sand.u32 %s76, 1
        %s389 = smul.addr %s388, 40
        %s390 = scalar_lea.vmem [#allocation6], %s389
        // Predicated region
        $region143: #{integrated_loss.1} parent=137 // pred_check
          %p391 = pneg %p89
        $region144: #{integrated_loss.1} parent=137 // pred_check_branch
          %393 = sbr.rel (%p391) target = $region146
        $region145: #{integrated_loss.1} parent=137 // pred_region
          _
        $region146: #{integrated_loss.1} parent=137 // pred_fallthru
          _
        %s394 = sand.u32 %s104, 1
        %s395 = sand.u32 %s104, 1
        %s396 = smul.addr %s395, 40
        %s397 = scalar_lea.vmem [#allocation7], %s396
        // Predicated region
        $region147: #{integrated_loss.1} parent=137 // pred_check
          %p398 = pneg %p117
        $region148: #{integrated_loss.1} parent=137 // pred_check_branch
          %400 = sbr.rel (%p398) target = $region150
        $region149: #{integrated_loss.1} parent=137 // pred_region
          _
        $region150: #{integrated_loss.1} parent=137 // pred_fallthru
          _
        %s401 = sand.u32 %s46, 1
        %s402 = sand.u32 %s46, 1
        %s403 = smul.addr %s402, 32
        %s404 = scalar_lea.vmem [#allocation5], %s403
        %p405 = pneg %p59
        %p406 = pneg %p56
        %s407 = sand.u32 %s76, 1
        %s408 = sand.u32 %s76, 1
        %s409 = smul.addr %s408, 40
        %s410 = scalar_lea.vmem [#allocation6], %s409
        %p411 = pneg %p89
        %p412 = pneg %p86
        %s413 = sand.u32 %s104, 1
        %s414 = sand.u32 %s104, 1
        %s415 = smul.addr %s414, 40
        %s416 = scalar_lea.vmem [#allocation7], %s415
        %p417 = pneg %p117
        %p418 = pneg %p114
        %p419 = scmp.lt.s32.totalorder %s20, 1
        %s420 = scalar_select %p419, %s20, 1
        %s421 = smul.addr %s420, 8
        %s422 = scalar_lea.vmem %s3, %s421
        %p423 = pneg %p143
        %p424 = pneg %p140
        %p425 = pneg %p169
        %p426 = pneg %p166
        %p427 = scmp.lt.s32.totalorder %s20, 1
        %s428 = scalar_select %p427, %s20, 1
        %s429 = scalar_lea.vmem %s4, %s428
        %s430 = smul.u32 %s22, %s21
        %s431 = smul.u32 %s22, %s21
        %p432 = scmp.lt.s32.totalorder %s20, 1
        %s433 = scalar_select %p432, %s20, 1
        %s434 = smul.addr %s433, 8
        %s435 = scalar_lea.vmem %s3, %s434
        %p436 = scmp.lt.s32.totalorder %s20, 1
        %s437 = scalar_select %p436, %s20, 1
        %s438 = scalar_lea.vmem %s4, %s437
        %v439 = vld [vmem:[%s397] sm:$0xff]
        %s440 = scalar_lea.vmem %s397, 8 [#allocation7]
        %v441 = vld [vmem:[%s440] sm:$0xff]
        %s442 = scalar_lea.vmem %s397, 16 [#allocation7]
        %v443 = vld [vmem:[%s442] sm:$0xff]
        %s444 = scalar_lea.vmem %s397, 24 [#allocation7]
        %v445 = vld [vmem:[%s444] sm:$0xff]
        %v446 = vsub.f32 %v443, %v439
        %v447 = vsub.f32 %v445, %v441
        %v448 = vmul.f32 %v446, %v447
        %v449 = vld [vmem:[%s435] sm:$0xff]
        %v450 = vlaneseq
        %v451 = vshrl.u32 %v450, 7
        %v452 = vlaneseq
        %v453 = vand.u32 %v452, 127
        %s454 = smul.u32 %s22, 8
        %v455 = vstv %s454
        %v456 = vadd.s32 %v455, %v451
        %v457 = vmul.u32 %v456, 128
        %v458 = vadd.s32 %v457, %v453
        %vm459 = vcmp.lt.s32.totalorder %v458, 1600
        %p460 = scmp.eq.s32.totalorder %s21, 0
        %p461 = scmp.eq.s32.totalorder %s22, 0
        %p462 = pnand %p460, %p461
        %p463 = pneg %p462
        // Predicated region
        $region151: #{integrated_loss.1} parent=137 // pred_check
          _
        $region152: #{integrated_loss.1} parent=137 // pred_check_branch
          %465 = sbr.rel (%p462) target = $region154
        $region153: #{integrated_loss.1} parent=137 // pred_region
          %466 = vst [vmem:[#allocation2] sm:$0xff] -1e+09
          %467 = vst [vmem:[#allocation3] sm:$0xff] 0
          %468 = vst [vmem:[#allocation4] sm:$0xff] 0.0
          %469 = vst [vmem:[#allocation4 + $0x8] sm:$0xff] 0.0
          %470 = vst [vmem:[#allocation4 + $0x10] sm:$0xff] 0.0
        $region154: #{integrated_loss.1} parent=137 // pred_fallthru
          _
        // Predicated region
        $region155: #{integrated_loss.1} parent=137 // pred_check
          %p471 = pneg %p460
        $region156: #{integrated_loss.1} parent=137 // pred_check_branch
          %473 = sbr.rel (%p471) target = $region158
        $region157: #{integrated_loss.1} parent=137 // pred_region
          %s475 = vtos %v449
          %v476 = vstv %s475
          %v478 = vmax.f32 %v439, %v476
          %479 = vrot.lane.b32.xlu0 %v449, 127
          %v480 = vpop.permute.xlu0 %479
          %s481 = vtos %v480
          %v482 = vstv %s481
          %v484 = vmax.f32 %v441, %v482
          %485 = vrot.lane.b32.xlu0 %v449, 126
          %v486 = vpop.permute.xlu0 %485
          %s487 = vtos %v486
          %v488 = vstv %s487
          %v490 = vmin.f32 %v443, %v488
          %491 = vrot.lane.b32.xlu0 %v449, 125
          %v492 = vpop.permute.xlu0 %491
          %s493 = vtos %v492
          %v494 = vstv %s493
          %v496 = vmin.f32 %v445, %v494
          %v497 = vsub.f32 %v490, %v478
          %v498 = vmax.f32 %v497, 0.0
          %v499 = vsub.f32 %v496, %v484
          %v500 = vmax.f32 %v499, 0.0
          %v501 = vmul.f32 %v498, %v500
          %502 = vrot.lane.b32.xlu0 %v449, 2
          %v503 = vpop.permute.xlu0 %502
          %v505 = vsub.f32 %v449, %v503
          %507 = vrot.lane.b32.xlu0 %v505, 127
          %v508 = vpop.permute.xlu0 %507
          %v510 = vmul.f32 %v505, %v508
          %512 = vrot.lane.b32.xlu0 %v510, 126
          %v513 = vpop.permute.xlu0 %512
          %s514 = vtos %v513
          %v515 = vstv %s514
          %v517 = vadd.f32 %v448, %v515
          %v518 = vsub.f32 %v517, %v501
          %v519 = vadd.f32 %v518, 1e-08
          %v520 = vrcp.pop %v519
          %v521 = vmul.f32 %v501, %v520
          %v522 = vsel %vm459, %v521, -1e+09
          %v523 = vrot.slane %v522, 4
          %v524 = vmax.f32 %v522, %v523
          %v525 = vrot.slane %v524, 2
          %v526 = vmax.f32 %v524, %v525
          %v527 = vrot.slane %v526, 1
          %v528 = vmax.f32 %v526, %v527
          %vm529 = vcmp.eq.f32.partialorder %v522, %v528
          %v530 = vsel %vm529, %v451, 8
          %v531 = vrot.slane %v530, 4
          %vm532 = vcmp.lt.s32.totalorder %v530, %v531
          %v533 = vsel %vm532, %v530, %v531
          %v534 = vrot.slane %v533, 2
          %vm535 = vcmp.lt.s32.totalorder %v533, %v534
          %v536 = vsel %vm535, %v533, %v534
          %v537 = vrot.slane %v536, 1
          %vm538 = vcmp.lt.s32.totalorder %v536, %v537
          %v539 = vsel %vm538, %v536, %v537
          %v540 = vadd.s32 %v455, %v539
          %v541 = vmul.u32 %v540, 128
          %v542 = vadd.s32 %v541, %v453
          %v543 = vld [vmem:[#allocation2] sm:$0x1]
          %v544 = vld [vmem:[#allocation3] sm:$0x1]
          %vm545 = vcmp.gt.f32.partialorder %v528, %v543
          %v546 = vsel %vm545, %v528, %v543
          %547 = vst [vmem:[#allocation2] sm:$0x1] %v546
          %v548 = vsel %vm545, %v542, %v544
          %549 = vst [vmem:[#allocation3] sm:$0x1] %v548
          %v550 = vrot.slane %v449, 1
          %s551 = vtos %v550
          %v552 = vstv %s551
          %v554 = vmax.f32 %v439, %v552
          %555 = vrot.lane.b32.xlu0 %v550, 127
          %v556 = vpop.permute.xlu0 %555
          %s557 = vtos %v556
          %v558 = vstv %s557
          %v560 = vmax.f32 %v441, %v558
          %561 = vrot.lane.b32.xlu0 %v550, 126
          %v562 = vpop.permute.xlu0 %561
          %s563 = vtos %v562
          %v564 = vstv %s563
          %v566 = vmin.f32 %v443, %v564
          %567 = vrot.lane.b32.xlu0 %v550, 125
          %v568 = vpop.permute.xlu0 %567
          %s569 = vtos %v568
          %v570 = vstv %s569
          %v572 = vmin.f32 %v445, %v570
          %v573 = vsub.f32 %v566, %v554
          %v574 = vmax.f32 %v573, 0.0
          %v575 = vsub.f32 %v572, %v560
          %v576 = vmax.f32 %v575, 0.0
          %v577 = vmul.f32 %v574, %v576
          %v578 = vrot.slane %v510, 1
          %579 = vrot.lane.b32.xlu0 %v578, 126
          %v580 = vpop.permute.xlu0 %579
          %s581 = vtos %v580
          %v582 = vstv %s581
          %v584 = vadd.f32 %v448, %v582
          %v585 = vsub.f32 %v584, %v577
          %v586 = vadd.f32 %v585, 1e-08
          %v587 = vrcp.pop %v586
          %v588 = vmul.f32 %v577, %v587
          %v589 = vsel %vm459, %v588, -1e+09
          %v590 = vrot.slane %v589, 4
          %v591 = vmax.f32 %v589, %v590
          %v592 = vrot.slane %v591, 2
          %v593 = vmax.f32 %v591, %v592
          %v594 = vrot.slane %v593, 1
          %v595 = vmax.f32 %v593, %v594
          %vm596 = vcmp.eq.f32.partialorder %v589, %v595
          %v597 = vsel %vm596, %v451, 8
          %v598 = vrot.slane %v597, 4
          %vm599 = vcmp.lt.s32.totalorder %v597, %v598
          %v600 = vsel %vm599, %v597, %v598
          %v601 = vrot.slane %v600, 2
          %vm602 = vcmp.lt.s32.totalorder %v600, %v601
          %v603 = vsel %vm602, %v600, %v601
          %v604 = vrot.slane %v603, 1
          %vm605 = vcmp.lt.s32.totalorder %v603, %v604
          %v606 = vsel %vm605, %v603, %v604
          %v607 = vadd.s32 %v455, %v606
          %v608 = vmul.u32 %v607, 128
          %v609 = vadd.s32 %v608, %v453
          %v610 = vld [vmem:[#allocation2 + $0x1] sm:$0x1]
          %v611 = vld [vmem:[#allocation3 + $0x1] sm:$0x1]
          %vm612 = vcmp.gt.f32.partialorder %v595, %v610
          %v613 = vsel %vm612, %v595, %v610
          %614 = vst [vmem:[#allocation2 + $0x1] sm:$0x1] %v613
          %v615 = vsel %vm612, %v609, %v611
          %616 = vst [vmem:[#allocation3 + $0x1] sm:$0x1] %v615
          %v617 = vrot.slane %v449, 2
          %s618 = vtos %v617
          %v619 = vstv %s618
          %v621 = vmax.f32 %v439, %v619
          %622 = vrot.lane.b32.xlu0 %v617, 127
          %v623 = vpop.permute.xlu0 %622
          %s624 = vtos %v623
          %v625 = vstv %s624
          %v627 = vmax.f32 %v441, %v625
          %628 = vrot.lane.b32.xlu0 %v617, 126
          %v629 = vpop.permute.xlu0 %628
          %s630 = vtos %v629
          %v631 = vstv %s630
          %v633 = vmin.f32 %v443, %v631
          %634 = vrot.lane.b32.xlu0 %v617, 125
          %v635 = vpop.permute.xlu0 %634
          %s636 = vtos %v635
          %v637 = vstv %s636
          %v639 = vmin.f32 %v445, %v637
          %v640 = vsub.f32 %v633, %v621
          %v641 = vmax.f32 %v640, 0.0
          %v642 = vsub.f32 %v639, %v627
          %v643 = vmax.f32 %v642, 0.0
          %v644 = vmul.f32 %v641, %v643
          %v645 = vrot.slane %v510, 2
          %646 = vrot.lane.b32.xlu0 %v645, 126
          %v647 = vpop.permute.xlu0 %646
          %s648 = vtos %v647
          %v649 = vstv %s648
          %v651 = vadd.f32 %v448, %v649
          %v652 = vsub.f32 %v651, %v644
          %v653 = vadd.f32 %v652, 1e-08
          %v654 = vrcp.pop %v653
          %v655 = vmul.f32 %v644, %v654
          %v656 = vsel %vm459, %v655, -1e+09
          %v657 = vrot.slane %v656, 4
          %v658 = vmax.f32 %v656, %v657
          %v659 = vrot.slane %v658, 2
          %v660 = vmax.f32 %v658, %v659
          %v661 = vrot.slane %v660, 1
          %v662 = vmax.f32 %v660, %v661
          %vm663 = vcmp.eq.f32.partialorder %v656, %v662
          %v664 = vsel %vm663, %v451, 8
          %v665 = vrot.slane %v664, 4
          %vm666 = vcmp.lt.s32.totalorder %v664, %v665
          %v667 = vsel %vm666, %v664, %v665
          %v668 = vrot.slane %v667, 2
          %vm669 = vcmp.lt.s32.totalorder %v667, %v668
          %v670 = vsel %vm669, %v667, %v668
          %v671 = vrot.slane %v670, 1
          %vm672 = vcmp.lt.s32.totalorder %v670, %v671
          %v673 = vsel %vm672, %v670, %v671
          %v674 = vadd.s32 %v455, %v673
          %v675 = vmul.u32 %v674, 128
          %v676 = vadd.s32 %v675, %v453
          %v677 = vld [vmem:[#allocation2 + $0x2] sm:$0x1]
          %v678 = vld [vmem:[#allocation3 + $0x2] sm:$0x1]
          %vm679 = vcmp.gt.f32.partialorder %v662, %v677
          %v680 = vsel %vm679, %v662, %v677
          %681 = vst [vmem:[#allocation2 + $0x2] sm:$0x1] %v680
          %v682 = vsel %vm679, %v676, %v678
          %683 = vst [vmem:[#allocation3 + $0x2] sm:$0x1] %v682
          %v684 = vrot.slane %v449, 3
          %s685 = vtos %v684
          %v686 = vstv %s685
          %v688 = vmax.f32 %v439, %v686
          %689 = vrot.lane.b32.xlu0 %v684, 127
          %v690 = vpop.permute.xlu0 %689
          %s691 = vtos %v690
          %v692 = vstv %s691
          %v694 = vmax.f32 %v441, %v692
          %695 = vrot.lane.b32.xlu0 %v684, 126
          %v696 = vpop.permute.xlu0 %695
          %s697 = vtos %v696
          %v698 = vstv %s697
          %v700 = vmin.f32 %v443, %v698
          %701 = vrot.lane.b32.xlu0 %v684, 125
          %v702 = vpop.permute.xlu0 %701
          %s703 = vtos %v702
          %v704 = vstv %s703
          %v706 = vmin.f32 %v445, %v704
          %v707 = vsub.f32 %v700, %v688
          %v708 = vmax.f32 %v707, 0.0
          %v709 = vsub.f32 %v706, %v694
          %v710 = vmax.f32 %v709, 0.0
          %v711 = vmul.f32 %v708, %v710
          %v712 = vrot.slane %v510, 3
          %713 = vrot.lane.b32.xlu0 %v712, 126
          %v714 = vpop.permute.xlu0 %713
          %s715 = vtos %v714
          %v716 = vstv %s715
          %v718 = vadd.f32 %v448, %v716
          %v719 = vsub.f32 %v718, %v711
          %v720 = vadd.f32 %v719, 1e-08
          %v721 = vrcp.pop %v720
          %v722 = vmul.f32 %v711, %v721
          %v723 = vsel %vm459, %v722, -1e+09
          %v724 = vrot.slane %v723, 4
          %v725 = vmax.f32 %v723, %v724
          %v726 = vrot.slane %v725, 2
          %v727 = vmax.f32 %v725, %v726
          %v728 = vrot.slane %v727, 1
          %v729 = vmax.f32 %v727, %v728
          %vm730 = vcmp.eq.f32.partialorder %v723, %v729
          %v731 = vsel %vm730, %v451, 8
          %v732 = vrot.slane %v731, 4
          %vm733 = vcmp.lt.s32.totalorder %v731, %v732
          %v734 = vsel %vm733, %v731, %v732
          %v735 = vrot.slane %v734, 2
          %vm736 = vcmp.lt.s32.totalorder %v734, %v735
          %v737 = vsel %vm736, %v734, %v735
          %v738 = vrot.slane %v737, 1
          %vm739 = vcmp.lt.s32.totalorder %v737, %v738
          %v740 = vsel %vm739, %v737, %v738
          %v741 = vadd.s32 %v455, %v740
          %v742 = vmul.u32 %v741, 128
          %v743 = vadd.s32 %v742, %v453
          %v744 = vld [vmem:[#allocation2 + $0x3] sm:$0x1]
          %v745 = vld [vmem:[#allocation3 + $0x3] sm:$0x1]
          %vm746 = vcmp.gt.f32.partialorder %v729, %v744
          %v747 = vsel %vm746, %v729, %v744
          %748 = vst [vmem:[#allocation2 + $0x3] sm:$0x1] %v747
          %v749 = vsel %vm746, %v743, %v745
          %750 = vst [vmem:[#allocation3 + $0x3] sm:$0x1] %v749
          %v751 = vrot.slane %v449, 4
          %s752 = vtos %v751
          %v753 = vstv %s752
          %v755 = vmax.f32 %v439, %v753
          %756 = vrot.lane.b32.xlu0 %v751, 127
          %v757 = vpop.permute.xlu0 %756
          %s758 = vtos %v757
          %v759 = vstv %s758
          %v761 = vmax.f32 %v441, %v759
          %762 = vrot.lane.b32.xlu0 %v751, 126
          %v763 = vpop.permute.xlu0 %762
          %s764 = vtos %v763
          %v765 = vstv %s764
          %v767 = vmin.f32 %v443, %v765
          %768 = vrot.lane.b32.xlu0 %v751, 125
          %v769 = vpop.permute.xlu0 %768
          %s770 = vtos %v769
          %v771 = vstv %s770
          %v773 = vmin.f32 %v445, %v771
          %v774 = vsub.f32 %v767, %v755
          %v775 = vmax.f32 %v774, 0.0
          %v776 = vsub.f32 %v773, %v761
          %v777 = vmax.f32 %v776, 0.0
          %v778 = vmul.f32 %v775, %v777
          %v779 = vrot.slane %v510, 4
          %780 = vrot.lane.b32.xlu0 %v779, 126
          %v781 = vpop.permute.xlu0 %780
          %s782 = vtos %v781
          %v783 = vstv %s782
          %v785 = vadd.f32 %v448, %v783
          %v786 = vsub.f32 %v785, %v778
          %v787 = vadd.f32 %v786, 1e-08
          %v788 = vrcp.pop %v787
          %v789 = vmul.f32 %v778, %v788
          %v790 = vsel %vm459, %v789, -1e+09
          %v791 = vrot.slane %v790, 4
          %v792 = vmax.f32 %v790, %v791
          %v793 = vrot.slane %v792, 2
          %v794 = vmax.f32 %v792, %v793
          %v795 = vrot.slane %v794, 1
          %v796 = vmax.f32 %v794, %v795
          %vm797 = vcmp.eq.f32.partialorder %v790, %v796
          %v798 = vsel %vm797, %v451, 8
          %v799 = vrot.slane %v798, 4
          %vm800 = vcmp.lt.s32.totalorder %v798, %v799
          %v801 = vsel %vm800, %v798, %v799
          %v802 = vrot.slane %v801, 2
          %vm803 = vcmp.lt.s32.totalorder %v801, %v802
          %v804 = vsel %vm803, %v801, %v802
          %v805 = vrot.slane %v804, 1
          %vm806 = vcmp.lt.s32.totalorder %v804, %v805
          %v807 = vsel %vm806, %v804, %v805
          %v808 = vadd.s32 %v455, %v807
          %v809 = vmul.u32 %v808, 128
          %v810 = vadd.s32 %v809, %v453
          %v811 = vld [vmem:[#allocation2 + $0x4] sm:$0x1]
          %v812 = vld [vmem:[#allocation3 + $0x4] sm:$0x1]
          %vm813 = vcmp.gt.f32.partialorder %v796, %v811
          %v814 = vsel %vm813, %v796, %v811
          %815 = vst [vmem:[#allocation2 + $0x4] sm:$0x1] %v814
          %v816 = vsel %vm813, %v810, %v812
          %817 = vst [vmem:[#allocation3 + $0x4] sm:$0x1] %v816
          %v818 = vrot.slane %v449, 5
          %s819 = vtos %v818
          %v820 = vstv %s819
          %v822 = vmax.f32 %v439, %v820
          %823 = vrot.lane.b32.xlu0 %v818, 127
          %v824 = vpop.permute.xlu0 %823
          %s825 = vtos %v824
          %v826 = vstv %s825
          %v828 = vmax.f32 %v441, %v826
          %829 = vrot.lane.b32.xlu0 %v818, 126
          %v830 = vpop.permute.xlu0 %829
          %s831 = vtos %v830
          %v832 = vstv %s831
          %v834 = vmin.f32 %v443, %v832
          %835 = vrot.lane.b32.xlu0 %v818, 125
          %v836 = vpop.permute.xlu0 %835
          %s837 = vtos %v836
          %v838 = vstv %s837
          %v840 = vmin.f32 %v445, %v838
          %v841 = vsub.f32 %v834, %v822
          %v842 = vmax.f32 %v841, 0.0
          %v843 = vsub.f32 %v840, %v828
          %v844 = vmax.f32 %v843, 0.0
          %v845 = vmul.f32 %v842, %v844
          %v846 = vrot.slane %v510, 5
          %847 = vrot.lane.b32.xlu0 %v846, 126
          %v848 = vpop.permute.xlu0 %847
          %s849 = vtos %v848
          %v850 = vstv %s849
          %v852 = vadd.f32 %v448, %v850
          %v853 = vsub.f32 %v852, %v845
          %v854 = vadd.f32 %v853, 1e-08
          %v855 = vrcp.pop %v854
          %v856 = vmul.f32 %v845, %v855
          %v857 = vsel %vm459, %v856, -1e+09
          %v858 = vrot.slane %v857, 4
          %v859 = vmax.f32 %v857, %v858
          %v860 = vrot.slane %v859, 2
          %v861 = vmax.f32 %v859, %v860
          %v862 = vrot.slane %v861, 1
          %v863 = vmax.f32 %v861, %v862
          %vm864 = vcmp.eq.f32.partialorder %v857, %v863
          %v865 = vsel %vm864, %v451, 8
          %v866 = vrot.slane %v865, 4
          %vm867 = vcmp.lt.s32.totalorder %v865, %v866
          %v868 = vsel %vm867, %v865, %v866
          %v869 = vrot.slane %v868, 2
          %vm870 = vcmp.lt.s32.totalorder %v868, %v869
          %v871 = vsel %vm870, %v868, %v869
          %v872 = vrot.slane %v871, 1
          %vm873 = vcmp.lt.s32.totalorder %v871, %v872
          %v874 = vsel %vm873, %v871, %v872
          %v875 = vadd.s32 %v455, %v874
          %v876 = vmul.u32 %v875, 128
          %v877 = vadd.s32 %v876, %v453
          %v878 = vld [vmem:[#allocation2 + $0x5] sm:$0x1]
          %v879 = vld [vmem:[#allocation3 + $0x5] sm:$0x1]
          %vm880 = vcmp.gt.f32.partialorder %v863, %v878
          %v881 = vsel %vm880, %v863, %v878
          %882 = vst [vmem:[#allocation2 + $0x5] sm:$0x1] %v881
          %v883 = vsel %vm880, %v877, %v879
          %884 = vst [vmem:[#allocation3 + $0x5] sm:$0x1] %v883
          %v885 = vrot.slane %v449, 6
          %s886 = vtos %v885
          %v887 = vstv %s886
          %v889 = vmax.f32 %v439, %v887
          %890 = vrot.lane.b32.xlu0 %v885, 127
          %v891 = vpop.permute.xlu0 %890
          %s892 = vtos %v891
          %v893 = vstv %s892
          %v895 = vmax.f32 %v441, %v893
          %896 = vrot.lane.b32.xlu0 %v885, 126
          %v897 = vpop.permute.xlu0 %896
          %s898 = vtos %v897
          %v899 = vstv %s898
          %v901 = vmin.f32 %v443, %v899
          %902 = vrot.lane.b32.xlu0 %v885, 125
          %v903 = vpop.permute.xlu0 %902
          %s904 = vtos %v903
          %v905 = vstv %s904
          %v907 = vmin.f32 %v445, %v905
          %v908 = vsub.f32 %v901, %v889
          %v909 = vmax.f32 %v908, 0.0
          %v910 = vsub.f32 %v907, %v895
          %v911 = vmax.f32 %v910, 0.0
          %v912 = vmul.f32 %v909, %v911
          %v913 = vrot.slane %v510, 6
          %914 = vrot.lane.b32.xlu0 %v913, 126
          %v915 = vpop.permute.xlu0 %914
          %s916 = vtos %v915
          %v917 = vstv %s916
          %v919 = vadd.f32 %v448, %v917
          %v920 = vsub.f32 %v919, %v912
          %v921 = vadd.f32 %v920, 1e-08
          %v922 = vrcp.pop %v921
          %v923 = vmul.f32 %v912, %v922
          %v924 = vsel %vm459, %v923, -1e+09
          %v925 = vrot.slane %v924, 4
          %v926 = vmax.f32 %v924, %v925
          %v927 = vrot.slane %v926, 2
          %v928 = vmax.f32 %v926, %v927
          %v929 = vrot.slane %v928, 1
          %v930 = vmax.f32 %v928, %v929
          %vm931 = vcmp.eq.f32.partialorder %v924, %v930
          %v932 = vsel %vm931, %v451, 8
          %v933 = vrot.slane %v932, 4
          %vm934 = vcmp.lt.s32.totalorder %v932, %v933
          %v935 = vsel %vm934, %v932, %v933
          %v936 = vrot.slane %v935, 2
          %vm937 = vcmp.lt.s32.totalorder %v935, %v936
          %v938 = vsel %vm937, %v935, %v936
          %v939 = vrot.slane %v938, 1
          %vm940 = vcmp.lt.s32.totalorder %v938, %v939
          %v941 = vsel %vm940, %v938, %v939
          %v942 = vadd.s32 %v455, %v941
          %v943 = vmul.u32 %v942, 128
          %v944 = vadd.s32 %v943, %v453
          %v945 = vld [vmem:[#allocation2 + $0x6] sm:$0x1]
          %v946 = vld [vmem:[#allocation3 + $0x6] sm:$0x1]
          %vm947 = vcmp.gt.f32.partialorder %v930, %v945
          %v948 = vsel %vm947, %v930, %v945
          %949 = vst [vmem:[#allocation2 + $0x6] sm:$0x1] %v948
          %v950 = vsel %vm947, %v944, %v946
          %951 = vst [vmem:[#allocation3 + $0x6] sm:$0x1] %v950
          %v952 = vrot.slane %v449, 7
          %s953 = vtos %v952
          %v954 = vstv %s953
          %v956 = vmax.f32 %v439, %v954
          %957 = vrot.lane.b32.xlu0 %v952, 127
          %v958 = vpop.permute.xlu0 %957
          %s959 = vtos %v958
          %v960 = vstv %s959
          %v962 = vmax.f32 %v441, %v960
          %963 = vrot.lane.b32.xlu0 %v952, 126
          %v964 = vpop.permute.xlu0 %963
          %s965 = vtos %v964
          %v966 = vstv %s965
          %v968 = vmin.f32 %v443, %v966
          %969 = vrot.lane.b32.xlu0 %v952, 125
          %v970 = vpop.permute.xlu0 %969
          %s971 = vtos %v970
          %v972 = vstv %s971
          %v974 = vmin.f32 %v445, %v972
          %v975 = vsub.f32 %v968, %v956
          %v976 = vmax.f32 %v975, 0.0
          %v977 = vsub.f32 %v974, %v962
          %v978 = vmax.f32 %v977, 0.0
          %v979 = vmul.f32 %v976, %v978
          %v980 = vrot.slane %v510, 7
          %981 = vrot.lane.b32.xlu0 %v980, 126
          %v982 = vpop.permute.xlu0 %981
          %s983 = vtos %v982
          %v984 = vstv %s983
          %v986 = vadd.f32 %v448, %v984
          %v987 = vsub.f32 %v986, %v979
          %v988 = vadd.f32 %v987, 1e-08
          %v989 = vrcp.pop %v988
          %v990 = vmul.f32 %v979, %v989
          %v991 = vsel %vm459, %v990, -1e+09
          %v992 = vrot.slane %v991, 4
          %v993 = vmax.f32 %v991, %v992
          %v994 = vrot.slane %v993, 2
          %v995 = vmax.f32 %v993, %v994
          %v996 = vrot.slane %v995, 1
          %v997 = vmax.f32 %v995, %v996
          %vm998 = vcmp.eq.f32.partialorder %v991, %v997
          %v999 = vsel %vm998, %v451, 8
          %v1000 = vrot.slane %v999, 4
          %vm1001 = vcmp.lt.s32.totalorder %v999, %v1000
          %v1002 = vsel %vm1001, %v999, %v1000
          %v1003 = vrot.slane %v1002, 2
          %vm1004 = vcmp.lt.s32.totalorder %v1002, %v1003
          %v1005 = vsel %vm1004, %v1002, %v1003
          %v1006 = vrot.slane %v1005, 1
          %vm1007 = vcmp.lt.s32.totalorder %v1005, %v1006
          %v1008 = vsel %vm1007, %v1005, %v1006
          %v1009 = vadd.s32 %v455, %v1008
          %v1010 = vmul.u32 %v1009, 128
          %v1011 = vadd.s32 %v1010, %v453
          %v1012 = vld [vmem:[#allocation2 + $0x7] sm:$0x1]
          %v1013 = vld [vmem:[#allocation3 + $0x7] sm:$0x1]
          %vm1014 = vcmp.gt.f32.partialorder %v997, %v1012
          %v1015 = vsel %vm1014, %v997, %v1012
          %1016 = vst [vmem:[#allocation2 + $0x7] sm:$0x1] %v1015
          %v1017 = vsel %vm1014, %v1011, %v1013
          %1018 = vst [vmem:[#allocation3 + $0x7] sm:$0x1] %v1017
        $region158: #{integrated_loss.1} parent=137 // pred_fallthru
          _
        %p1019 = scmp.eq.s32.totalorder %s21, 1
        // Predicated region
        $region159: #{integrated_loss.1} parent=137 // pred_check
          %p1020 = pneg %p1019
        $region160: #{integrated_loss.1} parent=137 // pred_check_branch
          %1022 = sbr.rel (%p1020) target = $region162
        $region161: #{integrated_loss.1} parent=137 // pred_region
          %vm1023 = vcmp.ne.f32.partialorder %v449, -1.0
          %s1025 = vtos %v449
          %v1026 = vstv %s1025
          %v1028 = vmax.f32 %v439, %v1026
          %1029 = vrot.lane.b32.xlu0 %v449, 127
          %v1030 = vpop.permute.xlu0 %1029
          %s1031 = vtos %v1030
          %v1032 = vstv %s1031
          %v1034 = vmax.f32 %v441, %v1032
          %1035 = vrot.lane.b32.xlu0 %v449, 126
          %v1036 = vpop.permute.xlu0 %1035
          %s1037 = vtos %v1036
          %v1038 = vstv %s1037
          %v1040 = vmin.f32 %v443, %v1038
          %1041 = vrot.lane.b32.xlu0 %v449, 125
          %v1042 = vpop.permute.xlu0 %1041
          %s1043 = vtos %v1042
          %v1044 = vstv %s1043
          %v1046 = vmin.f32 %v445, %v1044
          %v1047 = vsub.f32 %v1040, %v1028
          %v1048 = vmax.f32 %v1047, 0.0
          %v1049 = vsub.f32 %v1046, %v1034
          %v1050 = vmax.f32 %v1049, 0.0
          %v1051 = vmul.f32 %v1048, %v1050
          %1052 = vrot.lane.b32.xlu0 %v449, 2
          %v1053 = vpop.permute.xlu0 %1052
          %v1055 = vsub.f32 %v449, %v1053
          %1057 = vrot.lane.b32.xlu0 %v1055, 127
          %v1058 = vpop.permute.xlu0 %1057
          %v1060 = vmul.f32 %v1055, %v1058
          %1062 = vrot.lane.b32.xlu0 %v1060, 126
          %v1063 = vpop.permute.xlu0 %1062
          %s1064 = vtos %v1063
          %v1065 = vstv %s1064
          %v1067 = vadd.f32 %v448, %v1065
          %v1068 = vsub.f32 %v1067, %v1051
          %v1069 = vadd.f32 %v1068, 1e-08
          %v1070 = vrcp.pop %v1069
          %v1071 = vmul.f32 %v1051, %v1070
          %v1072 = vsel %vm1023, 1, 0
          %1073 = vrot.lane.b32.xlu0 %v1072, 123
          %v1074 = vpop.permute.xlu0 %1073
          %s1075 = vtos %v1074
          %v1076 = vstv %s1075
          %vm1077 = vcmp.eq.s32.totalorder %v1076, 1
          %v1078 = vsel %vm1077, %v1071, -1e+09
          %v1079 = vld [vmem:[#allocation2] sm:$0x1]
          %v1080 = vld [vmem:[#allocation3] sm:$0x1]
          %vm1081 = vcmask 1040384
          %v1082 = vsel %vm1081, %v1079, -inf
          %1083 = vmax.xlane.f32.xlu0 %v1082
          %v1084 = vpop.xlane.xlu0 %1083
          %vm1085 = vcmp.eq.f32.partialorder %v1079, %v1084
          %v1086 = vsel %vm1085, %v1080, 1073741824
          %v1087 = vsel %vm1081, %v1086, 2147483647
          %v1088 = vand.u32 %v1087, 65535
          %v1089 = vshra.s32 %v1087, 16
          %v1090 = vcvt.s32.f32 %v1088
          %v1091 = vcvt.s32.f32 %v1089
          %1092 = vmin.xlane.f32.xlu0 %v1091
          %v1093 = vpop.xlane.xlu0 %1092
          %vm1094 = vcmp.eq.f32.partialorder %v1091, %v1093
          %v1095 = vsel %vm1094, %v1090, inf
          %1096 = vmin.xlane.f32.xlu0 %v1095
          %v1097 = vpop.xlane.xlu0 %1096
          %v1098 = vcvt.f32.s32 %v1097
          %v1099 = vcvt.f32.s32 %v1093
          %v1100 = vshll.u32 %v1099, 16
          %v1101 = vadd.s32 %v1100, %v1098
          %v1102 = vperm.slane %v1101, 0
          %vm1103 = vcmp.eq.s32.totalorder %v458, %v1102
          %vm1104 = vcmp.lt.f32.partialorder %v1084, 0.5
          %v1105 = vsel %vm1104, 1, 0
          %v1106 = vperm.slane %v1105, 0
          %vm1107 = vcmp.eq.s32.totalorder %v1106, 1
          %vm1108 = vmand %vm1103, %vm1107
          %vm1109 = vmand %vm1108, %vm1077
          %vm1110 = vcmp.gt.f32.partialorder %v1078, -1e+09
          %v1111 = vsel %vm1110, %v1078, -1e+09
          %v1112 = vsel %vm1110, %v1026, 0.0
          %v1113 = vsel %vm1110, %v1032, 0.0
          %v1114 = vsel %vm1110, %v1038, 0.0
          %v1115 = vsel %vm1110, %v1044, 0.0
          %1116 = vrot.lane.b32.xlu0 %v449, 124
          %v1117 = vpop.permute.xlu0 %1116
          %s1118 = vtos %v1117
          %v1119 = vstv %s1118
          %v1121 = vsel %vm1110, %v1119, 0.0
          %1122 = vrot.lane.b32.xlu0 %v449, 123
          %v1123 = vpop.permute.xlu0 %1122
          %s1124 = vtos %v1123
          %v1125 = vstv %s1124
          %v1127 = vsel %vm1110, %v1125, -1.0
          %v1128 = vrot.slane %v449, 1
          %s1129 = vtos %v1128
          %v1130 = vstv %s1129
          %v1132 = vmax.f32 %v439, %v1130
          %1133 = vrot.lane.b32.xlu0 %v1128, 127
          %v1134 = vpop.permute.xlu0 %1133
          %s1135 = vtos %v1134
          %v1136 = vstv %s1135
          %v1138 = vmax.f32 %v441, %v1136
          %1139 = vrot.lane.b32.xlu0 %v1128, 126
          %v1140 = vpop.permute.xlu0 %1139
          %s1141 = vtos %v1140
          %v1142 = vstv %s1141
          %v1144 = vmin.f32 %v443, %v1142
          %1145 = vrot.lane.b32.xlu0 %v1128, 125
          %v1146 = vpop.permute.xlu0 %1145
          %s1147 = vtos %v1146
          %v1148 = vstv %s1147
          %v1150 = vmin.f32 %v445, %v1148
          %v1151 = vsub.f32 %v1144, %v1132
          %v1152 = vmax.f32 %v1151, 0.0
          %v1153 = vsub.f32 %v1150, %v1138
          %v1154 = vmax.f32 %v1153, 0.0
          %v1155 = vmul.f32 %v1152, %v1154
          %v1156 = vrot.slane %v1060, 1
          %1157 = vrot.lane.b32.xlu0 %v1156, 126
          %v1158 = vpop.permute.xlu0 %1157
          %s1159 = vtos %v1158
          %v1160 = vstv %s1159
          %v1162 = vadd.f32 %v448, %v1160
          %v1163 = vsub.f32 %v1162, %v1155
          %v1164 = vadd.f32 %v1163, 1e-08
          %v1165 = vrcp.pop %v1164
          %v1166 = vmul.f32 %v1155, %v1165
          %v1167 = vrot.slane %v1072, 1
          %1168 = vrot.lane.b32.xlu0 %v1167, 123
          %v1169 = vpop.permute.xlu0 %1168
          %s1170 = vtos %v1169
          %v1171 = vstv %s1170
          %vm1172 = vcmp.eq.s32.totalorder %v1171, 1
          %v1173 = vsel %vm1172, %v1166, -1e+09
          %v1174 = vld [vmem:[#allocation2 + $0x1] sm:$0x1]
          %v1175 = vld [vmem:[#allocation3 + $0x1] sm:$0x1]
          %v1176 = vsel %vm1081, %v1174, -inf
          %1177 = vmax.xlane.f32.xlu0 %v1176
          %v1178 = vpop.xlane.xlu0 %1177
          %vm1179 = vcmp.eq.f32.partialorder %v1174, %v1178
          %v1180 = vsel %vm1179, %v1175, 1073741824
          %v1181 = vsel %vm1081, %v1180, 2147483647
          %v1182 = vand.u32 %v1181, 65535
          %v1183 = vshra.s32 %v1181, 16
          %v1184 = vcvt.s32.f32 %v1182
          %v1185 = vcvt.s32.f32 %v1183
          %1186 = vmin.xlane.f32.xlu0 %v1185
          %v1187 = vpop.xlane.xlu0 %1186
          %vm1188 = vcmp.eq.f32.partialorder %v1185, %v1187
          %v1189 = vsel %vm1188, %v1184, inf
          %1190 = vmin.xlane.f32.xlu0 %v1189
          %v1191 = vpop.xlane.xlu0 %1190
          %v1192 = vcvt.f32.s32 %v1191
          %v1193 = vcvt.f32.s32 %v1187
          %v1194 = vshll.u32 %v1193, 16
          %v1195 = vadd.s32 %v1194, %v1192
          %v1196 = vperm.slane %v1195, 0
          %vm1197 = vcmp.eq.s32.totalorder %v458, %v1196
          %vm1198 = vcmp.lt.f32.partialorder %v1178, 0.5
          %v1199 = vsel %vm1198, 1, 0
          %v1200 = vperm.slane %v1199, 0
          %vm1201 = vcmp.eq.s32.totalorder %v1200, 1
          %vm1202 = vmand %vm1197, %vm1201
          %vm1203 = vmand %vm1202, %vm1172
          %vm1204 = vmor %vm1109, %vm1203
          %vm1205 = vcmp.gt.f32.partialorder %v1173, %v1111
          %v1206 = vsel %vm1205, %v1173, %v1111
          %v1207 = vsel %vm1205, %v1130, %v1112
          %v1208 = vsel %vm1205, %v1136, %v1113
          %v1209 = vsel %vm1205, %v1142, %v1114
          %v1210 = vsel %vm1205, %v1148, %v1115
          %1211 = vrot.lane.b32.xlu0 %v1128, 124
          %v1212 = vpop.permute.xlu0 %1211
          %s1213 = vtos %v1212
          %v1214 = vstv %s1213
          %v1216 = vsel %vm1205, %v1214, %v1121
          %1217 = vrot.lane.b32.xlu0 %v1128, 123
          %v1218 = vpop.permute.xlu0 %1217
          %s1219 = vtos %v1218
          %v1220 = vstv %s1219
          %v1222 = vsel %vm1205, %v1220, %v1127
          %v1223 = vrot.slane %v449, 2
          %s1224 = vtos %v1223
          %v1225 = vstv %s1224
          %v1227 = vmax.f32 %v439, %v1225
          %1228 = vrot.lane.b32.xlu0 %v1223, 127
          %v1229 = vpop.permute.xlu0 %1228
          %s1230 = vtos %v1229
          %v1231 = vstv %s1230
          %v1233 = vmax.f32 %v441, %v1231
          %1234 = vrot.lane.b32.xlu0 %v1223, 126
          %v1235 = vpop.permute.xlu0 %1234
          %s1236 = vtos %v1235
          %v1237 = vstv %s1236
          %v1239 = vmin.f32 %v443, %v1237
          %1240 = vrot.lane.b32.xlu0 %v1223, 125
          %v1241 = vpop.permute.xlu0 %1240
          %s1242 = vtos %v1241
          %v1243 = vstv %s1242
          %v1245 = vmin.f32 %v445, %v1243
          %v1246 = vsub.f32 %v1239, %v1227
          %v1247 = vmax.f32 %v1246, 0.0
          %v1248 = vsub.f32 %v1245, %v1233
          %v1249 = vmax.f32 %v1248, 0.0
          %v1250 = vmul.f32 %v1247, %v1249
          %v1251 = vrot.slane %v1060, 2
          %1252 = vrot.lane.b32.xlu0 %v1251, 126
          %v1253 = vpop.permute.xlu0 %1252
          %s1254 = vtos %v1253
          %v1255 = vstv %s1254
          %v1257 = vadd.f32 %v448, %v1255
          %v1258 = vsub.f32 %v1257, %v1250
          %v1259 = vadd.f32 %v1258, 1e-08
          %v1260 = vrcp.pop %v1259
          %v1261 = vmul.f32 %v1250, %v1260
          %v1262 = vrot.slane %v1072, 2
          %1263 = vrot.lane.b32.xlu0 %v1262, 123
          %v1264 = vpop.permute.xlu0 %1263
          %s1265 = vtos %v1264
          %v1266 = vstv %s1265
          %vm1267 = vcmp.eq.s32.totalorder %v1266, 1
          %v1268 = vsel %vm1267, %v1261, -1e+09
          %v1269 = vld [vmem:[#allocation2 + $0x2] sm:$0x1]
          %v1270 = vld [vmem:[#allocation3 + $0x2] sm:$0x1]
          %v1271 = vsel %vm1081, %v1269, -inf
          %1272 = vmax.xlane.f32.xlu0 %v1271
          %v1273 = vpop.xlane.xlu0 %1272
          %vm1274 = vcmp.eq.f32.partialorder %v1269, %v1273
          %v1275 = vsel %vm1274, %v1270, 1073741824
          %v1276 = vsel %vm1081, %v1275, 2147483647
          %v1277 = vand.u32 %v1276, 65535
          %v1278 = vshra.s32 %v1276, 16
          %v1279 = vcvt.s32.f32 %v1277
          %v1280 = vcvt.s32.f32 %v1278
          %1281 = vmin.xlane.f32.xlu0 %v1280
          %v1282 = vpop.xlane.xlu0 %1281
          %vm1283 = vcmp.eq.f32.partialorder %v1280, %v1282
          %v1284 = vsel %vm1283, %v1279, inf
          %1285 = vmin.xlane.f32.xlu0 %v1284
          %v1286 = vpop.xlane.xlu0 %1285
          %v1287 = vcvt.f32.s32 %v1286
          %v1288 = vcvt.f32.s32 %v1282
          %v1289 = vshll.u32 %v1288, 16
          %v1290 = vadd.s32 %v1289, %v1287
          %v1291 = vperm.slane %v1290, 0
          %vm1292 = vcmp.eq.s32.totalorder %v458, %v1291
          %vm1293 = vcmp.lt.f32.partialorder %v1273, 0.5
          %v1294 = vsel %vm1293, 1, 0
          %v1295 = vperm.slane %v1294, 0
          %vm1296 = vcmp.eq.s32.totalorder %v1295, 1
          %vm1297 = vmand %vm1292, %vm1296
          %vm1298 = vmand %vm1297, %vm1267
          %vm1299 = vmor %vm1204, %vm1298
          %vm1300 = vcmp.gt.f32.partialorder %v1268, %v1206
          %v1301 = vsel %vm1300, %v1268, %v1206
          %v1302 = vsel %vm1300, %v1225, %v1207
          %v1303 = vsel %vm1300, %v1231, %v1208
          %v1304 = vsel %vm1300, %v1237, %v1209
          %v1305 = vsel %vm1300, %v1243, %v1210
          %1306 = vrot.lane.b32.xlu0 %v1223, 124
          %v1307 = vpop.permute.xlu0 %1306
          %s1308 = vtos %v1307
          %v1309 = vstv %s1308
          %v1311 = vsel %vm1300, %v1309, %v1216
          %1312 = vrot.lane.b32.xlu0 %v1223, 123
          %v1313 = vpop.permute.xlu0 %1312
          %s1314 = vtos %v1313
          %v1315 = vstv %s1314
          %v1317 = vsel %vm1300, %v1315, %v1222
          %v1318 = vrot.slane %v449, 3
          %s1319 = vtos %v1318
          %v1320 = vstv %s1319
          %v1322 = vmax.f32 %v439, %v1320
          %1323 = vrot.lane.b32.xlu0 %v1318, 127
          %v1324 = vpop.permute.xlu0 %1323
          %s1325 = vtos %v1324
          %v1326 = vstv %s1325
          %v1328 = vmax.f32 %v441, %v1326
          %1329 = vrot.lane.b32.xlu0 %v1318, 126
          %v1330 = vpop.permute.xlu0 %1329
          %s1331 = vtos %v1330
          %v1332 = vstv %s1331
          %v1334 = vmin.f32 %v443, %v1332
          %1335 = vrot.lane.b32.xlu0 %v1318, 125
          %v1336 = vpop.permute.xlu0 %1335
          %s1337 = vtos %v1336
          %v1338 = vstv %s1337
          %v1340 = vmin.f32 %v445, %v1338
          %v1341 = vsub.f32 %v1334, %v1322
          %v1342 = vmax.f32 %v1341, 0.0
          %v1343 = vsub.f32 %v1340, %v1328
          %v1344 = vmax.f32 %v1343, 0.0
          %v1345 = vmul.f32 %v1342, %v1344
          %v1346 = vrot.slane %v1060, 3
          %1347 = vrot.lane.b32.xlu0 %v1346, 126
          %v1348 = vpop.permute.xlu0 %1347
          %s1349 = vtos %v1348
          %v1350 = vstv %s1349
          %v1352 = vadd.f32 %v448, %v1350
          %v1353 = vsub.f32 %v1352, %v1345
          %v1354 = vadd.f32 %v1353, 1e-08
          %v1355 = vrcp.pop %v1354
          %v1356 = vmul.f32 %v1345, %v1355
          %v1357 = vrot.slane %v1072, 3
          %1358 = vrot.lane.b32.xlu0 %v1357, 123
          %v1359 = vpop.permute.xlu0 %1358
          %s1360 = vtos %v1359
          %v1361 = vstv %s1360
          %vm1362 = vcmp.eq.s32.totalorder %v1361, 1
          %v1363 = vsel %vm1362, %v1356, -1e+09
          %v1364 = vld [vmem:[#allocation2 + $0x3] sm:$0x1]
          %v1365 = vld [vmem:[#allocation3 + $0x3] sm:$0x1]
          %v1366 = vsel %vm1081, %v1364, -inf
          %1367 = vmax.xlane.f32.xlu0 %v1366
          %v1368 = vpop.xlane.xlu0 %1367
          %vm1369 = vcmp.eq.f32.partialorder %v1364, %v1368
          %v1370 = vsel %vm1369, %v1365, 1073741824
          %v1371 = vsel %vm1081, %v1370, 2147483647
          %v1372 = vand.u32 %v1371, 65535
          %v1373 = vshra.s32 %v1371, 16
          %v1374 = vcvt.s32.f32 %v1372
          %v1375 = vcvt.s32.f32 %v1373
          %1376 = vmin.xlane.f32.xlu0 %v1375
          %v1377 = vpop.xlane.xlu0 %1376
          %vm1378 = vcmp.eq.f32.partialorder %v1375, %v1377
          %v1379 = vsel %vm1378, %v1374, inf
          %1380 = vmin.xlane.f32.xlu0 %v1379
          %v1381 = vpop.xlane.xlu0 %1380
          %v1382 = vcvt.f32.s32 %v1381
          %v1383 = vcvt.f32.s32 %v1377
          %v1384 = vshll.u32 %v1383, 16
          %v1385 = vadd.s32 %v1384, %v1382
          %v1386 = vperm.slane %v1385, 0
          %vm1387 = vcmp.eq.s32.totalorder %v458, %v1386
          %vm1388 = vcmp.lt.f32.partialorder %v1368, 0.5
          %v1389 = vsel %vm1388, 1, 0
          %v1390 = vperm.slane %v1389, 0
          %vm1391 = vcmp.eq.s32.totalorder %v1390, 1
          %vm1392 = vmand %vm1387, %vm1391
          %vm1393 = vmand %vm1392, %vm1362
          %vm1394 = vmor %vm1299, %vm1393
          %vm1395 = vcmp.gt.f32.partialorder %v1363, %v1301
          %v1396 = vsel %vm1395, %v1363, %v1301
          %v1397 = vsel %vm1395, %v1320, %v1302
          %v1398 = vsel %vm1395, %v1326, %v1303
          %v1399 = vsel %vm1395, %v1332, %v1304
          %v1400 = vsel %vm1395, %v1338, %v1305
          %1401 = vrot.lane.b32.xlu0 %v1318, 124
          %v1402 = vpop.permute.xlu0 %1401
          %s1403 = vtos %v1402
          %v1404 = vstv %s1403
          %v1406 = vsel %vm1395, %v1404, %v1311
          %1407 = vrot.lane.b32.xlu0 %v1318, 123
          %v1408 = vpop.permute.xlu0 %1407
          %s1409 = vtos %v1408
          %v1410 = vstv %s1409
          %v1412 = vsel %vm1395, %v1410, %v1317
          %v1413 = vrot.slane %v449, 4
          %s1414 = vtos %v1413
          %v1415 = vstv %s1414
          %v1417 = vmax.f32 %v439, %v1415
          %1418 = vrot.lane.b32.xlu0 %v1413, 127
          %v1419 = vpop.permute.xlu0 %1418
          %s1420 = vtos %v1419
          %v1421 = vstv %s1420
          %v1423 = vmax.f32 %v441, %v1421
          %1424 = vrot.lane.b32.xlu0 %v1413, 126
          %v1425 = vpop.permute.xlu0 %1424
          %s1426 = vtos %v1425
          %v1427 = vstv %s1426
          %v1429 = vmin.f32 %v443, %v1427
          %1430 = vrot.lane.b32.xlu0 %v1413, 125
          %v1431 = vpop.permute.xlu0 %1430
          %s1432 = vtos %v1431
          %v1433 = vstv %s1432
          %v1435 = vmin.f32 %v445, %v1433
          %v1436 = vsub.f32 %v1429, %v1417
          %v1437 = vmax.f32 %v1436, 0.0
          %v1438 = vsub.f32 %v1435, %v1423
          %v1439 = vmax.f32 %v1438, 0.0
          %v1440 = vmul.f32 %v1437, %v1439
          %v1441 = vrot.slane %v1060, 4
          %1442 = vrot.lane.b32.xlu0 %v1441, 126
          %v1443 = vpop.permute.xlu0 %1442
          %s1444 = vtos %v1443
          %v1445 = vstv %s1444
          %v1447 = vadd.f32 %v448, %v1445
          %v1448 = vsub.f32 %v1447, %v1440
          %v1449 = vadd.f32 %v1448, 1e-08
          %v1450 = vrcp.pop %v1449
          %v1451 = vmul.f32 %v1440, %v1450
          %v1452 = vrot.slane %v1072, 4
          %1453 = vrot.lane.b32.xlu0 %v1452, 123
          %v1454 = vpop.permute.xlu0 %1453
          %s1455 = vtos %v1454
          %v1456 = vstv %s1455
          %vm1457 = vcmp.eq.s32.totalorder %v1456, 1
          %v1458 = vsel %vm1457, %v1451, -1e+09
          %v1459 = vld [vmem:[#allocation2 + $0x4] sm:$0x1]
          %v1460 = vld [vmem:[#allocation3 + $0x4] sm:$0x1]
          %v1461 = vsel %vm1081, %v1459, -inf
          %1462 = vmax.xlane.f32.xlu0 %v1461
          %v1463 = vpop.xlane.xlu0 %1462
          %vm1464 = vcmp.eq.f32.partialorder %v1459, %v1463
          %v1465 = vsel %vm1464, %v1460, 1073741824
          %v1466 = vsel %vm1081, %v1465, 2147483647
          %v1467 = vand.u32 %v1466, 65535
          %v1468 = vshra.s32 %v1466, 16
          %v1469 = vcvt.s32.f32 %v1467
          %v1470 = vcvt.s32.f32 %v1468
          %1471 = vmin.xlane.f32.xlu0 %v1470
          %v1472 = vpop.xlane.xlu0 %1471
          %vm1473 = vcmp.eq.f32.partialorder %v1470, %v1472
          %v1474 = vsel %vm1473, %v1469, inf
          %1475 = vmin.xlane.f32.xlu0 %v1474
          %v1476 = vpop.xlane.xlu0 %1475
          %v1477 = vcvt.f32.s32 %v1476
          %v1478 = vcvt.f32.s32 %v1472
          %v1479 = vshll.u32 %v1478, 16
          %v1480 = vadd.s32 %v1479, %v1477
          %v1481 = vperm.slane %v1480, 0
          %vm1482 = vcmp.eq.s32.totalorder %v458, %v1481
          %vm1483 = vcmp.lt.f32.partialorder %v1463, 0.5
          %v1484 = vsel %vm1483, 1, 0
          %v1485 = vperm.slane %v1484, 0
          %vm1486 = vcmp.eq.s32.totalorder %v1485, 1
          %vm1487 = vmand %vm1482, %vm1486
          %vm1488 = vmand %vm1487, %vm1457
          %vm1489 = vmor %vm1394, %vm1488
          %vm1490 = vcmp.gt.f32.partialorder %v1458, %v1396
          %v1491 = vsel %vm1490, %v1458, %v1396
          %v1492 = vsel %vm1490, %v1415, %v1397
          %v1493 = vsel %vm1490, %v1421, %v1398
          %v1494 = vsel %vm1490, %v1427, %v1399
          %v1495 = vsel %vm1490, %v1433, %v1400
          %1496 = vrot.lane.b32.xlu0 %v1413, 124
          %v1497 = vpop.permute.xlu0 %1496
          %s1498 = vtos %v1497
          %v1499 = vstv %s1498
          %v1501 = vsel %vm1490, %v1499, %v1406
          %1502 = vrot.lane.b32.xlu0 %v1413, 123
          %v1503 = vpop.permute.xlu0 %1502
          %s1504 = vtos %v1503
          %v1505 = vstv %s1504
          %v1507 = vsel %vm1490, %v1505, %v1412
          %v1508 = vrot.slane %v449, 5
          %s1509 = vtos %v1508
          %v1510 = vstv %s1509
          %v1512 = vmax.f32 %v439, %v1510
          %1513 = vrot.lane.b32.xlu0 %v1508, 127
          %v1514 = vpop.permute.xlu0 %1513
          %s1515 = vtos %v1514
          %v1516 = vstv %s1515
          %v1518 = vmax.f32 %v441, %v1516
          %1519 = vrot.lane.b32.xlu0 %v1508, 126
          %v1520 = vpop.permute.xlu0 %1519
          %s1521 = vtos %v1520
          %v1522 = vstv %s1521
          %v1524 = vmin.f32 %v443, %v1522
          %1525 = vrot.lane.b32.xlu0 %v1508, 125
          %v1526 = vpop.permute.xlu0 %1525
          %s1527 = vtos %v1526
          %v1528 = vstv %s1527
          %v1530 = vmin.f32 %v445, %v1528
          %v1531 = vsub.f32 %v1524, %v1512
          %v1532 = vmax.f32 %v1531, 0.0
          %v1533 = vsub.f32 %v1530, %v1518
          %v1534 = vmax.f32 %v1533, 0.0
          %v1535 = vmul.f32 %v1532, %v1534
          %v1536 = vrot.slane %v1060, 5
          %1537 = vrot.lane.b32.xlu0 %v1536, 126
          %v1538 = vpop.permute.xlu0 %1537
          %s1539 = vtos %v1538
          %v1540 = vstv %s1539
          %v1542 = vadd.f32 %v448, %v1540
          %v1543 = vsub.f32 %v1542, %v1535
          %v1544 = vadd.f32 %v1543, 1e-08
          %v1545 = vrcp.pop %v1544
          %v1546 = vmul.f32 %v1535, %v1545
          %v1547 = vrot.slane %v1072, 5
          %1548 = vrot.lane.b32.xlu0 %v1547, 123
          %v1549 = vpop.permute.xlu0 %1548
          %s1550 = vtos %v1549
          %v1551 = vstv %s1550
          %vm1552 = vcmp.eq.s32.totalorder %v1551, 1
          %v1553 = vsel %vm1552, %v1546, -1e+09
          %v1554 = vld [vmem:[#allocation2 + $0x5] sm:$0x1]
          %v1555 = vld [vmem:[#allocation3 + $0x5] sm:$0x1]
          %v1556 = vsel %vm1081, %v1554, -inf
          %1557 = vmax.xlane.f32.xlu0 %v1556
          %v1558 = vpop.xlane.xlu0 %1557
          %vm1559 = vcmp.eq.f32.partialorder %v1554, %v1558
          %v1560 = vsel %vm1559, %v1555, 1073741824
          %v1561 = vsel %vm1081, %v1560, 2147483647
          %v1562 = vand.u32 %v1561, 65535
          %v1563 = vshra.s32 %v1561, 16
          %v1564 = vcvt.s32.f32 %v1562
          %v1565 = vcvt.s32.f32 %v1563
          %1566 = vmin.xlane.f32.xlu0 %v1565
          %v1567 = vpop.xlane.xlu0 %1566
          %vm1568 = vcmp.eq.f32.partialorder %v1565, %v1567
          %v1569 = vsel %vm1568, %v1564, inf
          %1570 = vmin.xlane.f32.xlu0 %v1569
          %v1571 = vpop.xlane.xlu0 %1570
          %v1572 = vcvt.f32.s32 %v1571
          %v1573 = vcvt.f32.s32 %v1567
          %v1574 = vshll.u32 %v1573, 16
          %v1575 = vadd.s32 %v1574, %v1572
          %v1576 = vperm.slane %v1575, 0
          %vm1577 = vcmp.eq.s32.totalorder %v458, %v1576
          %vm1578 = vcmp.lt.f32.partialorder %v1558, 0.5
          %v1579 = vsel %vm1578, 1, 0
          %v1580 = vperm.slane %v1579, 0
          %vm1581 = vcmp.eq.s32.totalorder %v1580, 1
          %vm1582 = vmand %vm1577, %vm1581
          %vm1583 = vmand %vm1582, %vm1552
          %vm1584 = vmor %vm1489, %vm1583
          %vm1585 = vcmp.gt.f32.partialorder %v1553, %v1491
          %v1586 = vsel %vm1585, %v1553, %v1491
          %v1587 = vsel %vm1585, %v1510, %v1492
          %v1588 = vsel %vm1585, %v1516, %v1493
          %v1589 = vsel %vm1585, %v1522, %v1494
          %v1590 = vsel %vm1585, %v1528, %v1495
          %1591 = vrot.lane.b32.xlu0 %v1508, 124
          %v1592 = vpop.permute.xlu0 %1591
          %s1593 = vtos %v1592
          %v1594 = vstv %s1593
          %v1596 = vsel %vm1585, %v1594, %v1501
          %1597 = vrot.lane.b32.xlu0 %v1508, 123
          %v1598 = vpop.permute.xlu0 %1597
          %s1599 = vtos %v1598
          %v1600 = vstv %s1599
          %v1602 = vsel %vm1585, %v1600, %v1507
          %v1603 = vrot.slane %v449, 6
          %s1604 = vtos %v1603
          %v1605 = vstv %s1604
          %v1607 = vmax.f32 %v439, %v1605
          %1608 = vrot.lane.b32.xlu0 %v1603, 127
          %v1609 = vpop.permute.xlu0 %1608
          %s1610 = vtos %v1609
          %v1611 = vstv %s1610
          %v1613 = vmax.f32 %v441, %v1611
          %1614 = vrot.lane.b32.xlu0 %v1603, 126
          %v1615 = vpop.permute.xlu0 %1614
          %s1616 = vtos %v1615
          %v1617 = vstv %s1616
          %v1619 = vmin.f32 %v443, %v1617
          %1620 = vrot.lane.b32.xlu0 %v1603, 125
          %v1621 = vpop.permute.xlu0 %1620
          %s1622 = vtos %v1621
          %v1623 = vstv %s1622
          %v1625 = vmin.f32 %v445, %v1623
          %v1626 = vsub.f32 %v1619, %v1607
          %v1627 = vmax.f32 %v1626, 0.0
          %v1628 = vsub.f32 %v1625, %v1613
          %v1629 = vmax.f32 %v1628, 0.0
          %v1630 = vmul.f32 %v1627, %v1629
          %v1631 = vrot.slane %v1060, 6
          %1632 = vrot.lane.b32.xlu0 %v1631, 126
          %v1633 = vpop.permute.xlu0 %1632
          %s1634 = vtos %v1633
          %v1635 = vstv %s1634
          %v1637 = vadd.f32 %v448, %v1635
          %v1638 = vsub.f32 %v1637, %v1630
          %v1639 = vadd.f32 %v1638, 1e-08
          %v1640 = vrcp.pop %v1639
          %v1641 = vmul.f32 %v1630, %v1640
          %v1642 = vrot.slane %v1072, 6
          %1643 = vrot.lane.b32.xlu0 %v1642, 123
          %v1644 = vpop.permute.xlu0 %1643
          %s1645 = vtos %v1644
          %v1646 = vstv %s1645
          %vm1647 = vcmp.eq.s32.totalorder %v1646, 1
          %v1648 = vsel %vm1647, %v1641, -1e+09
          %v1649 = vld [vmem:[#allocation2 + $0x6] sm:$0x1]
          %v1650 = vld [vmem:[#allocation3 + $0x6] sm:$0x1]
          %v1651 = vsel %vm1081, %v1649, -inf
          %1652 = vmax.xlane.f32.xlu0 %v1651
          %v1653 = vpop.xlane.xlu0 %1652
          %vm1654 = vcmp.eq.f32.partialorder %v1649, %v1653
          %v1655 = vsel %vm1654, %v1650, 1073741824
          %v1656 = vsel %vm1081, %v1655, 2147483647
          %v1657 = vand.u32 %v1656, 65535
          %v1658 = vshra.s32 %v1656, 16
          %v1659 = vcvt.s32.f32 %v1657
          %v1660 = vcvt.s32.f32 %v1658
          %1661 = vmin.xlane.f32.xlu0 %v1660
          %v1662 = vpop.xlane.xlu0 %1661
          %vm1663 = vcmp.eq.f32.partialorder %v1660, %v1662
          %v1664 = vsel %vm1663, %v1659, inf
          %1665 = vmin.xlane.f32.xlu0 %v1664
          %v1666 = vpop.xlane.xlu0 %1665
          %v1667 = vcvt.f32.s32 %v1666
          %v1668 = vcvt.f32.s32 %v1662
          %v1669 = vshll.u32 %v1668, 16
          %v1670 = vadd.s32 %v1669, %v1667
          %v1671 = vperm.slane %v1670, 0
          %vm1672 = vcmp.eq.s32.totalorder %v458, %v1671
          %vm1673 = vcmp.lt.f32.partialorder %v1653, 0.5
          %v1674 = vsel %vm1673, 1, 0
          %v1675 = vperm.slane %v1674, 0
          %vm1676 = vcmp.eq.s32.totalorder %v1675, 1
          %vm1677 = vmand %vm1672, %vm1676
          %vm1678 = vmand %vm1677, %vm1647
          %vm1679 = vmor %vm1584, %vm1678
          %vm1680 = vcmp.gt.f32.partialorder %v1648, %v1586
          %v1681 = vsel %vm1680, %v1648, %v1586
          %v1682 = vsel %vm1680, %v1605, %v1587
          %v1683 = vsel %vm1680, %v1611, %v1588
          %v1684 = vsel %vm1680, %v1617, %v1589
          %v1685 = vsel %vm1680, %v1623, %v1590
          %1686 = vrot.lane.b32.xlu0 %v1603, 124
          %v1687 = vpop.permute.xlu0 %1686
          %s1688 = vtos %v1687
          %v1689 = vstv %s1688
          %v1691 = vsel %vm1680, %v1689, %v1596
          %1692 = vrot.lane.b32.xlu0 %v1603, 123
          %v1693 = vpop.permute.xlu0 %1692
          %s1694 = vtos %v1693
          %v1695 = vstv %s1694
          %v1697 = vsel %vm1680, %v1695, %v1602
          %v1698 = vrot.slane %v449, 7
          %s1699 = vtos %v1698
          %v1700 = vstv %s1699
          %v1702 = vmax.f32 %v439, %v1700
          %1703 = vrot.lane.b32.xlu0 %v1698, 127
          %v1704 = vpop.permute.xlu0 %1703
          %s1705 = vtos %v1704
          %v1706 = vstv %s1705
          %v1708 = vmax.f32 %v441, %v1706
          %1709 = vrot.lane.b32.xlu0 %v1698, 126
          %v1710 = vpop.permute.xlu0 %1709
          %s1711 = vtos %v1710
          %v1712 = vstv %s1711
          %v1714 = vmin.f32 %v443, %v1712
          %1715 = vrot.lane.b32.xlu0 %v1698, 125
          %v1716 = vpop.permute.xlu0 %1715
          %s1717 = vtos %v1716
          %v1718 = vstv %s1717
          %v1720 = vmin.f32 %v445, %v1718
          %v1721 = vsub.f32 %v1714, %v1702
          %v1722 = vmax.f32 %v1721, 0.0
          %v1723 = vsub.f32 %v1720, %v1708
          %v1724 = vmax.f32 %v1723, 0.0
          %v1725 = vmul.f32 %v1722, %v1724
          %v1726 = vrot.slane %v1060, 7
          %1727 = vrot.lane.b32.xlu0 %v1726, 126
          %v1728 = vpop.permute.xlu0 %1727
          %s1729 = vtos %v1728
          %v1730 = vstv %s1729
          %v1732 = vadd.f32 %v448, %v1730
          %v1733 = vsub.f32 %v1732, %v1725
          %v1734 = vadd.f32 %v1733, 1e-08
          %v1735 = vrcp.pop %v1734
          %v1736 = vmul.f32 %v1725, %v1735
          %v1737 = vrot.slane %v1072, 7
          %1738 = vrot.lane.b32.xlu0 %v1737, 123
          %v1739 = vpop.permute.xlu0 %1738
          %s1740 = vtos %v1739
          %v1741 = vstv %s1740
          %vm1742 = vcmp.eq.s32.totalorder %v1741, 1
          %v1743 = vsel %vm1742, %v1736, -1e+09
          %v1744 = vld [vmem:[#allocation2 + $0x7] sm:$0x1]
          %v1745 = vld [vmem:[#allocation3 + $0x7] sm:$0x1]
          %v1746 = vsel %vm1081, %v1744, -inf
          %1747 = vmax.xlane.f32.xlu0 %v1746
          %v1748 = vpop.xlane.xlu0 %1747
          %vm1749 = vcmp.eq.f32.partialorder %v1744, %v1748
          %v1750 = vsel %vm1749, %v1745, 1073741824
          %v1751 = vsel %vm1081, %v1750, 2147483647
          %v1752 = vand.u32 %v1751, 65535
          %v1753 = vshra.s32 %v1751, 16
          %v1754 = vcvt.s32.f32 %v1752
          %v1755 = vcvt.s32.f32 %v1753
          %1756 = vmin.xlane.f32.xlu0 %v1755
          %v1757 = vpop.xlane.xlu0 %1756
          %vm1758 = vcmp.eq.f32.partialorder %v1755, %v1757
          %v1759 = vsel %vm1758, %v1754, inf
          %1760 = vmin.xlane.f32.xlu0 %v1759
          %v1761 = vpop.xlane.xlu0 %1760
          %v1762 = vcvt.f32.s32 %v1761
          %v1763 = vcvt.f32.s32 %v1757
          %v1764 = vshll.u32 %v1763, 16
          %v1765 = vadd.s32 %v1764, %v1762
          %v1766 = vperm.slane %v1765, 0
          %vm1767 = vcmp.eq.s32.totalorder %v458, %v1766
          %vm1768 = vcmp.lt.f32.partialorder %v1748, 0.5
          %v1769 = vsel %vm1768, 1, 0
          %v1770 = vperm.slane %v1769, 0
          %vm1771 = vcmp.eq.s32.totalorder %v1770, 1
          %vm1772 = vmand %vm1767, %vm1771
          %vm1773 = vmand %vm1772, %vm1742
          %vm1774 = vmor %vm1679, %vm1773
          %vm1775 = vcmp.gt.f32.partialorder %v1743, %v1681
          %v1776 = vsel %vm1775, %v1743, %v1681
          %v1777 = vsel %vm1775, %v1700, %v1682
          %v1778 = vsel %vm1775, %v1706, %v1683
          %v1779 = vsel %vm1775, %v1712, %v1684
          %v1780 = vsel %vm1775, %v1718, %v1685
          %1781 = vrot.lane.b32.xlu0 %v1698, 124
          %v1782 = vpop.permute.xlu0 %1781
          %s1783 = vtos %v1782
          %v1784 = vstv %s1783
          %v1786 = vsel %vm1775, %v1784, %v1691
          %1787 = vrot.lane.b32.xlu0 %v1698, 123
          %v1788 = vpop.permute.xlu0 %1787
          %s1789 = vtos %v1788
          %v1790 = vstv %s1789
          %v1792 = vsel %vm1775, %v1790, %v1697
          %vm1793 = vcmp.ge.f32.partialorder %v1776, 0.5
          %vm1794 = vmor %vm1793, %vm1774
          %vm1795 = vcmp.lt.f32.partialorder %v1776, 0.4
          %vm1796 = vmor %vm1794, %vm1795
          %vm1797 = vmand %vm1794, %vm459
          %vm1798 = vmand %vm1796, %vm459
          %v1799 = vsel %vm1797, 1, 0
          %v1800 = vcvt.s32.f32 %v1799
          %v1801 = vld [vmem:[%s383] sm:$0xff]
          %v1802 = vmax.f32 %v1801, 0.0001
          %v1803 = vmin.f32 %v1802, 0.9999
          %vm1804 = vcmp.eq.f32.partialorder %v1792, 0.0
          %vm1805 = vmand %vm1797, %vm1804
          %v1806 = vsel %vm1805, 0.25, 0.75
          %v1807 = vsub.f32 1.0, %v1803
          %v1808 = vsel %vm1805, %v1807, %v1803
          %v1809 = vsub.f32 1.0, %v1808
          %v1810 = vadd.f32 %v1809, 1e-06
          %v1811 = vlog2.pop %v1810
          %v1812 = vmul.f32 %v1811, 0.6931472
          %v1813 = vsub.f32 0.0, %v1812
          %v1814 = vmul.f32 %v1806, %v1808
          %v1815 = vmul.f32 %v1814, %v1808
          %v1816 = vmul.f32 %v1815, %v1813
          %v1817 = vsel %vm1798, %v1816, 0.0
          %v1818 = vadd.f32 %v1817, 0.0
          %s1819 = scalar_lea.vmem %s383, 8 [#allocation5]
          %v1820 = vld [vmem:[%s1819] sm:$0xff]
          %v1821 = vmax.f32 %v1820, 0.0001
          %v1822 = vmin.f32 %v1821, 0.9999
          %vm1823 = vcmp.eq.f32.partialorder %v1792, 1.0
          %vm1824 = vmand %vm1797, %vm1823
          %v1825 = vsel %vm1824, 0.25, 0.75
          %v1826 = vsub.f32 1.0, %v1822
          %v1827 = vsel %vm1824, %v1826, %v1822
          %v1828 = vsub.f32 1.0, %v1827
          %v1829 = vadd.f32 %v1828, 1e-06
          %v1830 = vlog2.pop %v1829
          %v1831 = vmul.f32 %v1830, 0.6931472
          %v1832 = vsub.f32 0.0, %v1831
          %v1833 = vmul.f32 %v1825, %v1827
          %v1834 = vmul.f32 %v1833, %v1827
          %v1835 = vmul.f32 %v1834, %v1832
          %v1836 = vsel %vm1798, %v1835, 0.0
          %v1837 = vadd.f32 %v1818, %v1836
          %s1838 = scalar_lea.vmem %s383, 16 [#allocation5]
          %v1839 = vld [vmem:[%s1838] sm:$0xff]
          %v1840 = vmax.f32 %v1839, 0.0001
          %v1841 = vmin.f32 %v1840, 0.9999
          %vm1842 = vcmp.eq.f32.partialorder %v1792, 2.0
          %vm1843 = vmand %vm1797, %vm1842
          %v1844 = vsel %vm1843, 0.25, 0.75
          %v1845 = vsub.f32 1.0, %v1841
          %v1846 = vsel %vm1843, %v1845, %v1841
          %v1847 = vsub.f32 1.0, %v1846
          %v1848 = vadd.f32 %v1847, 1e-06
          %v1849 = vlog2.pop %v1848
          %v1850 = vmul.f32 %v1849, 0.6931472
          %v1851 = vsub.f32 0.0, %v1850
          %v1852 = vmul.f32 %v1844, %v1846
          %v1853 = vmul.f32 %v1852, %v1846
          %v1854 = vmul.f32 %v1853, %v1851
          %v1855 = vsel %vm1798, %v1854, 0.0
          %v1856 = vadd.f32 %v1837, %v1855
          %s1857 = scalar_lea.vmem %s383, 24 [#allocation5]
          %v1858 = vld [vmem:[%s1857] sm:$0xff]
          %v1859 = vmax.f32 %v1858, 0.0001
          %v1860 = vmin.f32 %v1859, 0.9999
          %vm1861 = vcmp.eq.f32.partialorder %v1792, 3.0
          %vm1862 = vmand %vm1797, %vm1861
          %v1863 = vsel %vm1862, 0.25, 0.75
          %v1864 = vsub.f32 1.0, %v1860
          %v1865 = vsel %vm1862, %v1864, %v1860
          %v1866 = vsub.f32 1.0, %v1865
          %v1867 = vadd.f32 %v1866, 1e-06
          %v1868 = vlog2.pop %v1867
          %v1869 = vmul.f32 %v1868, 0.6931472
          %v1870 = vsub.f32 0.0, %v1869
          %v1871 = vmul.f32 %v1863, %v1865
          %v1872 = vmul.f32 %v1871, %v1865
          %v1873 = vmul.f32 %v1872, %v1870
          %v1874 = vsel %vm1798, %v1873, 0.0
          %v1875 = vadd.f32 %v1856, %v1874
          %s1876 = scalar_lea.vmem %s397, 32 [#allocation7]
          %v1877 = vld [vmem:[%s1876] sm:$0xff]
          %v1878 = vmax.f32 %v446, 0.001
          %v1879 = vmax.f32 %v447, 0.001
          %v1880 = vrcp.pop %v1878
          %v1881 = vrcp.pop %v1879
          %v1882 = vmul.f32 %v1878, 0.5
          %v1883 = vadd.f32 %v439, %v1882
          %v1884 = vmul.f32 %v1879, 0.5
          %v1885 = vadd.f32 %v441, %v1884
          %v1886 = vsub.f32 %v1779, %v1777
          %v1887 = vmax.f32 %v1886, 0.001
          %v1888 = vsub.f32 %v1780, %v1778
          %v1889 = vmax.f32 %v1888, 0.001
          %v1890 = vmul.f32 %v1887, 0.5
          %v1891 = vadd.f32 %v1777, %v1890
          %v1892 = vmul.f32 %v1889, 0.5
          %v1893 = vadd.f32 %v1778, %v1892
          %v1894 = vsub.f32 %v1891, %v1883
          %v1895 = vmul.f32 %v1894, %v1880
          %v1896 = vsub.f32 %v1893, %v1885
          %v1897 = vmul.f32 %v1896, %v1881
          %v1898 = vmul.f32 %v1887, %v1880
          %v1899 = vlog2.pop %v1898
          %v1900 = vmul.f32 %v1899, 0.6931472
          %v1901 = vmul.f32 %v1889, %v1881
          %v1902 = vlog2.pop %v1901
          %v1903 = vmul.f32 %v1902, 0.6931472
          %v1904 = vsub.f32 %v1786, %v1877
          %v1905 = vmul.f32 %v1904, 0.017453292
          %v1906 = vld [vmem:[%s390] sm:$0xff]
          %v1907 = vsub.f32 %v1906, %v1895
          %v1908 = vand.u32 2147483647, %v1907
          %vm1909 = vcmp.lt.f32.partialorder %v1908, 0.11111111
          %v1910 = vmul.f32 %v1908, 4.5
          %v1911 = vmul.f32 %v1910, %v1908
          %v1912 = vsub.f32 %v1908, 0.055555556
          %v1913 = vsel %vm1909, %v1911, %v1912
          %v1914 = vadd.f32 %v1913, 0.0
          %s1915 = scalar_lea.vmem %s390, 8 [#allocation6]
          %v1916 = vld [vmem:[%s1915] sm:$0xff]
          %v1917 = vsub.f32 %v1916, %v1897
          %v1918 = vand.u32 2147483647, %v1917
          %vm1919 = vcmp.lt.f32.partialorder %v1918, 0.11111111
          %v1920 = vmul.f32 %v1918, 4.5
          %v1921 = vmul.f32 %v1920, %v1918
          %v1922 = vsub.f32 %v1918, 0.055555556
          %v1923 = vsel %vm1919, %v1921, %v1922
          %v1924 = vadd.f32 %v1914, %v1923
          %s1925 = scalar_lea.vmem %s390, 16 [#allocation6]
          %v1926 = vld [vmem:[%s1925] sm:$0xff]
          %v1927 = vsub.f32 %v1926, %v1900
          %v1928 = vand.u32 2147483647, %v1927
          %vm1929 = vcmp.lt.f32.partialorder %v1928, 0.11111111
          %v1930 = vmul.f32 %v1928, 4.5
          %v1931 = vmul.f32 %v1930, %v1928
          %v1932 = vsub.f32 %v1928, 0.055555556
          %v1933 = vsel %vm1929, %v1931, %v1932
          %v1934 = vadd.f32 %v1924, %v1933
          %s1935 = scalar_lea.vmem %s390, 24 [#allocation6]
          %v1936 = vld [vmem:[%s1935] sm:$0xff]
          %v1937 = vsub.f32 %v1936, %v1903
          %v1938 = vand.u32 2147483647, %v1937
          %vm1939 = vcmp.lt.f32.partialorder %v1938, 0.11111111
          %v1940 = vmul.f32 %v1938, 4.5
          %v1941 = vmul.f32 %v1940, %v1938
          %v1942 = vsub.f32 %v1938, 0.055555556
          %v1943 = vsel %vm1939, %v1941, %v1942
          %v1944 = vadd.f32 %v1934, %v1943
          %s1945 = scalar_lea.vmem %s390, 32 [#allocation6]
          %v1946 = vld [vmem:[%s1945] sm:$0xff]
          %v1947 = vsub.f32 %v1946, %v1905
          %v1948 = vand.u32 2147483647, %v1947
          %vm1949 = vcmp.lt.f32.partialorder %v1948, 0.11111111
          %v1950 = vmul.f32 %v1948, 4.5
          %v1951 = vmul.f32 %v1950, %v1948
          %v1952 = vsub.f32 %v1948, 0.055555556
          %v1953 = vsel %vm1949, %v1951, %v1952
          %v1954 = vadd.f32 %v1944, %v1953
          %v1955 = vmul.f32 %v1954, %v1800
          %v1956 = vld [vmem:[#allocation4] sm:$0xff]
          %v1957 = vadd.f32 %v1956, %v1875
          %1958 = vst [vmem:[#allocation4] sm:$0xff] %v1957
          %s1959 = scalar_lea.vmem [#allocation4], 8
          %v1960 = vld [vmem:[%s1959] sm:$0xff]
          %v1961 = vadd.f32 %v1960, %v1955
          %1962 = vst [vmem:[%s1959] sm:$0xff] %v1961
          %s1963 = scalar_lea.vmem [#allocation4], 16
          %v1964 = vld [vmem:[%s1963] sm:$0xff]
          %v1965 = vadd.f32 %v1964, %v1800
          %1966 = vst [vmem:[%s1963] sm:$0xff] %v1965
          %p1967 = scmp.eq.s32.totalorder %s22, 1
          // Predicated region
          $region163: #{integrated_loss.1} parent=161 // pred_check
            %p1968 = pneg %p1967
          $region164: #{integrated_loss.1} parent=161 // pred_check_branch
            %1970 = sbr.rel (%p1968) target = $region166
          $region165: #{integrated_loss.1} parent=161 // pred_region
            %v1971 = vcvt.s32.f32 %v1072
            %1973 = vrot.lane.b32.xlu0 %v1971, 123
            %v1974 = vpop.permute.xlu0 %1973
            %vm1976 = vcmask 7168
            %v1977 = vsel %vm1976, %v1974, 0.0
            %1978 = vadd.xlane.f32.xlu0 %v1977
            %v1979 = vpop.xlane.xlu0 %1978
            %v1980 = vrot.slane %v1979, 4
            %v1981 = vadd.f32 %v1979, %v1980
            %v1982 = vrot.slane %v1981, 2
            %v1983 = vadd.f32 %v1981, %v1982
            %v1984 = vrot.slane %v1983, 1
            %v1985 = vadd.f32 %v1983, %v1984
            %s1986 = vtos %v1985
            %v1987 = vld [vmem:[#allocation4] sm:$0xff]
            %1988 = vadd.xlane.f32.xlu0 %v1987
            %v1989 = vpop.xlane.xlu0 %1988
            %v1990 = vrot.slane %v1989, 4
            %v1991 = vadd.f32 %v1989, %v1990
            %v1992 = vrot.slane %v1991, 2
            %v1993 = vadd.f32 %v1991, %v1992
            %v1994 = vrot.slane %v1993, 1
            %v1995 = vadd.f32 %v1993, %v1994
            %s1996 = vtos %v1995
            %v1997 = vld [vmem:[%s1959] sm:$0xff]
            %1998 = vadd.xlane.f32.xlu0 %v1997
            %v1999 = vpop.xlane.xlu0 %1998
            %v2000 = vrot.slane %v1999, 4
            %v2001 = vadd.f32 %v1999, %v2000
            %v2002 = vrot.slane %v2001, 2
            %v2003 = vadd.f32 %v2001, %v2002
            %v2004 = vrot.slane %v2003, 1
            %v2005 = vadd.f32 %v2003, %v2004
            %s2006 = vtos %v2005
            %v2007 = vld [vmem:[%s1963] sm:$0xff]
            %2008 = vadd.xlane.f32.xlu0 %v2007
            %v2009 = vpop.xlane.xlu0 %2008
            %v2010 = vrot.slane %v2009, 4
            %v2011 = vadd.f32 %v2009, %v2010
            %v2012 = vrot.slane %v2011, 2
            %v2013 = vadd.f32 %v2011, %v2012
            %v2014 = vrot.slane %v2013, 1
            %v2015 = vadd.f32 %v2013, %v2014
            %s2016 = vtos %v2015
            %vm2017 = vcmp.eq.s32.totalorder %v453, 0
            %v2018 = vstv %s1996
            %v2019 = vsel %vm2017, %v2018, 0.0
            %vm2020 = vcmp.eq.s32.totalorder %v453, 1
            %v2021 = vstv %s2006
            %v2022 = vsel %vm2020, %v2021, 0.0
            %v2023 = vadd.f32 %v2019, %v2022
            %vm2024 = vcmp.eq.s32.totalorder %v453, 2
            %v2025 = vstv %s2016
            %v2026 = vsel %vm2024, %v2025, 0.0
            %v2027 = vadd.f32 %v2023, %v2026
            %vm2028 = vcmp.eq.s32.totalorder %v453, 3
            %v2029 = vstv %s1986
            %v2030 = vsel %vm2028, %v2029, 0.0
            %v2031 = vadd.f32 %v2027, %v2030
            %vm2032 = vcmask 24576
            %2033 = vst.msk [vmem:[%s438] sm:$0x1] %vm2032, %v2031
          $region166: #{integrated_loss.1} parent=161 // pred_fallthru
            _
        $region162: #{integrated_loss.1} parent=137 // pred_fallthru
          _
        %p2034 = scmp.lt.s32.totalorder %s20, 1
        %s2035 = scalar_select %p2034, %s20, 1
        %s2036 = scalar_lea.vmem %s4, %s2035
        // Predicated region
        $region167: #{integrated_loss.1} parent=137 // pred_check
          %p2037 = pneg %p166
        $region168: #{integrated_loss.1} parent=137 // pred_check_branch
          %2039 = sbr.rel (%p2037) target = $region170
        $region169: #{integrated_loss.1} parent=137 // pred_region
          _
        $region170: #{integrated_loss.1} parent=137 // pred_fallthru
          _
      $region138: #{integrated_loss.1} parent=5 // pred_fallthru
        _
      %p2040 = scmp.le.s32.totalorder 2, %s10
      // Predicated region
      $region171: #{integrated_loss.1} parent=5 // pred_check
        %p2041 = pneg %p2040
      $region172: #{integrated_loss.1} parent=5 // pred_check_branch
        %2043 = sbr.rel (%p2041) target = $region174
      $region173: #{integrated_loss.1} parent=5 // pred_region
        %s2044 = ssub.s32 %s10, 2
        // Predicated region
        $region175: #{integrated_loss.1} parent=173 // pred_check
          %p2045 = pneg %p172
        $region176: #{integrated_loss.1} parent=173 // pred_check_branch
          %2047 = sbr.rel (%p2045) target = $region178
        $region177: #{integrated_loss.1} parent=173 // pred_region
          %p2048 = scmp.lt.s32.totalorder %s23, 1
          %s2049 = scalar_select %p2048, %s23, 1
          %s2050 = scalar_lea.vmem %s4, %s2049
        $region178: #{integrated_loss.1} parent=173 // pred_fallthru
          _
      $region174: #{integrated_loss.1} parent=5 // pred_fallthru
        _
    $region6: #{integrated_loss.1} parent=1 // loop_footer
      %s14 = sadd.s32 1, %s10
    $region7: #{integrated_loss.1} parent=1 // loop_footer_branch
      %9 = sbr.rel target = $region3
    $region8: #{integrated_loss.1} parent=1 // loop_exit
      _

</llo_original>
